<compile_context>
chip_gen: v5e
topology: v5e:2x2
jax: 0.10.0
libtpu: 0.0.40
codegen_flags: <defaults>
</compile_context>

<pallas_src>
import jax
import jax.numpy as jnp
from jax.experimental import pallas as pl
from jax.experimental.pallas import tpu as pltpu

FEATURE_DIM = 1792   # InceptionNet feature width consumed by the classifier head
HIDDEN_DIM = 1024
LANES = 128
SUBLANES = 8


def _round_up(x, m):
    return (x + m - 1) // m * m


def model_kernel(x_ref, mask_ref, wf_ref, bf_ref, w1_ref, b1_ref, w2_ref,
                 b2_ref, out_ref, acc_ref):
    """One (batch-tile i, feature-chunk k) grid step.

    k chunks the 1792-wide feature dim: the frozen feature projection produces
    columns [k*tk, (k+1)*tk) of `features`, which are immediately contracted
    against the matching rows of W1 and accumulated into an f32 VMEM scratch.
    """
    k = pl.program_id(1)

    @pl.when(k == 0)
    def _():
        acc_ref[...] = jnp.zeros_like(acc_ref)

    # Frozen feature-extractor stand-in, one column chunk:
    #   feats[:, kchunk] = x @ Wf[:, kchunk] + bf[kchunk]      (bf16 x bf16 -> f32)
    feats_k = jnp.dot(x_ref[...], wf_ref[...],
                      preferred_element_type=jnp.float32) + bf_ref[...]

    # Partial contraction of Linear(1792 -> 1024):
    #   acc += feats[:, kchunk] @ W1[kchunk, :]
    acc_ref[...] += jnp.dot(feats_k.astype(jnp.bfloat16), w1_ref[...],
                            preferred_element_type=jnp.float32)

    @pl.when(k == pl.num_programs(1) - 1)
    def _():
        # ReLU (Dropout(0.25) is identity at inference time).
        h = jnp.maximum(acc_ref[...] + b1_ref[...], 0.0)
        # Linear(1024 -> num_classes_padded)
        out = jnp.dot(h.astype(jnp.bfloat16), w2_ref[...],
                      preferred_element_type=jnp.float32) + b2_ref[...]
        # logits = out * mask ; masked_fill(mask == 0, -inf)
        mask = mask_ref[...]
        out_ref[...] = jnp.where(mask == 0, -jnp.inf, out * mask)


def model_forward(x_nchw, mask, params, *, feat_chunk=896, batch_tile=128):
    """Runs the classifier head (+ frozen feature stand-in) as one Pallas call."""
    wf, bf, w1, b1, w2, b2 = params
    B = x_nchw.shape[0]
    num_classes = w2.shape[1]
    d_in = wf.shape[0]

    assert FEATURE_DIM % feat_chunk == 0 and feat_chunk % LANES == 0

    # ---- wrapper-side layout plumbing ---------------------------------------
    # Flatten NCHW -> (B, C*H*W); weights/activations bf16, accumulation f32.
    x_flat = x_nchw.reshape(B, -1).astype(jnp.bfloat16)

    # Pad the contraction dim of the frozen projection to a lane multiple.
    d_pad = _round_up(d_in, LANES)

    # Pad batch to a sublane multiple (and to a multiple of the batch tile when
    # it spans several tiles); pad classes to a lane-dense multiple of 128.
    b_pad = _round_up(B, SUBLANES)
    if b_pad > batch_tile:
        b_pad = _round_up(b_pad, batch_tile)
        tm = batch_tile
    else:
        tm = b_pad
    nc_pad = _round_up(num_classes, LANES)

    x_p = jnp.zeros((b_pad, d_pad), jnp.bfloat16).at[:B, :d_in].set(x_flat)
    mask_p = jnp.zeros((b_pad, nc_pad), jnp.float32).at[:B, :num_classes].set(
        mask.astype(jnp.float32))
    wf_p = jnp.zeros((d_pad, FEATURE_DIM), jnp.float32).at[:d_in].set(wf)
    w2_p = jnp.zeros((HIDDEN_DIM, nc_pad), jnp.float32).at[:, :num_classes].set(w2)
    b2_p = jnp.zeros((1, nc_pad), jnp.float32).at[:, :num_classes].set(
        b2.reshape(1, -1))

    wf_b = wf_p.astype(jnp.bfloat16)
    w1_b = w1.astype(jnp.bfloat16)
    w2_b = w2_p.astype(jnp.bfloat16)
    bf_f = bf.reshape(1, FEATURE_DIM).astype(jnp.float32)
    b1_f = b1.reshape(1, HIDDEN_DIM).astype(jnp.float32)

    tk = feat_chunk
    grid = (b_pad // tm, FEATURE_DIM // tk)

    out = pl.pallas_call(
        model_kernel,
        out_shape=jax.ShapeDtypeStruct((b_pad, nc_pad), jnp.float32),
        grid_spec=pltpu.PrefetchScalarGridSpec(
            num_scalar_prefetch=0,
            grid=grid,
            in_specs=[
                pl.BlockSpec((tm, d_pad), lambda i, k: (i, 0)),           # x tile
                pl.BlockSpec((tm, nc_pad), lambda i, k: (i, 0)),          # mask tile
                pl.BlockSpec((d_pad, tk), lambda i, k: (0, k)),           # Wf chunk
                pl.BlockSpec((1, tk), lambda i, k: (0, k)),               # bf chunk
                pl.BlockSpec((tk, HIDDEN_DIM), lambda i, k: (k, 0)),      # W1 chunk
                pl.BlockSpec((1, HIDDEN_DIM), lambda i, k: (0, 0)),       # b1
                pl.BlockSpec((HIDDEN_DIM, nc_pad), lambda i, k: (0, 0)),  # W2
                pl.BlockSpec((1, nc_pad), lambda i, k: (0, 0)),           # b2
            ],
            out_specs=pl.BlockSpec((tm, nc_pad), lambda i, k: (i, 0)),
            scratch_shapes=[pltpu.VMEM((tm, HIDDEN_DIM), jnp.float32)],
        ),
        compiler_params=pltpu.CompilerParams(
            dimension_semantics=("parallel", "arbitrary"),
            vmem_limit_bytes=32 << 20,
        ),
    )(x_p, mask_p, wf_b, bf_f, w1_b, b1_f, w2_b, b2_p)

    return out[:B, :num_classes]


def init_params(key, in_dim, num_classes):
    k = jax.random.split(key, 6)
    wf = jax.random.normal(k[0], (in_dim, FEATURE_DIM), jnp.float32) * 0.02
    bf = jax.random.normal(k[1], (1, FEATURE_DIM), jnp.float32) * 0.01
    w1 = jax.random.normal(k[2], (FEATURE_DIM, HIDDEN_DIM), jnp.float32) * 0.02
    b1 = jax.random.normal(k[3], (1, HIDDEN_DIM), jnp.float32) * 0.01
    w2 = jax.random.normal(k[4], (HIDDEN_DIM, num_classes), jnp.float32) * 0.02
    b2 = jax.random.normal(k[5], (1, num_classes), jnp.float32) * 0.01
    return wf, bf, w1, b1, w2, b2


if __name__ == "__main__":
    key = jax.random.PRNGKey(0)
    kx, kp, km = jax.random.split(key, 3)

    B, C, H, W = 8, 3, 16, 16
    NUM_CLASSES = 16

    x = jax.random.normal(kx, (B, C, H, W), jnp.float32)        # NCHW, like PyTorch
    # mask: 0/1 per-class mask, at least one valid class per row.
    mask = (jax.random.uniform(km, (B, NUM_CLASSES)) > 0.3).astype(jnp.float32)
    mask = mask.at[:, 0].set(1.0)

    params = init_params(kp, C * H * W, NUM_CLASSES)

    logits = model_forward(x, mask, params)
    jax.block_until_ready(logits)

    # Pure-JAX reference with the same bf16-weight / f32-accumulate numerics.
    wf, bf, w1, b1, w2, b2 = params
    xb = x.reshape(B, -1).astype(jnp.bfloat16)
    feats = jnp.dot(xb, wf.astype(jnp.bfloat16),
                    preferred_element_type=jnp.float32) + bf
    h = jnp.maximum(jnp.dot(feats.astype(jnp.bfloat16), w1.astype(jnp.bfloat16),
                            preferred_element_type=jnp.float32) + b1, 0.0)
    out = jnp.dot(h.astype(jnp.bfloat16), w2.astype(jnp.bfloat16),
                  preferred_element_type=jnp.float32) + b2
    ref = jnp.where(mask == 0, -jnp.inf, out * mask)

    finite = mask != 0
    assert bool(jnp.all(jnp.isneginf(logits) == jnp.isneginf(ref)))
    assert bool(jnp.allclose(jnp.where(finite, logits, 0.0),
                             jnp.where(finite, ref, 0.0),
                             rtol=1e-2, atol=1e-2))
    print("KERNEL_OK")
</pallas_src>

<mosaic_0001>
module attributes {stable_mosaic.version = 11 : i64} {
  func.func @model_kernel(%arg0: i32, %arg1: i32, %arg2: memref<8x768xbf16, #tpu.memory_space<vmem>>, %arg3: memref<8x128xf32, #tpu.memory_space<vmem>>, %arg4: memref<768x896xbf16, #tpu.memory_space<vmem>>, %arg5: memref<1x896xf32, #tpu.memory_space<vmem>>, %arg6: memref<896x1024xbf16, #tpu.memory_space<vmem>>, %arg7: memref<1x1024xf32, #tpu.memory_space<vmem>>, %arg8: memref<1024x128xbf16, #tpu.memory_space<vmem>>, %arg9: memref<1x128xf32, #tpu.memory_space<vmem>>, %arg10: memref<8x128xf32, #tpu.memory_space<vmem>>, %arg11: memref<8x1024xf32, #tpu.memory_space<vmem>>) attributes {dimension_semantics = [#tpu.dimension_semantics<parallel>, #tpu.dimension_semantics<arbitrary>], iteration_bounds = array<i64: 1, 2>, scalar_prefetch = 0 : i64, scratch_operands = 1 : i64, tpu.core_type = #tpu.core_type<tc>, window_params = [{transform_indices = @transform_0, window_bounds = array<i64: 8, 768>}, {transform_indices = @transform_1, window_bounds = array<i64: 8, 128>}, {transform_indices = @transform_2, window_bounds = array<i64: 768, 896>}, {transform_indices = @transform_3, window_bounds = array<i64: 1, 896>}, {transform_indices = @transform_4, window_bounds = array<i64: 896, 1024>}, {pipeline_mode = #tpu.pipeline_mode<synchronous>, transform_indices = @transform_5, window_bounds = array<i64: 1, 1024>}, {pipeline_mode = #tpu.pipeline_mode<synchronous>, transform_indices = @transform_6, window_bounds = array<i64: 1024, 128>}, {pipeline_mode = #tpu.pipeline_mode<synchronous>, transform_indices = @transform_7, window_bounds = array<i64: 1, 128>}, {transform_indices = @transform_8, window_bounds = array<i64: 8, 128>}]} {
    %c0_i32 = arith.constant 0 : i32
    %0 = arith.cmpi eq, %arg1, %c0_i32 : i32
    %1 = arith.extui %0 : i1 to i32
    %c0_i32_0 = arith.constant 0 : i32
    %2 = arith.cmpi ne, %1, %c0_i32_0 : i32
    scf.if %2 {
      %cst_14 = arith.constant 0.000000e+00 : f32
      %18 = vector.broadcast %cst_14 : f32 to vector<8x1024xf32>
      %c0_15 = arith.constant 0 : index
      %c0_16 = arith.constant 0 : index
      %19 = vector.load %arg11[%c0_15, %c0_16] : memref<8x1024xf32, #tpu.memory_space<vmem>>, vector<8x1024xf32>
      tpu.vector_store %arg11[%c0_15, %c0_16], %18 {strides = array<i32>} : memref<8x1024xf32, #tpu.memory_space<vmem>>, vector<8x1024xf32>,
    } else {
    }
    %c0 = arith.constant 0 : index
    %c0_1 = arith.constant 0 : index
    %3 = vector.load %arg2[%c0, %c0_1] : memref<8x768xbf16, #tpu.memory_space<vmem>>, vector<8x768xbf16>
    %c0_2 = arith.constant 0 : index
    %c0_3 = arith.constant 0 : index
    %4 = vector.load %arg4[%c0_2, %c0_3] : memref<768x896xbf16, #tpu.memory_space<vmem>>, vector<768x896xbf16>
    %cst = arith.constant dense<0.000000e+00> : vector<8x896xf32>
    %5 = tpu.matmul %3, %4, %cst {dimension_numbers = #tpu.dot_dimension_numbers<[1], [0], [0], [1], [0, 0, 1, 1], [], []>} : vector<8x768xbf16>, vector<768x896xbf16>, vector<8x896xf32> -> vector<8x896xf32>
    %c0_4 = arith.constant 0 : index
    %c0_5 = arith.constant 0 : index
    %6 = vector.load %arg5[%c0_4, %c0_5] : memref<1x896xf32, #tpu.memory_space<vmem>>, vector<1x896xf32>
    %7 = vector.broadcast %6 : vector<1x896xf32> to vector<8x896xf32>
    %8 = arith.addf %5, %7 : vector<8x896xf32>
    %c0_6 = arith.constant 0 : index
    %c0_7 = arith.constant 0 : index
    %9 = vector.load %arg11[%c0_6, %c0_7] : memref<8x1024xf32, #tpu.memory_space<vmem>>, vector<8x1024xf32>
    %10 = arith.truncf %8 : vector<8x896xf32> to vector<8x896xbf16>
    %c0_8 = arith.constant 0 : index
    %c0_9 = arith.constant 0 : index
    %11 = vector.load %arg6[%c0_8, %c0_9] : memref<896x1024xbf16, #tpu.memory_space<vmem>>, vector<896x1024xbf16>
    %cst_10 = arith.constant dense<0.000000e+00> : vector<8x1024xf32>
    %12 = tpu.matmul %10, %11, %cst_10 {dimension_numbers = #tpu.dot_dimension_numbers<[1], [0], [0], [1], [0, 0, 1, 1], [], []>} : vector<8x896xbf16>, vector<896x1024xbf16>, vector<8x1024xf32> -> vector<8x1024xf32>
    %13 = arith.addf %9, %12 : vector<8x1024xf32>
    %c0_11 = arith.constant 0 : index
    %c0_12 = arith.constant 0 : index
    %14 = vector.load %arg11[%c0_11, %c0_12] : memref<8x1024xf32, #tpu.memory_space<vmem>>, vector<8x1024xf32>
    tpu.vector_store %arg11[%c0_11, %c0_12], %13 {strides = array<i32>} : memref<8x1024xf32, #tpu.memory_space<vmem>>, vector<8x1024xf32>,
    %c1_i32 = arith.constant 1 : i32
    %15 = arith.cmpi eq, %arg1, %c1_i32 : i32
    %16 = arith.extui %15 : i1 to i32
    %c0_i32_13 = arith.constant 0 : i32
    %17 = arith.cmpi ne, %16, %c0_i32_13 : i32
    scf.if %17 {
      %c0_14 = arith.constant 0 : index
      %c0_15 = arith.constant 0 : index
      %18 = vector.load %arg11[%c0_14, %c0_15] : memref<8x1024xf32, #tpu.memory_space<vmem>>, vector<8x1024xf32>
      %c0_16 = arith.constant 0 : index
      %c0_17 = arith.constant 0 : index
      %19 = vector.load %arg7[%c0_16, %c0_17] : memref<1x1024xf32, #tpu.memory_space<vmem>>, vector<1x1024xf32>
      %20 = vector.broadcast %19 : vector<1x1024xf32> to vector<8x1024xf32>
      %21 = arith.addf %18, %20 : vector<8x1024xf32>
      %cst_18 = arith.constant 0.000000e+00 : f32
      %22 = vector.broadcast %cst_18 : f32 to vector<8x1024xf32>
      %23 = arith.maximumf %21, %22 : vector<8x1024xf32>
      %24 = arith.truncf %23 : vector<8x1024xf32> to vector<8x1024xbf16>
      %c0_19 = arith.constant 0 : index
      %c0_20 = arith.constant 0 : index
      %25 = vector.load %arg8[%c0_19, %c0_20] : memref<1024x128xbf16, #tpu.memory_space<vmem>>, vector<1024x128xbf16>
      %cst_21 = arith.constant dense<0.000000e+00> : vector<8x128xf32>
      %26 = tpu.matmul %24, %25, %cst_21 {dimension_numbers = #tpu.dot_dimension_numbers<[1], [0], [0], [1], [0, 0, 1, 1], [], []>} : vector<8x1024xbf16>, vector<1024x128xbf16>, vector<8x128xf32> -> vector<8x128xf32>
      %c0_22 = arith.constant 0 : index
      %c0_23 = arith.constant 0 : index
      %27 = vector.load %arg9[%c0_22, %c0_23] : memref<1x128xf32, #tpu.memory_space<vmem>>, vector<1x128xf32>
      %28 = vector.broadcast %27 : vector<1x128xf32> to vector<8x128xf32>
      %29 = arith.addf %26, %28 : vector<8x128xf32>
      %c0_24 = arith.constant 0 : index
      %c0_25 = arith.constant 0 : index
      %30 = vector.load %arg3[%c0_24, %c0_25] : memref<8x128xf32, #tpu.memory_space<vmem>>, vector<8x128xf32>
      %cst_26 = arith.constant 0.000000e+00 : f32
      %31 = vector.broadcast %cst_26 : f32 to vector<8x128xf32>
      %32 = arith.cmpf oeq, %30, %31 : vector<8x128xf32>
      %33 = arith.mulf %29, %30 : vector<8x128xf32>
      %cst_27 = arith.constant 0xFF800000 : f32
      %34 = vector.broadcast %cst_27 : f32 to vector<8x128xf32>
      %35 = arith.select %32, %34, %33 : vector<8x128xi1>, vector<8x128xf32>
      %c0_28 = arith.constant 0 : index
      %c0_29 = arith.constant 0 : index
      %36 = vector.load %arg10[%c0_28, %c0_29] : memref<8x128xf32, #tpu.memory_space<vmem>>, vector<8x128xf32>
      tpu.vector_store %arg10[%c0_28, %c0_29], %35 {strides = array<i32>} : memref<8x128xf32, #tpu.memory_space<vmem>>, vector<8x128xf32>,
    } else {
    }
    return
  }
  func.func @transform_0(%arg0: i32, %arg1: i32) -> (i32, i32) {
    %c0_i32 = arith.constant 0 : i32
    %c0_i32_0 = arith.constant 0 : i32
    return %arg0, %c0_i32 : i32, i32
  }
  func.func @transform_1(%arg0: i32, %arg1: i32) -> (i32, i32) {
    %c0_i32 = arith.constant 0 : i32
    %c0_i32_0 = arith.constant 0 : i32
    return %arg0, %c0_i32 : i32, i32
  }
  func.func @transform_2(%arg0: i32, %arg1: i32) -> (i32, i32) {
    %c0_i32 = arith.constant 0 : i32
    %c0_i32_0 = arith.constant 0 : i32
    return %c0_i32, %arg1 : i32, i32
  }
  func.func @transform_3(%arg0: i32, %arg1: i32) -> (i32, i32) {
    %c0_i32 = arith.constant 0 : i32
    %c0_i32_0 = arith.constant 0 : i32
    return %c0_i32, %arg1 : i32, i32
  }
  func.func @transform_4(%arg0: i32, %arg1: i32) -> (i32, i32) {
    %c0_i32 = arith.constant 0 : i32
    %c0_i32_0 = arith.constant 0 : i32
    return %arg1, %c0_i32 : i32, i32
  }
  func.func @transform_5(%arg0: i32, %arg1: i32) -> (i32, i32) {
    %c0_i32 = arith.constant 0 : i32
    %c0_i32_0 = arith.constant 0 : i32
    %c0_i32_1 = arith.constant 0 : i32
    return %c0_i32, %c0_i32_0 : i32, i32
  }
  func.func @transform_6(%arg0: i32, %arg1: i32) -> (i32, i32) {
    %c0_i32 = arith.constant 0 : i32
    %c0_i32_0 = arith.constant 0 : i32
    %c0_i32_1 = arith.constant 0 : i32
    return %c0_i32, %c0_i32_0 : i32, i32
  }
  func.func @transform_7(%arg0: i32, %arg1: i32) -> (i32, i32) {
    %c0_i32 = arith.constant 0 : i32
    %c0_i32_0 = arith.constant 0 : i32
    %c0_i32_1 = arith.constant 0 : i32
    return %c0_i32, %c0_i32_0 : i32, i32
  }
  func.func @transform_8(%arg0: i32, %arg1: i32) -> (i32, i32) {
    %c0_i32 = arith.constant 0 : i32
    %c0_i32_0 = arith.constant 0 : i32
    return %arg0, %c0_i32 : i32, i32
  }
}

</mosaic_0001>

<llo_original>
// kernel: tpu_custom_call.1
$region0: #{tpu_custom_call.1}
  #allocation0 [shape = 'u32[]', space=smem, size = 0x4, offset = 0x4, fixed_abs, tag = 'smem constant byte address 0x4 - core index']
  #allocation1 [shape = 'u32[72,128]{1,0:T(1,128)}', space=vmem, size = 0x9000, scoped, tag = 'internal scratch']
  #allocation2 [shape = 'f32[8,1024]{1,0:T(8,128)}', space=vmem, size = 0x8000, scoped, tag = 'scratch operand']
  %s0 = inlined_call_operand.hbm [shape: bf16[8,768], index: 0, kind: input, shape index: {}]
  %s1 = inlined_call_operand.hbm [shape: f32[8,128], index: 1, kind: input, shape index: {}]
  %s2 = inlined_call_operand.hbm [shape: bf16[768,1792], index: 2, kind: input, shape index: {}]
  %s3 = inlined_call_operand.hbm [shape: f32[1,1792], index: 3, kind: input, shape index: {}]
  %s4 = inlined_call_operand.hbm [shape: bf16[1792,1024], index: 4, kind: input, shape index: {}]
  %s5 = inlined_call_operand.hbm [shape: f32[1,1024], index: 5, kind: input, shape index: {}]
  %s6 = inlined_call_operand.hbm [shape: bf16[1024,128], index: 6, kind: input, shape index: {}]
  %s7 = inlined_call_operand.hbm [shape: f32[1,128], index: 7, kind: input, shape index: {}]
  %s8 = inlined_call_operand.hbm [shape: f32[8,128], index: 8, kind: output, shape index: {}]
  %s9 = sld [smem:[#allocation0]]
  $region105: #{tpu_custom_call.1} parent=0
    _
  %s11 = ssub.s32 1, %s9
  %s12 = scalar_select 0, %s11, %s9
  $region1: #{tpu_custom_call.1} parent=0
    #allocation3 [shape = 'u8[12288]{0}', space=vmem, size = 0x3000, scoped, tag = 'input window, operand 0, single buffered']
    #allocation4 [shape = 's32[2]{0}', space=sflag, size = 0x8, scoped, tag = 'scoped memory for tpu_custom_call.1']
    #allocation5 [shape = 's32[2]{0}', space=sflag, size = 0x8, scoped, tag = 'scoped memory for tpu_custom_call.1']
    #allocation6 [shape = 'u8[4096]{0}', space=vmem, size = 0x1000, scoped, tag = 'input window, operand 1, single buffered']
    #allocation7 [shape = 's32[1]{0}', space=sflag, size = 0x4, scoped, tag = 'scoped memory for tpu_custom_call.1']
    #allocation8 [shape = 'u8[2752512]{0}', space=vmem, size = 0x2a0000, scoped, tag = 'input window, operand 2']
    #allocation9 [shape = 'u8[7168]{0}', space=vmem, size = 0x1c00, scoped, tag = 'input window, operand 3']
    #allocation10 [shape = 'u8[3670016]{0}', space=vmem, size = 0x380000, scoped, tag = 'input window, operand 4']
    #allocation11 [shape = 'u8[4096]{0}', space=vmem, size = 0x1000, scoped, tag = 'input window, operand 5, single buffered']
    #allocation12 [shape = 'u8[262144]{0}', space=vmem, size = 0x40000, scoped, tag = 'input window, operand 6, single buffered']
    #allocation13 [shape = 's32[1]{0}', space=sflag, size = 0x4, scoped, tag = 'scoped memory for tpu_custom_call.1']
    #allocation14 [shape = 'u8[512]{0}', space=vmem, size = 0x400, scoped, tag = 'input window, operand 7, single buffered']
    #allocation15 [shape = 'u8[4096]{0}', space=vmem, size = 0x1000, scoped, tag = 'output window, operand 0, single buffered']
    %13 = vsyncpa [#allocation4], 0
    %14 = vsyncpa [#allocation7], 0
    %15 = vsyncpa [#allocation13], 0
    %16 = vsyncpa [#allocation5], 0
    loop: start=0, step=1, limit=4
    $region2: #{tpu_custom_call.1} parent=1 // loop_pre_header
      _
    $region3: #{tpu_custom_call.1} parent=1 // loop_header
      %s18 = sphi 0, %s22
      %p19 = scmp.ge.s32.totalorder %s18, 4
      %s25 = sphi 0, %s37
      %s26 = sphi 0, %s33
      %s27 = sphi 0, %s25
      %s28 = sphi 0, %s26
      %s29 = sphi 0, %s27
      %s30 = sphi 0, %s28
      %s40 = sphi 0, %s42
      %s43 = sphi 0, %s40
      %s44 = sphi 0, %s43
      %s60 = sphi 0, %s44
      %s66 = sphi 0, %s68
      %s69 = sphi 0, %s66
      %s70 = sphi 0, %s69
      %s86 = sphi 0, %s70
      %s92 = sphi 0, %s94
      %s95 = sphi 0, %s92
      %s96 = sphi 0, %s95
      %s112 = sphi 0, %s96
      %s118 = sphi 0, %s120
      %s121 = sphi 0, %s118
      %s122 = sphi 0, %s121
      %s138 = sphi 0, %s122
      %s144 = sphi 0, %s146
      %s147 = sphi 0, %s144
      %s148 = sphi 0, %s147
      %s164 = sphi 0, %s148
      %s168 = sphi 0, %s168
      %s170 = sphi 0, %s168
      %s171 = sphi 0, %s170
      %s185 = sphi 0, %s171
      %s189 = sphi 0, %s189
      %s191 = sphi 0, %s189
      %s192 = sphi 0, %s191
      %s206 = sphi 0, %s192
      %s210 = sphi 0, %s210
      %s212 = sphi 0, %s210
      %s213 = sphi 0, %s212
      %s227 = sphi 0, %s213
      %s233 = sphi 0, %s235
      %s236 = sphi 0, %s233
      %s237 = sphi 0, %s236
      %s253 = sphi 0, %s237
    $region4: #{tpu_custom_call.1} parent=1 // loop_header_branch
      %21 = sbr.rel (%p19) target = $region8
    $region5: #{tpu_custom_call.1} parent=1 // loop_body
      %s23 = ssub.s32 %s18, 1
      %s24 = ssub.s32 %s18, 2
      %s31 = sadd.s32 1, %s26
      %p32 = scmp.ge.s32.totalorder %s31, 2
      %s33 = scalar_select %p32, 0, %s31
      %s34 = sadd.s32 1, %s25
      %s35 = scalar_select %p32, %s34, %s25
      %p36 = scmp.ge.s32.totalorder %s35, 1
      %s37 = scalar_select %p36, 0, %s35
      %s38 = ssub.s32 %s25, %s37
      %p39 = scmp.eq.s32.totalorder %s38, 0
      %s41 = sadd.s32 %s40, 1
      %s42 = scalar_select %p39, %s40, %s41
      %p45 = pneg %p39
      %p46 = scmp.eq.s32.totalorder %s18, 1
      %p47 = por %p45, %p46
      %p48 = scmp.ne.s32.totalorder %s40, %s43
      %p49 = scmp.eq.s32.totalorder %s18, 0
      %p50 = por %p48, %p49
      %p51 = scmp.ne.s32.totalorder %s40, %s43
      %p52 = scmp.eq.s32.totalorder %s23, 1
      %p53 = por %p51, %p52
      %p54 = scmp.ne.s32.totalorder %s43, %s44
      %p55 = scmp.eq.s32.totalorder %s23, 0
      %p56 = por %p54, %p55
      %p57 = scmp.ne.s32.totalorder %s43, %s44
      %p58 = scmp.eq.s32.totalorder %s24, 1
      %p59 = por %p57, %p58
      %p61 = scmp.ne.s32.totalorder %s44, %s60
      %p62 = scmp.eq.s32.totalorder %s24, 0
      %p63 = por %p61, %p62
      %s64 = ssub.s32 %s25, %s37
      %p65 = scmp.eq.s32.totalorder %s64, 0
      %s67 = sadd.s32 %s66, 1
      %s68 = scalar_select %p65, %s66, %s67
      %p71 = pneg %p65
      %p72 = scmp.eq.s32.totalorder %s18, 1
      %p73 = por %p71, %p72
      %p74 = scmp.ne.s32.totalorder %s66, %s69
      %p75 = scmp.eq.s32.totalorder %s18, 0
      %p76 = por %p74, %p75
      %p77 = scmp.ne.s32.totalorder %s66, %s69
      %p78 = scmp.eq.s32.totalorder %s23, 1
      %p79 = por %p77, %p78
      %p80 = scmp.ne.s32.totalorder %s69, %s70
      %p81 = scmp.eq.s32.totalorder %s23, 0
      %p82 = por %p80, %p81
      %p83 = scmp.ne.s32.totalorder %s69, %s70
      %p84 = scmp.eq.s32.totalorder %s24, 1
      %p85 = por %p83, %p84
      %p87 = scmp.ne.s32.totalorder %s70, %s86
      %p88 = scmp.eq.s32.totalorder %s24, 0
      %p89 = por %p87, %p88
      %s90 = ssub.s32 %s26, %s33
      %p91 = scmp.eq.s32.totalorder %s90, 0
      %s93 = sadd.s32 %s92, 1
      %s94 = scalar_select %p91, %s92, %s93
      %p97 = pneg %p91
      %p98 = scmp.eq.s32.totalorder %s18, 1
      %p99 = por %p97, %p98
      %p100 = scmp.ne.s32.totalorder %s92, %s95
      %p101 = scmp.eq.s32.totalorder %s18, 0
      %p102 = por %p100, %p101
      %p103 = scmp.ne.s32.totalorder %s92, %s95
      %p104 = scmp.eq.s32.totalorder %s23, 1
      %p105 = por %p103, %p104
      %p106 = scmp.ne.s32.totalorder %s95, %s96
      %p107 = scmp.eq.s32.totalorder %s23, 0
      %p108 = por %p106, %p107
      %p109 = scmp.ne.s32.totalorder %s95, %s96
      %p110 = scmp.eq.s32.totalorder %s24, 1
      %p111 = por %p109, %p110
      %p113 = scmp.ne.s32.totalorder %s96, %s112
      %p114 = scmp.eq.s32.totalorder %s24, 0
      %p115 = por %p113, %p114
      %s116 = ssub.s32 %s26, %s33
      %p117 = scmp.eq.s32.totalorder %s116, 0
      %s119 = sadd.s32 %s118, 1
      %s120 = scalar_select %p117, %s118, %s119
      %p123 = pneg %p117
      %p124 = scmp.eq.s32.totalorder %s18, 1
      %p125 = por %p123, %p124
      %p126 = scmp.ne.s32.totalorder %s118, %s121
      %p127 = scmp.eq.s32.totalorder %s18, 0
      %p128 = por %p126, %p127
      %p129 = scmp.ne.s32.totalorder %s118, %s121
      %p130 = scmp.eq.s32.totalorder %s23, 1
      %p131 = por %p129, %p130
      %p132 = scmp.ne.s32.totalorder %s121, %s122
      %p133 = scmp.eq.s32.totalorder %s23, 0
      %p134 = por %p132, %p133
      %p135 = scmp.ne.s32.totalorder %s121, %s122
      %p136 = scmp.eq.s32.totalorder %s24, 1
      %p137 = por %p135, %p136
      %p139 = scmp.ne.s32.totalorder %s122, %s138
      %p140 = scmp.eq.s32.totalorder %s24, 0
      %p141 = por %p139, %p140
      %s142 = ssub.s32 %s26, %s33
      %p143 = scmp.eq.s32.totalorder %s142, 0
      %s145 = sadd.s32 %s144, 1
      %s146 = scalar_select %p143, %s144, %s145
      %p149 = pneg %p143
      %p150 = scmp.eq.s32.totalorder %s18, 1
      %p151 = por %p149, %p150
      %p152 = scmp.ne.s32.totalorder %s144, %s147
      %p153 = scmp.eq.s32.totalorder %s18, 0
      %p154 = por %p152, %p153
      %p155 = scmp.ne.s32.totalorder %s144, %s147
      %p156 = scmp.eq.s32.totalorder %s23, 1
      %p157 = por %p155, %p156
      %p158 = scmp.ne.s32.totalorder %s147, %s148
      %p159 = scmp.eq.s32.totalorder %s23, 0
      %p160 = por %p158, %p159
      %p161 = scmp.ne.s32.totalorder %s147, %s148
      %p162 = scmp.eq.s32.totalorder %s24, 1
      %p163 = por %p161, %p162
      %p165 = scmp.ne.s32.totalorder %s148, %s164
      %p166 = scmp.eq.s32.totalorder %s24, 0
      %p167 = por %p165, %p166
      %s169 = sadd.s32 %s168, 1
      %p172 = scmp.eq.s32.totalorder %s18, 1
      %p173 = scmp.ne.s32.totalorder %s168, %s170
      %p174 = scmp.eq.s32.totalorder %s18, 0
      %p175 = por %p173, %p174
      %p176 = scmp.ne.s32.totalorder %s168, %s170
      %p177 = scmp.eq.s32.totalorder %s23, 1
      %p178 = por %p176, %p177
      %p179 = scmp.ne.s32.totalorder %s170, %s171
      %p180 = scmp.eq.s32.totalorder %s23, 0
      %p181 = por %p179, %p180
      %p182 = scmp.ne.s32.totalorder %s170, %s171
      %p183 = scmp.eq.s32.totalorder %s24, 1
      %p184 = por %p182, %p183
      %p186 = scmp.ne.s32.totalorder %s171, %s185
      %p187 = scmp.eq.s32.totalorder %s24, 0
      %p188 = por %p186, %p187
      %s190 = sadd.s32 %s189, 1
      %p193 = scmp.eq.s32.totalorder %s18, 1
      %p194 = scmp.ne.s32.totalorder %s189, %s191
      %p195 = scmp.eq.s32.totalorder %s18, 0
      %p196 = por %p194, %p195
      %p197 = scmp.ne.s32.totalorder %s189, %s191
      %p198 = scmp.eq.s32.totalorder %s23, 1
      %p199 = por %p197, %p198
      %p200 = scmp.ne.s32.totalorder %s191, %s192
      %p201 = scmp.eq.s32.totalorder %s23, 0
      %p202 = por %p200, %p201
      %p203 = scmp.ne.s32.totalorder %s191, %s192
      %p204 = scmp.eq.s32.totalorder %s24, 1
      %p205 = por %p203, %p204
      %p207 = scmp.ne.s32.totalorder %s192, %s206
      %p208 = scmp.eq.s32.totalorder %s24, 0
      %p209 = por %p207, %p208
      %s211 = sadd.s32 %s210, 1
      %p214 = scmp.eq.s32.totalorder %s18, 1
      %p215 = scmp.ne.s32.totalorder %s210, %s212
      %p216 = scmp.eq.s32.totalorder %s18, 0
      %p217 = por %p215, %p216
      %p218 = scmp.ne.s32.totalorder %s210, %s212
      %p219 = scmp.eq.s32.totalorder %s23, 1
      %p220 = por %p218, %p219
      %p221 = scmp.ne.s32.totalorder %s212, %s213
      %p222 = scmp.eq.s32.totalorder %s23, 0
      %p223 = por %p221, %p222
      %p224 = scmp.ne.s32.totalorder %s212, %s213
      %p225 = scmp.eq.s32.totalorder %s24, 1
      %p226 = por %p224, %p225
      %p228 = scmp.ne.s32.totalorder %s213, %s227
      %p229 = scmp.eq.s32.totalorder %s24, 0
      %p230 = por %p228, %p229
      %s231 = ssub.s32 %s25, %s37
      %p232 = scmp.eq.s32.totalorder %s231, 0
      %s234 = sadd.s32 %s233, 1
      %s235 = scalar_select %p232, %s233, %s234
      %p238 = pneg %p232
      %p239 = scmp.eq.s32.totalorder %s18, 1
      %p240 = por %p238, %p239
      %p241 = scmp.ne.s32.totalorder %s233, %s236
      %p242 = scmp.eq.s32.totalorder %s18, 0
      %p243 = por %p241, %p242
      %p244 = scmp.ne.s32.totalorder %s233, %s236
      %p245 = scmp.eq.s32.totalorder %s23, 1
      %p246 = por %p244, %p245
      %p247 = scmp.ne.s32.totalorder %s236, %s237
      %p248 = scmp.eq.s32.totalorder %s23, 0
      %p249 = por %p247, %p248
      %p250 = scmp.ne.s32.totalorder %s236, %s237
      %p251 = scmp.eq.s32.totalorder %s24, 1
      %p252 = por %p250, %p251
      %p254 = scmp.ne.s32.totalorder %s237, %s253
      %p255 = scmp.eq.s32.totalorder %s24, 0
      %p256 = por %p254, %p255
      %p257 = scmp.le.s32.totalorder 1, %s18
      %p258 = scmp.lt.s32.totalorder %s18, 3
      %p259 = pnand %p257, %p258
      %p260 = pneg %p259
      // Predicated region
      $region9: #{tpu_custom_call.1} parent=5 // pred_check
        _
      $region10: #{tpu_custom_call.1} parent=5 // pred_check_branch
        %262 = sbr.rel (%p259) target = $region12
      $region11: #{tpu_custom_call.1} parent=5 // pred_region
        %s263 = ssub.s32 %s18, 1
        // Predicated region
        $region13: #{tpu_custom_call.1} parent=11 // pred_check
          %p264 = pneg %p56
        $region14: #{tpu_custom_call.1} parent=11 // pred_check_branch
          %266 = sbr.rel (%p264) target = $region16
        $region15: #{tpu_custom_call.1} parent=11 // pred_region
          %268 = vsyncadd [#allocation4], 0
          %s269 = smul.addr %s27, 6
          %s270 = smul.addr %s269, 4
          %s271 = scalar_lea.hbm %s0, %s270
          %s273 = sshll.u32 %s271, 4
          %s274 = int_to_ptr.hbm [resolvable:$true] %s273
          %s275 = sshll.u32 [#allocation3], 4
          %s276 = int_to_ptr.vmem [resolvable:$true] %s275
          %278 = dma.hbm_to_vmem [thread:$0]  %s274, 384, %s276, [#allocation4]
        $region16: #{tpu_custom_call.1} parent=11 // pred_fallthru
          _
        // Predicated region
        $region17: #{tpu_custom_call.1} parent=11 // pred_check
          %p279 = pneg %p82
        $region18: #{tpu_custom_call.1} parent=11 // pred_check_branch
          %281 = sbr.rel (%p279) target = $region20
        $region19: #{tpu_custom_call.1} parent=11 // pred_region
          %283 = vsyncadd [#allocation7], 0
          %s284 = smul.addr %s27, 8
          %s285 = scalar_lea.hbm %s1, %s284
          %s287 = sshll.u32 %s285, 4
          %s288 = int_to_ptr.hbm [resolvable:$true] %s287
          %s289 = sshll.u32 [#allocation6], 4
          %s290 = int_to_ptr.vmem [resolvable:$true] %s289
          %292 = dma.hbm_to_vmem [thread:$0]  %s288, 128, %s290, [#allocation7]
        $region20: #{tpu_custom_call.1} parent=11 // pred_fallthru
          _
        // Predicated region
        $region21: #{tpu_custom_call.1} parent=11 // pred_check
          %p293 = pneg %p181
        $region22: #{tpu_custom_call.1} parent=11 // pred_check_branch
          %295 = sbr.rel (%p293) target = $region24
        $region23: #{tpu_custom_call.1} parent=11 // pred_region
          %297 = vsyncadd [#allocation7], 0
          %s299 = sshll.u32 %s5, 4
          %s300 = int_to_ptr.hbm [resolvable:$true] %s299
          %s301 = sshll.u32 [#allocation11], 4
          %s302 = int_to_ptr.vmem [resolvable:$true] %s301
          %304 = dma.hbm_to_vmem [thread:$0]  %s300, 128, %s302, [#allocation7]
        $region24: #{tpu_custom_call.1} parent=11 // pred_fallthru
          _
        // Predicated region
        $region25: #{tpu_custom_call.1} parent=11 // pred_check
          %p305 = pneg %p202
        $region26: #{tpu_custom_call.1} parent=11 // pred_check_branch
          %307 = sbr.rel (%p305) target = $region28
        $region27: #{tpu_custom_call.1} parent=11 // pred_region
          %309 = vsyncadd [#allocation13], 0
          %s310 = sshll.u32 %s6, 4
          %s311 = int_to_ptr.hbm [resolvable:$true] %s310
          %s312 = sshll.u32 [#allocation12], 4
          %s313 = int_to_ptr.vmem [resolvable:$true] %s312
          %318 = dma.hbm_to_vmem [thread:$0]  %s311, 8192, %s313, [#allocation13], 64, 64, 4
        $region28: #{tpu_custom_call.1} parent=11 // pred_fallthru
          _
        // Predicated region
        $region29: #{tpu_custom_call.1} parent=11 // pred_check
          %p319 = pneg %p223
        $region30: #{tpu_custom_call.1} parent=11 // pred_check_branch
          %321 = sbr.rel (%p319) target = $region32
        $region31: #{tpu_custom_call.1} parent=11 // pred_region
          %323 = vsyncadd [#allocation13], 0
          %s325 = sshll.u32 %s7, 4
          %s326 = int_to_ptr.hbm [resolvable:$true] %s325
          %s327 = sshll.u32 [#allocation14], 4
          %s328 = int_to_ptr.vmem [resolvable:$true] %s327
          %330 = dma.hbm_to_vmem [thread:$0]  %s326, 16, %s328, [#allocation13]
        $region32: #{tpu_custom_call.1} parent=11 // pred_fallthru
          _
      $region12: #{tpu_custom_call.1} parent=5 // pred_fallthru
        _
      %p331 = scmp.lt.s32.totalorder %s18, 2
      // Predicated region
      $region33: #{tpu_custom_call.1} parent=5 // pred_check
        %p332 = pneg %p331
      $region34: #{tpu_custom_call.1} parent=5 // pred_check_branch
        %334 = sbr.rel (%p332) target = $region36
      $region35: #{tpu_custom_call.1} parent=5 // pred_region
        // Predicated region
        $region37: #{tpu_custom_call.1} parent=35 // pred_check
          %p335 = pneg %p102
        $region38: #{tpu_custom_call.1} parent=35 // pred_check_branch
          %337 = sbr.rel (%p335) target = $region40
        $region39: #{tpu_custom_call.1} parent=35 // pred_region
          %s338 = sand.u32 %s18, 1
          %s339 = scalar_lea.sflag [#allocation4], %s338
          %s340 = sand.u32 %s92, 1
          %s341 = smul.addr %s340, 2688
          %s342 = scalar_lea.vmem [#allocation8], %s341
          %s343 = smul.u32 7, %s26
          %345 = vsyncadd %s339, 0
          %s346 = smul.addr %s343, 4
          %s347 = scalar_lea.hbm %s2, %s346
          %s348 = sshll.u32 %s347, 4
          %s349 = int_to_ptr.hbm [resolvable:$true] %s348
          %s350 = sshll.u32 %s342, 4
          %s351 = int_to_ptr.vmem [resolvable:$true] %s350
          %356 = dma.hbm_to_vmem [thread:$0]  %s349, 43008, %s351, %s339, 896, 448, 28
        $region40: #{tpu_custom_call.1} parent=35 // pred_fallthru
          _
        // Predicated region
        $region41: #{tpu_custom_call.1} parent=35 // pred_check
          %p357 = pneg %p128
        $region42: #{tpu_custom_call.1} parent=35 // pred_check_branch
          %359 = sbr.rel (%p357) target = $region44
        $region43: #{tpu_custom_call.1} parent=35 // pred_region
          %s360 = sand.u32 %s18, 1
          %s361 = scalar_lea.sflag [#allocation4], %s360
          %s362 = sand.u32 %s118, 1
          %s363 = smul.addr %s362, 7
          %s364 = scalar_lea.vmem [#allocation9], %s363
          %s365 = smul.u32 7, %s26
          %367 = vsyncadd %s361, 0
          %s368 = scalar_lea.hbm %s3, %s365
          %s370 = sshll.u32 %s368, 4
          %s371 = int_to_ptr.hbm [resolvable:$true] %s370
          %s372 = sshll.u32 %s364, 4
          %s373 = int_to_ptr.vmem [resolvable:$true] %s372
          %375 = dma.hbm_to_vmem [thread:$0]  %s371, 112, %s373, %s361
        $region44: #{tpu_custom_call.1} parent=35 // pred_fallthru
          _
        // Predicated region
        $region45: #{tpu_custom_call.1} parent=35 // pred_check
          %p376 = pneg %p154
        $region46: #{tpu_custom_call.1} parent=35 // pred_check_branch
          %378 = sbr.rel (%p376) target = $region48
        $region47: #{tpu_custom_call.1} parent=35 // pred_region
          %s379 = sand.u32 %s18, 1
          %s380 = scalar_lea.sflag [#allocation4], %s379
          %s381 = sand.u32 %s144, 1
          %s382 = smul.addr %s381, 3584
          %s383 = scalar_lea.vmem [#allocation10], %s382
          %s384 = smul.u32 112, %s26
          %386 = vsyncadd %s380, 0
          %s387 = smul.addr %s384, 8
          %s388 = smul.addr %s387, 4
          %s389 = scalar_lea.hbm %s4, %s388
          %s390 = sshll.u32 %s389, 4
          %s391 = int_to_ptr.hbm [resolvable:$true] %s390
          %s392 = sshll.u32 %s383, 4
          %s393 = int_to_ptr.vmem [resolvable:$true] %s392
          %398 = dma.hbm_to_vmem [thread:$0]  %s391, 57344, %s393, %s380, 512, 512, 32
        $region48: #{tpu_custom_call.1} parent=35 // pred_fallthru
          _
      $region36: #{tpu_custom_call.1} parent=5 // pred_fallthru
        _
      %p399 = scmp.le.s32.totalorder 1, %s18
      %p400 = scmp.lt.s32.totalorder %s18, 3
      %p401 = pnand %p399, %p400
      %p402 = pneg %p401
      // Predicated region
      $region49: #{tpu_custom_call.1} parent=5 // pred_check
        _
      $region50: #{tpu_custom_call.1} parent=5 // pred_check_branch
        %404 = sbr.rel (%p401) target = $region52
      $region51: #{tpu_custom_call.1} parent=5 // pred_region
        %s405 = ssub.s32 %s18, 1
        // Predicated region
        $region53: #{tpu_custom_call.1} parent=51 // pred_check
          %p406 = pneg %p56
        $region54: #{tpu_custom_call.1} parent=51 // pred_check_branch
          %408 = sbr.rel (%p406) target = $region56
        $region55: #{tpu_custom_call.1} parent=51 // pred_region
          %410 = dma.done [#allocation4], 384
        $region56: #{tpu_custom_call.1} parent=51 // pred_fallthru
          _
        // Predicated region
        $region57: #{tpu_custom_call.1} parent=51 // pred_check
          %p411 = pneg %p82
        $region58: #{tpu_custom_call.1} parent=51 // pred_check_branch
          %413 = sbr.rel (%p411) target = $region60
        $region59: #{tpu_custom_call.1} parent=51 // pred_region
          %415 = dma.done [#allocation7], 128
        $region60: #{tpu_custom_call.1} parent=51 // pred_fallthru
          _
        %s416 = sand.u32 %s23, 1
        %s417 = scalar_lea.sflag [#allocation4], %s416
        %s418 = sand.u32 %s95, 1
        %s419 = smul.addr %s418, 2688
        %s420 = scalar_lea.vmem [#allocation8], %s419
        // Predicated region
        $region61: #{tpu_custom_call.1} parent=51 // pred_check
          %p421 = pneg %p108
        $region62: #{tpu_custom_call.1} parent=51 // pred_check_branch
          %423 = sbr.rel (%p421) target = $region64
        $region63: #{tpu_custom_call.1} parent=51 // pred_region
          %425 = dma.done %s417, 43008
        $region64: #{tpu_custom_call.1} parent=51 // pred_fallthru
          _
        %s426 = sand.u32 %s23, 1
        %s427 = scalar_lea.sflag [#allocation4], %s426
        %s428 = sand.u32 %s121, 1
        %s429 = smul.addr %s428, 7
        %s430 = scalar_lea.vmem [#allocation9], %s429
        // Predicated region
        $region65: #{tpu_custom_call.1} parent=51 // pred_check
          %p431 = pneg %p134
        $region66: #{tpu_custom_call.1} parent=51 // pred_check_branch
          %433 = sbr.rel (%p431) target = $region68
        $region67: #{tpu_custom_call.1} parent=51 // pred_region
          %435 = dma.done %s427, 112
        $region68: #{tpu_custom_call.1} parent=51 // pred_fallthru
          _
        %s436 = sand.u32 %s23, 1
        %s437 = scalar_lea.sflag [#allocation4], %s436
        %s438 = sand.u32 %s147, 1
        %s439 = smul.addr %s438, 3584
        %s440 = scalar_lea.vmem [#allocation10], %s439
        // Predicated region
        $region69: #{tpu_custom_call.1} parent=51 // pred_check
          %p441 = pneg %p160
        $region70: #{tpu_custom_call.1} parent=51 // pred_check_branch
          %443 = sbr.rel (%p441) target = $region72
        $region71: #{tpu_custom_call.1} parent=51 // pred_region
          %445 = dma.done %s437, 57344
        $region72: #{tpu_custom_call.1} parent=51 // pred_fallthru
          _
        // Predicated region
        $region73: #{tpu_custom_call.1} parent=51 // pred_check
          %p446 = pneg %p181
        $region74: #{tpu_custom_call.1} parent=51 // pred_check_branch
          %448 = sbr.rel (%p446) target = $region76
        $region75: #{tpu_custom_call.1} parent=51 // pred_region
          %450 = dma.done [#allocation7], 128
        $region76: #{tpu_custom_call.1} parent=51 // pred_fallthru
          _
        // Predicated region
        $region77: #{tpu_custom_call.1} parent=51 // pred_check
          %p451 = pneg %p202
        $region78: #{tpu_custom_call.1} parent=51 // pred_check_branch
          %453 = sbr.rel (%p451) target = $region80
        $region79: #{tpu_custom_call.1} parent=51 // pred_region
          %455 = dma.done [#allocation13], 8192
        $region80: #{tpu_custom_call.1} parent=51 // pred_fallthru
          _
        // Predicated region
        $region81: #{tpu_custom_call.1} parent=51 // pred_check
          %p456 = pneg %p223
        $region82: #{tpu_custom_call.1} parent=51 // pred_check_branch
          %458 = sbr.rel (%p456) target = $region84
        $region83: #{tpu_custom_call.1} parent=51 // pred_region
          %460 = dma.done [#allocation13], 16
        $region84: #{tpu_custom_call.1} parent=51 // pred_fallthru
          _
        %p461 = pneg %p56
        %p462 = pneg %p53
        %p463 = pneg %p82
        %p464 = pneg %p79
        %s465 = sand.u32 %s23, 1
        %s466 = scalar_lea.sflag [#allocation4], %s465
        %s467 = sand.u32 %s95, 1
        %s468 = smul.addr %s467, 2688
        %s469 = scalar_lea.vmem [#allocation8], %s468
        %p470 = pneg %p108
        %p471 = pneg %p105
        %s472 = sand.u32 %s23, 1
        %s473 = scalar_lea.sflag [#allocation4], %s472
        %s474 = sand.u32 %s121, 1
        %s475 = smul.addr %s474, 7
        %s476 = scalar_lea.vmem [#allocation9], %s475
        %p477 = pneg %p134
        %p478 = pneg %p131
        %s479 = sand.u32 %s23, 1
        %s480 = scalar_lea.sflag [#allocation4], %s479
        %s481 = sand.u32 %s147, 1
        %s482 = smul.addr %s481, 3584
        %s483 = scalar_lea.vmem [#allocation10], %s482
        %p484 = pneg %p160
        %p485 = pneg %p157
        %p486 = pneg %p181
        %p487 = pneg %p178
        %p488 = pneg %p202
        %p489 = pneg %p199
        %p490 = pneg %p223
        %p491 = pneg %p220
        %p492 = pneg %p249
        %p493 = pneg %p246
        %s494 = smul.u32 7, %s28
        %s495 = smul.u32 7, %s28
        %s496 = smul.u32 112, %s28
        %p497 = scmp.eq.s32.totalorder %s28, 0
        // Predicated region
        $region85: #{tpu_custom_call.1} parent=51 // pred_check
          %p498 = pneg %p497
        $region86: #{tpu_custom_call.1} parent=51 // pred_check_branch
          %500 = sbr.rel (%p498) target = $region88
        $region87: #{tpu_custom_call.1} parent=51 // pred_region
          %501 = vst [vmem:[#allocation2] sm:$0xff] 0.0
          %502 = vst [vmem:[#allocation2 + $0x8] sm:$0xff] 0.0
          %503 = vst [vmem:[#allocation2 + $0x10] sm:$0xff] 0.0
          %504 = vst [vmem:[#allocation2 + $0x18] sm:$0xff] 0.0
          %505 = vst [vmem:[#allocation2 + $0x20] sm:$0xff] 0.0
          %506 = vst [vmem:[#allocation2 + $0x28] sm:$0xff] 0.0
          %507 = vst [vmem:[#allocation2 + $0x30] sm:$0xff] 0.0
          %508 = vst [vmem:[#allocation2 + $0x38] sm:$0xff] 0.0
        $region88: #{tpu_custom_call.1} parent=51 // pred_fallthru
          _
        %v509 = vld [vmem:[#allocation3] sm:$0xff]
        %v510 = vld [vmem:[#allocation3 + $0x8] sm:$0xff]
        %v511 = vld [vmem:[#allocation3 + $0x10] sm:$0xff]
        %v512 = vld [vmem:[%s420] sm:$0xff]
        %v513 = vld [vmem:[%s420 + $0x8] sm:$0xff]
        %v514 = vld [vmem:[%s420 + $0x10] sm:$0xff]
        %v515 = vld [vmem:[%s420 + $0x18] sm:$0xf]
        %v516 = vld [vmem:[%s420 + $0x1c] sm:$0xff]
        %v517 = vld [vmem:[%s420 + $0x24] sm:$0xff]
        %v518 = vld [vmem:[%s420 + $0x2c] sm:$0xff]
        %v519 = vld [vmem:[%s420 + $0x34] sm:$0xf]
        %v520 = vld [vmem:[%s420 + $0x38] sm:$0xff]
        %v521 = vld [vmem:[%s420 + $0x40] sm:$0xff]
        %v522 = vld [vmem:[%s420 + $0x48] sm:$0xff]
        %v523 = vld [vmem:[%s420 + $0x50] sm:$0xf]
        %v524 = vld [vmem:[%s420 + $0x54] sm:$0xff]
        %v525 = vld [vmem:[%s420 + $0x5c] sm:$0xff]
        %v526 = vld [vmem:[%s420 + $0x64] sm:$0xff]
        %v527 = vld [vmem:[%s420 + $0x6c] sm:$0xf]
        %v528 = vld [vmem:[%s420 + $0x70] sm:$0xff]
        %v529 = vld [vmem:[%s420 + $0x78] sm:$0xff]
        %v530 = vld [vmem:[%s420 + $0x80] sm:$0xff]
        %v531 = vld [vmem:[%s420 + $0x88] sm:$0xf]
        %v532 = vld [vmem:[%s420 + $0x8c] sm:$0xff]
        %v533 = vld [vmem:[%s420 + $0x94] sm:$0xff]
        %v534 = vld [vmem:[%s420 + $0x9c] sm:$0xff]
        %v535 = vld [vmem:[%s420 + $0xa4] sm:$0xf]
        %v536 = vld [vmem:[%s420 + $0xa8] sm:$0xff]
        %v537 = vld [vmem:[%s420 + $0xb0] sm:$0xff]
        %v538 = vld [vmem:[%s420 + $0xb8] sm:$0xff]
        %v539 = vld [vmem:[%s420 + $0xc0] sm:$0xf]
        %v540 = vld [vmem:[%s420 + $0xc4] sm:$0xff]
        %v541 = vld [vmem:[%s420 + $0xcc] sm:$0xff]
        %v542 = vld [vmem:[%s420 + $0xd4] sm:$0xff]
        %v543 = vld [vmem:[%s420 + $0xdc] sm:$0xf]
        %v544 = vld [vmem:[%s420 + $0xe0] sm:$0xff]
        %v545 = vld [vmem:[%s420 + $0xe8] sm:$0xff]
        %v546 = vld [vmem:[%s420 + $0xf0] sm:$0xff]
        %v547 = vld [vmem:[%s420 + $0xf8] sm:$0xf]
        %v548 = vld [vmem:[%s420 + $0xfc] sm:$0xff]
        %v549 = vld [vmem:[%s420 + $0x104] sm:$0xff]
        %v550 = vld [vmem:[%s420 + $0x10c] sm:$0xff]
        %v551 = vld [vmem:[%s420 + $0x114] sm:$0xf]
        %v552 = vld [vmem:[%s420 + $0x118] sm:$0xff]
        %v553 = vld [vmem:[%s420 + $0x120] sm:$0xff]
        %v554 = vld [vmem:[%s420 + $0x128] sm:$0xff]
        %v555 = vld [vmem:[%s420 + $0x130] sm:$0xf]
        %v556 = vld [vmem:[%s420 + $0x134] sm:$0xff]
        %v557 = vld [vmem:[%s420 + $0x13c] sm:$0xff]
        %v558 = vld [vmem:[%s420 + $0x144] sm:$0xff]
        %v559 = vld [vmem:[%s420 + $0x14c] sm:$0xf]
        %v560 = vld [vmem:[%s420 + $0x150] sm:$0xff]
        %v561 = vld [vmem:[%s420 + $0x158] sm:$0xff]
        %v562 = vld [vmem:[%s420 + $0x160] sm:$0xff]
        %v563 = vld [vmem:[%s420 + $0x168] sm:$0xf]
        %v564 = vld [vmem:[%s420 + $0x16c] sm:$0xff]
        %v565 = vld [vmem:[%s420 + $0x174] sm:$0xff]
        %v566 = vld [vmem:[%s420 + $0x17c] sm:$0xff]
        %v567 = vld [vmem:[%s420 + $0x184] sm:$0xf]
        %v568 = vld [vmem:[%s420 + $0x188] sm:$0xff]
        %v569 = vld [vmem:[%s420 + $0x190] sm:$0xff]
        %v570 = vld [vmem:[%s420 + $0x198] sm:$0xff]
        %v571 = vld [vmem:[%s420 + $0x1a0] sm:$0xf]
        %v572 = vld [vmem:[%s420 + $0x1a4] sm:$0xff]
        %v573 = vld [vmem:[%s420 + $0x1ac] sm:$0xff]
        %v574 = vld [vmem:[%s420 + $0x1b4] sm:$0xff]
        %v575 = vld [vmem:[%s420 + $0x1bc] sm:$0xf]
        %v576 = vld [vmem:[%s420 + $0x1c0] sm:$0xff]
        %v577 = vld [vmem:[%s420 + $0x1c8] sm:$0xff]
        %v578 = vld [vmem:[%s420 + $0x1d0] sm:$0xff]
        %v579 = vld [vmem:[%s420 + $0x1d8] sm:$0xf]
        %v580 = vld [vmem:[%s420 + $0x1dc] sm:$0xff]
        %v581 = vld [vmem:[%s420 + $0x1e4] sm:$0xff]
        %v582 = vld [vmem:[%s420 + $0x1ec] sm:$0xff]
        %v583 = vld [vmem:[%s420 + $0x1f4] sm:$0xf]
        %v584 = vld [vmem:[%s420 + $0x1f8] sm:$0xff]
        %v585 = vld [vmem:[%s420 + $0x200] sm:$0xff]
        %v586 = vld [vmem:[%s420 + $0x208] sm:$0xff]
        %v587 = vld [vmem:[%s420 + $0x210] sm:$0xf]
        %v588 = vld [vmem:[%s420 + $0x214] sm:$0xff]
        %v589 = vld [vmem:[%s420 + $0x21c] sm:$0xff]
        %v590 = vld [vmem:[%s420 + $0x224] sm:$0xff]
        %v591 = vld [vmem:[%s420 + $0x22c] sm:$0xf]
        %v592 = vld [vmem:[%s420 + $0x230] sm:$0xff]
        %v593 = vld [vmem:[%s420 + $0x238] sm:$0xff]
        %v594 = vld [vmem:[%s420 + $0x240] sm:$0xff]
        %v595 = vld [vmem:[%s420 + $0x248] sm:$0xf]
        %v596 = vld [vmem:[%s420 + $0x24c] sm:$0xff]
        %v597 = vld [vmem:[%s420 + $0x254] sm:$0xff]
        %v598 = vld [vmem:[%s420 + $0x25c] sm:$0xff]
        %v599 = vld [vmem:[%s420 + $0x264] sm:$0xf]
        %v600 = vld [vmem:[%s420 + $0x268] sm:$0xff]
        %v601 = vld [vmem:[%s420 + $0x270] sm:$0xff]
        %v602 = vld [vmem:[%s420 + $0x278] sm:$0xff]
        %v603 = vld [vmem:[%s420 + $0x280] sm:$0xf]
        %v604 = vld [vmem:[%s420 + $0x284] sm:$0xff]
        %v605 = vld [vmem:[%s420 + $0x28c] sm:$0xff]
        %v606 = vld [vmem:[%s420 + $0x294] sm:$0xff]
        %v607 = vld [vmem:[%s420 + $0x29c] sm:$0xf]
        %v608 = vld [vmem:[%s420 + $0x2a0] sm:$0xff]
        %v609 = vld [vmem:[%s420 + $0x2a8] sm:$0xff]
        %v610 = vld [vmem:[%s420 + $0x2b0] sm:$0xff]
        %v611 = vld [vmem:[%s420 + $0x2b8] sm:$0xf]
        %v612 = vld [vmem:[%s420 + $0x2bc] sm:$0xff]
        %v613 = vld [vmem:[%s420 + $0x2c4] sm:$0xff]
        %v614 = vld [vmem:[%s420 + $0x2cc] sm:$0xff]
        %v615 = vld [vmem:[%s420 + $0x2d4] sm:$0xf]
        %v616 = vld [vmem:[%s420 + $0x2d8] sm:$0xff]
        %v617 = vld [vmem:[%s420 + $0x2e0] sm:$0xff]
        %v618 = vld [vmem:[%s420 + $0x2e8] sm:$0xff]
        %v619 = vld [vmem:[%s420 + $0x2f0] sm:$0xf]
        %v620 = vld [vmem:[%s420 + $0x2f4] sm:$0xff]
        %v621 = vld [vmem:[%s420 + $0x2fc] sm:$0xff]
        %v622 = vld [vmem:[%s420 + $0x304] sm:$0xff]
        %v623 = vld [vmem:[%s420 + $0x30c] sm:$0xf]
        %v624 = vld [vmem:[%s420 + $0x310] sm:$0xff]
        %v625 = vld [vmem:[%s420 + $0x318] sm:$0xff]
        %v626 = vld [vmem:[%s420 + $0x320] sm:$0xff]
        %v627 = vld [vmem:[%s420 + $0x328] sm:$0xf]
        %v628 = vld [vmem:[%s420 + $0x32c] sm:$0xff]
        %v629 = vld [vmem:[%s420 + $0x334] sm:$0xff]
        %v630 = vld [vmem:[%s420 + $0x33c] sm:$0xff]
        %v631 = vld [vmem:[%s420 + $0x344] sm:$0xf]
        %v632 = vld [vmem:[%s420 + $0x348] sm:$0xff]
        %v633 = vld [vmem:[%s420 + $0x350] sm:$0xff]
        %v634 = vld [vmem:[%s420 + $0x358] sm:$0xff]
        %v635 = vld [vmem:[%s420 + $0x360] sm:$0xf]
        %v636 = vld [vmem:[%s420 + $0x364] sm:$0xff]
        %v637 = vld [vmem:[%s420 + $0x36c] sm:$0xff]
        %v638 = vld [vmem:[%s420 + $0x374] sm:$0xff]
        %v639 = vld [vmem:[%s420 + $0x37c] sm:$0xf]
        %v640 = vld [vmem:[%s420 + $0x380] sm:$0xff]
        %v641 = vld [vmem:[%s420 + $0x388] sm:$0xff]
        %v642 = vld [vmem:[%s420 + $0x390] sm:$0xff]
        %v643 = vld [vmem:[%s420 + $0x398] sm:$0xf]
        %v644 = vld [vmem:[%s420 + $0x39c] sm:$0xff]
        %v645 = vld [vmem:[%s420 + $0x3a4] sm:$0xff]
        %v646 = vld [vmem:[%s420 + $0x3ac] sm:$0xff]
        %v647 = vld [vmem:[%s420 + $0x3b4] sm:$0xf]
        %v648 = vld [vmem:[%s420 + $0x3b8] sm:$0xff]
        %v649 = vld [vmem:[%s420 + $0x3c0] sm:$0xff]
        %v650 = vld [vmem:[%s420 + $0x3c8] sm:$0xff]
        %v651 = vld [vmem:[%s420 + $0x3d0] sm:$0xf]
        %v652 = vld [vmem:[%s420 + $0x3d4] sm:$0xff]
        %v653 = vld [vmem:[%s420 + $0x3dc] sm:$0xff]
        %v654 = vld [vmem:[%s420 + $0x3e4] sm:$0xff]
        %v655 = vld [vmem:[%s420 + $0x3ec] sm:$0xf]
        %v656 = vld [vmem:[%s420 + $0x3f0] sm:$0xff]
        %v657 = vld [vmem:[%s420 + $0x3f8] sm:$0xff]
        %v658 = vld [vmem:[%s420 + $0x400] sm:$0xff]
        %v659 = vld [vmem:[%s420 + $0x408] sm:$0xf]
        %v660 = vld [vmem:[%s420 + $0x40c] sm:$0xff]
        %v661 = vld [vmem:[%s420 + $0x414] sm:$0xff]
        %v662 = vld [vmem:[%s420 + $0x41c] sm:$0xff]
        %v663 = vld [vmem:[%s420 + $0x424] sm:$0xf]
        %v664 = vld [vmem:[%s420 + $0x428] sm:$0xff]
        %v665 = vld [vmem:[%s420 + $0x430] sm:$0xff]
        %v666 = vld [vmem:[%s420 + $0x438] sm:$0xff]
        %v667 = vld [vmem:[%s420 + $0x440] sm:$0xf]
        %v668 = vld [vmem:[%s420 + $0x444] sm:$0xff]
        %v669 = vld [vmem:[%s420 + $0x44c] sm:$0xff]
        %v670 = vld [vmem:[%s420 + $0x454] sm:$0xff]
        %v671 = vld [vmem:[%s420 + $0x45c] sm:$0xf]
        %v672 = vld [vmem:[%s420 + $0x460] sm:$0xff]
        %v673 = vld [vmem:[%s420 + $0x468] sm:$0xff]
        %v674 = vld [vmem:[%s420 + $0x470] sm:$0xff]
        %v675 = vld [vmem:[%s420 + $0x478] sm:$0xf]
        %v676 = vld [vmem:[%s420 + $0x47c] sm:$0xff]
        %v677 = vld [vmem:[%s420 + $0x484] sm:$0xff]
        %v678 = vld [vmem:[%s420 + $0x48c] sm:$0xff]
        %v679 = vld [vmem:[%s420 + $0x494] sm:$0xf]
        %v680 = vld [vmem:[%s420 + $0x498] sm:$0xff]
        %v681 = vld [vmem:[%s420 + $0x4a0] sm:$0xff]
        %v682 = vld [vmem:[%s420 + $0x4a8] sm:$0xff]
        %v683 = vld [vmem:[%s420 + $0x4b0] sm:$0xf]
        %v684 = vld [vmem:[%s420 + $0x4b4] sm:$0xff]
        %v685 = vld [vmem:[%s420 + $0x4bc] sm:$0xff]
        %v686 = vld [vmem:[%s420 + $0x4c4] sm:$0xff]
        %v687 = vld [vmem:[%s420 + $0x4cc] sm:$0xf]
        %v688 = vld [vmem:[%s420 + $0x4d0] sm:$0xff]
        %v689 = vld [vmem:[%s420 + $0x4d8] sm:$0xff]
        %v690 = vld [vmem:[%s420 + $0x4e0] sm:$0xff]
        %v691 = vld [vmem:[%s420 + $0x4e8] sm:$0xf]
        %v692 = vld [vmem:[%s420 + $0x4ec] sm:$0xff]
        %v693 = vld [vmem:[%s420 + $0x4f4] sm:$0xff]
        %v694 = vld [vmem:[%s420 + $0x4fc] sm:$0xff]
        %v695 = vld [vmem:[%s420 + $0x504] sm:$0xf]
        %v696 = vld [vmem:[%s420 + $0x508] sm:$0xff]
        %v697 = vld [vmem:[%s420 + $0x510] sm:$0xff]
        %v698 = vld [vmem:[%s420 + $0x518] sm:$0xff]
        %v699 = vld [vmem:[%s420 + $0x520] sm:$0xf]
        %v700 = vld [vmem:[%s420 + $0x524] sm:$0xff]
        %v701 = vld [vmem:[%s420 + $0x52c] sm:$0xff]
        %v702 = vld [vmem:[%s420 + $0x534] sm:$0xff]
        %v703 = vld [vmem:[%s420 + $0x53c] sm:$0xf]
        %v704 = vld [vmem:[%s420 + $0x540] sm:$0xff]
        %v705 = vld [vmem:[%s420 + $0x548] sm:$0xff]
        %v706 = vld [vmem:[%s420 + $0x550] sm:$0xff]
        %v707 = vld [vmem:[%s420 + $0x558] sm:$0xf]
        %v708 = vld [vmem:[%s420 + $0x55c] sm:$0xff]
        %v709 = vld [vmem:[%s420 + $0x564] sm:$0xff]
        %v710 = vld [vmem:[%s420 + $0x56c] sm:$0xff]
        %v711 = vld [vmem:[%s420 + $0x574] sm:$0xf]
        %v712 = vld [vmem:[%s420 + $0x578] sm:$0xff]
        %v713 = vld [vmem:[%s420 + $0x580] sm:$0xff]
        %v714 = vld [vmem:[%s420 + $0x588] sm:$0xff]
        %v715 = vld [vmem:[%s420 + $0x590] sm:$0xf]
        %v716 = vld [vmem:[%s420 + $0x594] sm:$0xff]
        %v717 = vld [vmem:[%s420 + $0x59c] sm:$0xff]
        %v718 = vld [vmem:[%s420 + $0x5a4] sm:$0xff]
        %v719 = vld [vmem:[%s420 + $0x5ac] sm:$0xf]
        %v720 = vld [vmem:[%s420 + $0x5b0] sm:$0xff]
        %v721 = vld [vmem:[%s420 + $0x5b8] sm:$0xff]
        %v722 = vld [vmem:[%s420 + $0x5c0] sm:$0xff]
        %v723 = vld [vmem:[%s420 + $0x5c8] sm:$0xf]
        %v724 = vld [vmem:[%s420 + $0x5cc] sm:$0xff]
        %v725 = vld [vmem:[%s420 + $0x5d4] sm:$0xff]
        %v726 = vld [vmem:[%s420 + $0x5dc] sm:$0xff]
        %v727 = vld [vmem:[%s420 + $0x5e4] sm:$0xf]
        %v728 = vld [vmem:[%s420 + $0x5e8] sm:$0xff]
        %v729 = vld [vmem:[%s420 + $0x5f0] sm:$0xff]
        %v730 = vld [vmem:[%s420 + $0x5f8] sm:$0xff]
        %v731 = vld [vmem:[%s420 + $0x600] sm:$0xf]
        %v732 = vld [vmem:[%s420 + $0x604] sm:$0xff]
        %v733 = vld [vmem:[%s420 + $0x60c] sm:$0xff]
        %v734 = vld [vmem:[%s420 + $0x614] sm:$0xff]
        %v735 = vld [vmem:[%s420 + $0x61c] sm:$0xf]
        %v736 = vld [vmem:[%s420 + $0x620] sm:$0xff]
        %v737 = vld [vmem:[%s420 + $0x628] sm:$0xff]
        %v738 = vld [vmem:[%s420 + $0x630] sm:$0xff]
        %v739 = vld [vmem:[%s420 + $0x638] sm:$0xf]
        %v740 = vld [vmem:[%s420 + $0x63c] sm:$0xff]
        %v741 = vld [vmem:[%s420 + $0x644] sm:$0xff]
        %v742 = vld [vmem:[%s420 + $0x64c] sm:$0xff]
        %v743 = vld [vmem:[%s420 + $0x654] sm:$0xf]
        %v744 = vld [vmem:[%s420 + $0x658] sm:$0xff]
        %v745 = vld [vmem:[%s420 + $0x660] sm:$0xff]
        %v746 = vld [vmem:[%s420 + $0x668] sm:$0xff]
        %v747 = vld [vmem:[%s420 + $0x670] sm:$0xf]
        %v748 = vld [vmem:[%s420 + $0x674] sm:$0xff]
        %v749 = vld [vmem:[%s420 + $0x67c] sm:$0xff]
        %v750 = vld [vmem:[%s420 + $0x684] sm:$0xff]
        %v751 = vld [vmem:[%s420 + $0x68c] sm:$0xf]
        %v752 = vld [vmem:[%s420 + $0x690] sm:$0xff]
        %v753 = vld [vmem:[%s420 + $0x698] sm:$0xff]
        %v754 = vld [vmem:[%s420 + $0x6a0] sm:$0xff]
        %v755 = vld [vmem:[%s420 + $0x6a8] sm:$0xf]
        %v756 = vld [vmem:[%s420 + $0x6ac] sm:$0xff]
        %v757 = vld [vmem:[%s420 + $0x6b4] sm:$0xff]
        %v758 = vld [vmem:[%s420 + $0x6bc] sm:$0xff]
        %v759 = vld [vmem:[%s420 + $0x6c4] sm:$0xf]
        %v760 = vld [vmem:[%s420 + $0x6c8] sm:$0xff]
        %v761 = vld [vmem:[%s420 + $0x6d0] sm:$0xff]
        %v762 = vld [vmem:[%s420 + $0x6d8] sm:$0xff]
        %v763 = vld [vmem:[%s420 + $0x6e0] sm:$0xf]
        %v764 = vld [vmem:[%s420 + $0x6e4] sm:$0xff]
        %v765 = vld [vmem:[%s420 + $0x6ec] sm:$0xff]
        %v766 = vld [vmem:[%s420 + $0x6f4] sm:$0xff]
        %v767 = vld [vmem:[%s420 + $0x6fc] sm:$0xf]
        %v768 = vld [vmem:[%s420 + $0x700] sm:$0xff]
        %v769 = vld [vmem:[%s420 + $0x708] sm:$0xff]
        %v770 = vld [vmem:[%s420 + $0x710] sm:$0xff]
        %v771 = vld [vmem:[%s420 + $0x718] sm:$0xf]
        %v772 = vld [vmem:[%s420 + $0x71c] sm:$0xff]
        %v773 = vld [vmem:[%s420 + $0x724] sm:$0xff]
        %v774 = vld [vmem:[%s420 + $0x72c] sm:$0xff]
        %v775 = vld [vmem:[%s420 + $0x734] sm:$0xf]
        %v776 = vld [vmem:[%s420 + $0x738] sm:$0xff]
        %v777 = vld [vmem:[%s420 + $0x740] sm:$0xff]
        %v778 = vld [vmem:[%s420 + $0x748] sm:$0xff]
        %v779 = vld [vmem:[%s420 + $0x750] sm:$0xf]
        %v780 = vld [vmem:[%s420 + $0x754] sm:$0xff]
        %v781 = vld [vmem:[%s420 + $0x75c] sm:$0xff]
        %v782 = vld [vmem:[%s420 + $0x764] sm:$0xff]
        %v783 = vld [vmem:[%s420 + $0x76c] sm:$0xf]
        %v784 = vld [vmem:[%s420 + $0x770] sm:$0xff]
        %v785 = vld [vmem:[%s420 + $0x778] sm:$0xff]
        %v786 = vld [vmem:[%s420 + $0x780] sm:$0xff]
        %v787 = vld [vmem:[%s420 + $0x788] sm:$0xf]
        %v788 = vld [vmem:[%s420 + $0x78c] sm:$0xff]
        %v789 = vld [vmem:[%s420 + $0x794] sm:$0xff]
        %v790 = vld [vmem:[%s420 + $0x79c] sm:$0xff]
        %v791 = vld [vmem:[%s420 + $0x7a4] sm:$0xf]
        %v792 = vld [vmem:[%s420 + $0x7a8] sm:$0xff]
        %v793 = vld [vmem:[%s420 + $0x7b0] sm:$0xff]
        %v794 = vld [vmem:[%s420 + $0x7b8] sm:$0xff]
        %v795 = vld [vmem:[%s420 + $0x7c0] sm:$0xf]
        %v796 = vld [vmem:[%s420 + $0x7c4] sm:$0xff]
        %v797 = vld [vmem:[%s420 + $0x7cc] sm:$0xff]
        %v798 = vld [vmem:[%s420 + $0x7d4] sm:$0xff]
        %v799 = vld [vmem:[%s420 + $0x7dc] sm:$0xf]
        %v800 = vld [vmem:[%s420 + $0x7e0] sm:$0xff]
        %v801 = vld [vmem:[%s420 + $0x7e8] sm:$0xff]
        %v802 = vld [vmem:[%s420 + $0x7f0] sm:$0xff]
        %v803 = vld [vmem:[%s420 + $0x7f8] sm:$0xf]
        %v804 = vld [vmem:[%s420 + $0x7fc] sm:$0xff]
        %v805 = vld [vmem:[%s420 + $0x804] sm:$0xff]
        %v806 = vld [vmem:[%s420 + $0x80c] sm:$0xff]
        %v807 = vld [vmem:[%s420 + $0x814] sm:$0xf]
        %v808 = vld [vmem:[%s420 + $0x818] sm:$0xff]
        %v809 = vld [vmem:[%s420 + $0x820] sm:$0xff]
        %v810 = vld [vmem:[%s420 + $0x828] sm:$0xff]
        %v811 = vld [vmem:[%s420 + $0x830] sm:$0xf]
        %v812 = vld [vmem:[%s420 + $0x834] sm:$0xff]
        %v813 = vld [vmem:[%s420 + $0x83c] sm:$0xff]
        %v814 = vld [vmem:[%s420 + $0x844] sm:$0xff]
        %v815 = vld [vmem:[%s420 + $0x84c] sm:$0xf]
        %v816 = vld [vmem:[%s420 + $0x850] sm:$0xff]
        %v817 = vld [vmem:[%s420 + $0x858] sm:$0xff]
        %v818 = vld [vmem:[%s420 + $0x860] sm:$0xff]
        %v819 = vld [vmem:[%s420 + $0x868] sm:$0xf]
        %v820 = vld [vmem:[%s420 + $0x86c] sm:$0xff]
        %v821 = vld [vmem:[%s420 + $0x874] sm:$0xff]
        %v822 = vld [vmem:[%s420 + $0x87c] sm:$0xff]
        %v823 = vld [vmem:[%s420 + $0x884] sm:$0xf]
        %v824 = vld [vmem:[%s420 + $0x888] sm:$0xff]
        %v825 = vld [vmem:[%s420 + $0x890] sm:$0xff]
        %v826 = vld [vmem:[%s420 + $0x898] sm:$0xff]
        %v827 = vld [vmem:[%s420 + $0x8a0] sm:$0xf]
        %v828 = vld [vmem:[%s420 + $0x8a4] sm:$0xff]
        %v829 = vld [vmem:[%s420 + $0x8ac] sm:$0xff]
        %v830 = vld [vmem:[%s420 + $0x8b4] sm:$0xff]
        %v831 = vld [vmem:[%s420 + $0x8bc] sm:$0xf]
        %v832 = vld [vmem:[%s420 + $0x8c0] sm:$0xff]
        %v833 = vld [vmem:[%s420 + $0x8c8] sm:$0xff]
        %v834 = vld [vmem:[%s420 + $0x8d0] sm:$0xff]
        %v835 = vld [vmem:[%s420 + $0x8d8] sm:$0xf]
        %v836 = vld [vmem:[%s420 + $0x8dc] sm:$0xff]
        %v837 = vld [vmem:[%s420 + $0x8e4] sm:$0xff]
        %v838 = vld [vmem:[%s420 + $0x8ec] sm:$0xff]
        %v839 = vld [vmem:[%s420 + $0x8f4] sm:$0xf]
        %v840 = vld [vmem:[%s420 + $0x8f8] sm:$0xff]
        %v841 = vld [vmem:[%s420 + $0x900] sm:$0xff]
        %v842 = vld [vmem:[%s420 + $0x908] sm:$0xff]
        %v843 = vld [vmem:[%s420 + $0x910] sm:$0xf]
        %v844 = vld [vmem:[%s420 + $0x914] sm:$0xff]
        %v845 = vld [vmem:[%s420 + $0x91c] sm:$0xff]
        %v846 = vld [vmem:[%s420 + $0x924] sm:$0xff]
        %v847 = vld [vmem:[%s420 + $0x92c] sm:$0xf]
        %v848 = vld [vmem:[%s420 + $0x930] sm:$0xff]
        %v849 = vld [vmem:[%s420 + $0x938] sm:$0xff]
        %v850 = vld [vmem:[%s420 + $0x940] sm:$0xff]
        %v851 = vld [vmem:[%s420 + $0x948] sm:$0xf]
        %v852 = vld [vmem:[%s420 + $0x94c] sm:$0xff]
        %v853 = vld [vmem:[%s420 + $0x954] sm:$0xff]
        %v854 = vld [vmem:[%s420 + $0x95c] sm:$0xff]
        %v855 = vld [vmem:[%s420 + $0x964] sm:$0xf]
        %v856 = vld [vmem:[%s420 + $0x968] sm:$0xff]
        %v857 = vld [vmem:[%s420 + $0x970] sm:$0xff]
        %v858 = vld [vmem:[%s420 + $0x978] sm:$0xff]
        %v859 = vld [vmem:[%s420 + $0x980] sm:$0xf]
        %v860 = vld [vmem:[%s420 + $0x984] sm:$0xff]
        %v861 = vld [vmem:[%s420 + $0x98c] sm:$0xff]
        %v862 = vld [vmem:[%s420 + $0x994] sm:$0xff]
        %v863 = vld [vmem:[%s420 + $0x99c] sm:$0xf]
        %v864 = vld [vmem:[%s420 + $0x9a0] sm:$0xff]
        %v865 = vld [vmem:[%s420 + $0x9a8] sm:$0xff]
        %v866 = vld [vmem:[%s420 + $0x9b0] sm:$0xff]
        %v867 = vld [vmem:[%s420 + $0x9b8] sm:$0xf]
        %v868 = vld [vmem:[%s420 + $0x9bc] sm:$0xff]
        %v869 = vld [vmem:[%s420 + $0x9c4] sm:$0xff]
        %v870 = vld [vmem:[%s420 + $0x9cc] sm:$0xff]
        %v871 = vld [vmem:[%s420 + $0x9d4] sm:$0xf]
        %v872 = vld [vmem:[%s420 + $0x9d8] sm:$0xff]
        %v873 = vld [vmem:[%s420 + $0x9e0] sm:$0xff]
        %v874 = vld [vmem:[%s420 + $0x9e8] sm:$0xff]
        %v875 = vld [vmem:[%s420 + $0x9f0] sm:$0xf]
        %v876 = vld [vmem:[%s420 + $0x9f4] sm:$0xff]
        %v877 = vld [vmem:[%s420 + $0x9fc] sm:$0xff]
        %v878 = vld [vmem:[%s420 + $0xa04] sm:$0xff]
        %v879 = vld [vmem:[%s420 + $0xa0c] sm:$0xf]
        %v880 = vld [vmem:[%s420 + $0xa10] sm:$0xff]
        %v881 = vld [vmem:[%s420 + $0xa18] sm:$0xff]
        %v882 = vld [vmem:[%s420 + $0xa20] sm:$0xff]
        %v883 = vld [vmem:[%s420 + $0xa28] sm:$0xf]
        %v884 = vld [vmem:[%s420 + $0xa2c] sm:$0xff]
        %v885 = vld [vmem:[%s420 + $0xa34] sm:$0xff]
        %v886 = vld [vmem:[%s420 + $0xa3c] sm:$0xff]
        %v887 = vld [vmem:[%s420 + $0xa44] sm:$0xf]
        %v888 = vld [vmem:[%s420 + $0xa48] sm:$0xff]
        %v889 = vld [vmem:[%s420 + $0xa50] sm:$0xff]
        %v890 = vld [vmem:[%s420 + $0xa58] sm:$0xff]
        %v891 = vld [vmem:[%s420 + $0xa60] sm:$0xf]
        %v892 = vld [vmem:[%s420 + $0xa64] sm:$0xff]
        %v893 = vld [vmem:[%s420 + $0xa6c] sm:$0xff]
        %v894 = vld [vmem:[%s420 + $0xa74] sm:$0xff]
        %v895 = vld [vmem:[%s420 + $0xa7c] sm:$0xf]
        %v896 = vld [vmem:[%s430] sm:$0xff]
        %v898 = vperm.slane %v896, 0
        %v899 = vperm.slane %v896, 1
        %v900 = vperm.slane %v896, 2
        %v901 = vperm.slane %v896, 3
        %v902 = vperm.slane %v896, 4
        %v903 = vperm.slane %v896, 5
        %v904 = vperm.slane %v896, 6
        %v915 = vunpack.c.l.b16 %v509
        %v916 = vunpack.c.h.b16 %v509
        %v917 = vunpack.c.l.b16 %v510
        %v918 = vunpack.c.h.b16 %v510
        %v919 = vunpack.c.l.b16 %v511
        %v920 = vunpack.c.h.b16 %v511
        %v921 = vpack.c.b16 %v915, %v915
        %v922 = vpack.c.b16 %v916, %v916
        %v923 = vpack.c.b16 %v917, %v917
        %v924 = vpack.c.b16 %v918, %v918
        %v925 = vpack.c.b16 %v919, %v919
        %v926 = vpack.c.b16 %v920, %v920
        %v1317 = vunpack.c.l.b16 %v512
        %v1318 = vunpack.c.h.b16 %v512
        %v1319 = vunpack.c.l.b16 %v513
        %v1320 = vunpack.c.h.b16 %v513
        %v1321 = vunpack.c.l.b16 %v514
        %v1322 = vunpack.c.h.b16 %v514
        %v1323 = vunpack.c.l.b16 %v515
        %v1324 = vunpack.c.l.b16 %v516
        %v1325 = vunpack.c.h.b16 %v516
        %v1326 = vunpack.c.l.b16 %v517
        %v1327 = vunpack.c.h.b16 %v517
        %v1328 = vunpack.c.l.b16 %v518
        %v1329 = vunpack.c.h.b16 %v518
        %v1330 = vunpack.c.l.b16 %v519
        %v1331 = vunpack.c.l.b16 %v520
        %v1332 = vunpack.c.h.b16 %v520
        %v1333 = vunpack.c.l.b16 %v521
        %v1334 = vunpack.c.h.b16 %v521
        %v1335 = vunpack.c.l.b16 %v522
        %v1336 = vunpack.c.h.b16 %v522
        %v1337 = vunpack.c.l.b16 %v523
        %v1338 = vunpack.c.l.b16 %v524
        %v1339 = vunpack.c.h.b16 %v524
        %v1340 = vunpack.c.l.b16 %v525
        %v1341 = vunpack.c.h.b16 %v525
        %v1342 = vunpack.c.l.b16 %v526
        %v1343 = vunpack.c.h.b16 %v526
        %v1344 = vunpack.c.l.b16 %v527
        %v1345 = vunpack.c.l.b16 %v528
        %v1346 = vunpack.c.h.b16 %v528
        %v1347 = vunpack.c.l.b16 %v529
        %v1348 = vunpack.c.h.b16 %v529
        %v1349 = vunpack.c.l.b16 %v530
        %v1350 = vunpack.c.h.b16 %v530
        %v1351 = vunpack.c.l.b16 %v531
        %v1352 = vunpack.c.l.b16 %v532
        %v1353 = vunpack.c.h.b16 %v532
        %v1354 = vunpack.c.l.b16 %v533
        %v1355 = vunpack.c.h.b16 %v533
        %v1356 = vunpack.c.l.b16 %v534
        %v1357 = vunpack.c.h.b16 %v534
        %v1358 = vunpack.c.l.b16 %v535
        %v1359 = vunpack.c.l.b16 %v536
        %v1360 = vunpack.c.h.b16 %v536
        %v1361 = vunpack.c.l.b16 %v537
        %v1362 = vunpack.c.h.b16 %v537
        %v1363 = vunpack.c.l.b16 %v538
        %v1364 = vunpack.c.h.b16 %v538
        %v1365 = vunpack.c.l.b16 %v539
        %v1366 = vunpack.c.l.b16 %v540
        %v1367 = vunpack.c.h.b16 %v540
        %v1368 = vunpack.c.l.b16 %v541
        %v1369 = vunpack.c.h.b16 %v541
        %v1370 = vunpack.c.l.b16 %v542
        %v1371 = vunpack.c.h.b16 %v542
        %v1372 = vunpack.c.l.b16 %v543
        %v1373 = vunpack.c.l.b16 %v544
        %v1374 = vunpack.c.h.b16 %v544
        %v1375 = vunpack.c.l.b16 %v545
        %v1376 = vunpack.c.h.b16 %v545
        %v1377 = vunpack.c.l.b16 %v546
        %v1378 = vunpack.c.h.b16 %v546
        %v1379 = vunpack.c.l.b16 %v547
        %v1380 = vunpack.c.l.b16 %v548
        %v1381 = vunpack.c.h.b16 %v548
        %v1382 = vunpack.c.l.b16 %v549
        %v1383 = vunpack.c.h.b16 %v549
        %v1384 = vunpack.c.l.b16 %v550
        %v1385 = vunpack.c.h.b16 %v550
        %v1386 = vunpack.c.l.b16 %v551
        %v1387 = vunpack.c.l.b16 %v552
        %v1388 = vunpack.c.h.b16 %v552
        %v1389 = vunpack.c.l.b16 %v553
        %v1390 = vunpack.c.h.b16 %v553
        %v1391 = vunpack.c.l.b16 %v554
        %v1392 = vunpack.c.h.b16 %v554
        %v1393 = vunpack.c.l.b16 %v555
        %v1394 = vunpack.c.l.b16 %v556
        %v1395 = vunpack.c.h.b16 %v556
        %v1396 = vunpack.c.l.b16 %v557
        %v1397 = vunpack.c.h.b16 %v557
        %v1398 = vunpack.c.l.b16 %v558
        %v1399 = vunpack.c.h.b16 %v558
        %v1400 = vunpack.c.l.b16 %v559
        %v1401 = vunpack.c.l.b16 %v560
        %v1402 = vunpack.c.h.b16 %v560
        %v1403 = vunpack.c.l.b16 %v561
        %v1404 = vunpack.c.h.b16 %v561
        %v1405 = vunpack.c.l.b16 %v562
        %v1406 = vunpack.c.h.b16 %v562
        %v1407 = vunpack.c.l.b16 %v563
        %v1408 = vunpack.c.l.b16 %v564
        %v1409 = vunpack.c.h.b16 %v564
        %v1410 = vunpack.c.l.b16 %v565
        %v1411 = vunpack.c.h.b16 %v565
        %v1412 = vunpack.c.l.b16 %v566
        %v1413 = vunpack.c.h.b16 %v566
        %v1414 = vunpack.c.l.b16 %v567
        %v1415 = vunpack.c.l.b16 %v568
        %v1416 = vunpack.c.h.b16 %v568
        %v1417 = vunpack.c.l.b16 %v569
        %v1418 = vunpack.c.h.b16 %v569
        %v1419 = vunpack.c.l.b16 %v570
        %v1420 = vunpack.c.h.b16 %v570
        %v1421 = vunpack.c.l.b16 %v571
        %v1422 = vunpack.c.l.b16 %v572
        %v1423 = vunpack.c.h.b16 %v572
        %v1424 = vunpack.c.l.b16 %v573
        %v1425 = vunpack.c.h.b16 %v573
        %v1426 = vunpack.c.l.b16 %v574
        %v1427 = vunpack.c.h.b16 %v574
        %v1428 = vunpack.c.l.b16 %v575
        %v1429 = vunpack.c.l.b16 %v576
        %v1430 = vunpack.c.h.b16 %v576
        %v1431 = vunpack.c.l.b16 %v577
        %v1432 = vunpack.c.h.b16 %v577
        %v1433 = vunpack.c.l.b16 %v578
        %v1434 = vunpack.c.h.b16 %v578
        %v1435 = vunpack.c.l.b16 %v579
        %v1436 = vunpack.c.l.b16 %v580
        %v1437 = vunpack.c.h.b16 %v580
        %v1438 = vunpack.c.l.b16 %v581
        %v1439 = vunpack.c.h.b16 %v581
        %v1440 = vunpack.c.l.b16 %v582
        %v1441 = vunpack.c.h.b16 %v582
        %v1442 = vunpack.c.l.b16 %v583
        %v1443 = vunpack.c.l.b16 %v584
        %v1444 = vunpack.c.h.b16 %v584
        %v1445 = vunpack.c.l.b16 %v585
        %v1446 = vunpack.c.h.b16 %v585
        %v1447 = vunpack.c.l.b16 %v586
        %v1448 = vunpack.c.h.b16 %v586
        %v1449 = vunpack.c.l.b16 %v587
        %v1450 = vunpack.c.l.b16 %v588
        %v1451 = vunpack.c.h.b16 %v588
        %v1452 = vunpack.c.l.b16 %v589
        %v1453 = vunpack.c.h.b16 %v589
        %v1454 = vunpack.c.l.b16 %v590
        %v1455 = vunpack.c.h.b16 %v590
        %v1456 = vunpack.c.l.b16 %v591
        %v1457 = vunpack.c.l.b16 %v592
        %v1458 = vunpack.c.h.b16 %v592
        %v1459 = vunpack.c.l.b16 %v593
        %v1460 = vunpack.c.h.b16 %v593
        %v1461 = vunpack.c.l.b16 %v594
        %v1462 = vunpack.c.h.b16 %v594
        %v1463 = vunpack.c.l.b16 %v595
        %v1464 = vunpack.c.l.b16 %v596
        %v1465 = vunpack.c.h.b16 %v596
        %v1466 = vunpack.c.l.b16 %v597
        %v1467 = vunpack.c.h.b16 %v597
        %v1468 = vunpack.c.l.b16 %v598
        %v1469 = vunpack.c.h.b16 %v598
        %v1470 = vunpack.c.l.b16 %v599
        %v1471 = vunpack.c.l.b16 %v600
        %v1472 = vunpack.c.h.b16 %v600
        %v1473 = vunpack.c.l.b16 %v601
        %v1474 = vunpack.c.h.b16 %v601
        %v1475 = vunpack.c.l.b16 %v602
        %v1476 = vunpack.c.h.b16 %v602
        %v1477 = vunpack.c.l.b16 %v603
        %v1478 = vunpack.c.l.b16 %v604
        %v1479 = vunpack.c.h.b16 %v604
        %v1480 = vunpack.c.l.b16 %v605
        %v1481 = vunpack.c.h.b16 %v605
        %v1482 = vunpack.c.l.b16 %v606
        %v1483 = vunpack.c.h.b16 %v606
        %v1484 = vunpack.c.l.b16 %v607
        %v1485 = vunpack.c.l.b16 %v608
        %v1486 = vunpack.c.h.b16 %v608
        %v1487 = vunpack.c.l.b16 %v609
        %v1488 = vunpack.c.h.b16 %v609
        %v1489 = vunpack.c.l.b16 %v610
        %v1490 = vunpack.c.h.b16 %v610
        %v1491 = vunpack.c.l.b16 %v611
        %v1492 = vunpack.c.l.b16 %v612
        %v1493 = vunpack.c.h.b16 %v612
        %v1494 = vunpack.c.l.b16 %v613
        %v1495 = vunpack.c.h.b16 %v613
        %v1496 = vunpack.c.l.b16 %v614
        %v1497 = vunpack.c.h.b16 %v614
        %v1498 = vunpack.c.l.b16 %v615
        %v1499 = vunpack.c.l.b16 %v616
        %v1500 = vunpack.c.h.b16 %v616
        %v1501 = vunpack.c.l.b16 %v617
        %v1502 = vunpack.c.h.b16 %v617
        %v1503 = vunpack.c.l.b16 %v618
        %v1504 = vunpack.c.h.b16 %v618
        %v1505 = vunpack.c.l.b16 %v619
        %v1506 = vunpack.c.l.b16 %v620
        %v1507 = vunpack.c.h.b16 %v620
        %v1508 = vunpack.c.l.b16 %v621
        %v1509 = vunpack.c.h.b16 %v621
        %v1510 = vunpack.c.l.b16 %v622
        %v1511 = vunpack.c.h.b16 %v622
        %v1512 = vunpack.c.l.b16 %v623
        %v1513 = vunpack.c.l.b16 %v624
        %v1514 = vunpack.c.h.b16 %v624
        %v1515 = vunpack.c.l.b16 %v625
        %v1516 = vunpack.c.h.b16 %v625
        %v1517 = vunpack.c.l.b16 %v626
        %v1518 = vunpack.c.h.b16 %v626
        %v1519 = vunpack.c.l.b16 %v627
        %v1520 = vunpack.c.l.b16 %v628
        %v1521 = vunpack.c.h.b16 %v628
        %v1522 = vunpack.c.l.b16 %v629
        %v1523 = vunpack.c.h.b16 %v629
        %v1524 = vunpack.c.l.b16 %v630
        %v1525 = vunpack.c.h.b16 %v630
        %v1526 = vunpack.c.l.b16 %v631
        %v1527 = vunpack.c.l.b16 %v632
        %v1528 = vunpack.c.h.b16 %v632
        %v1529 = vunpack.c.l.b16 %v633
        %v1530 = vunpack.c.h.b16 %v633
        %v1531 = vunpack.c.l.b16 %v634
        %v1532 = vunpack.c.h.b16 %v634
        %v1533 = vunpack.c.l.b16 %v635
        %v1534 = vunpack.c.l.b16 %v636
        %v1535 = vunpack.c.h.b16 %v636
        %v1536 = vunpack.c.l.b16 %v637
        %v1537 = vunpack.c.h.b16 %v637
        %v1538 = vunpack.c.l.b16 %v638
        %v1539 = vunpack.c.h.b16 %v638
        %v1540 = vunpack.c.l.b16 %v639
        %v1541 = vunpack.c.l.b16 %v640
        %v1542 = vunpack.c.h.b16 %v640
        %v1543 = vunpack.c.l.b16 %v641
        %v1544 = vunpack.c.h.b16 %v641
        %v1545 = vunpack.c.l.b16 %v642
        %v1546 = vunpack.c.h.b16 %v642
        %v1547 = vunpack.c.l.b16 %v643
        %v1548 = vunpack.c.l.b16 %v644
        %v1549 = vunpack.c.h.b16 %v644
        %v1550 = vunpack.c.l.b16 %v645
        %v1551 = vunpack.c.h.b16 %v645
        %v1552 = vunpack.c.l.b16 %v646
        %v1553 = vunpack.c.h.b16 %v646
        %v1554 = vunpack.c.l.b16 %v647
        %v1555 = vunpack.c.l.b16 %v648
        %v1556 = vunpack.c.h.b16 %v648
        %v1557 = vunpack.c.l.b16 %v649
        %v1558 = vunpack.c.h.b16 %v649
        %v1559 = vunpack.c.l.b16 %v650
        %v1560 = vunpack.c.h.b16 %v650
        %v1561 = vunpack.c.l.b16 %v651
        %v1562 = vunpack.c.l.b16 %v652
        %v1563 = vunpack.c.h.b16 %v652
        %v1564 = vunpack.c.l.b16 %v653
        %v1565 = vunpack.c.h.b16 %v653
        %v1566 = vunpack.c.l.b16 %v654
        %v1567 = vunpack.c.h.b16 %v654
        %v1568 = vunpack.c.l.b16 %v655
        %v1569 = vunpack.c.l.b16 %v656
        %v1570 = vunpack.c.h.b16 %v656
        %v1571 = vunpack.c.l.b16 %v657
        %v1572 = vunpack.c.h.b16 %v657
        %v1573 = vunpack.c.l.b16 %v658
        %v1574 = vunpack.c.h.b16 %v658
        %v1575 = vunpack.c.l.b16 %v659
        %v1576 = vunpack.c.l.b16 %v660
        %v1577 = vunpack.c.h.b16 %v660
        %v1578 = vunpack.c.l.b16 %v661
        %v1579 = vunpack.c.h.b16 %v661
        %v1580 = vunpack.c.l.b16 %v662
        %v1581 = vunpack.c.h.b16 %v662
        %v1582 = vunpack.c.l.b16 %v663
        %v1583 = vunpack.c.l.b16 %v664
        %v1584 = vunpack.c.h.b16 %v664
        %v1585 = vunpack.c.l.b16 %v665
        %v1586 = vunpack.c.h.b16 %v665
        %v1587 = vunpack.c.l.b16 %v666
        %v1588 = vunpack.c.h.b16 %v666
        %v1589 = vunpack.c.l.b16 %v667
        %v1590 = vunpack.c.l.b16 %v668
        %v1591 = vunpack.c.h.b16 %v668
        %v1592 = vunpack.c.l.b16 %v669
        %v1593 = vunpack.c.h.b16 %v669
        %v1594 = vunpack.c.l.b16 %v670
        %v1595 = vunpack.c.h.b16 %v670
        %v1596 = vunpack.c.l.b16 %v671
        %v1597 = vunpack.c.l.b16 %v672
        %v1598 = vunpack.c.h.b16 %v672
        %v1599 = vunpack.c.l.b16 %v673
        %v1600 = vunpack.c.h.b16 %v673
        %v1601 = vunpack.c.l.b16 %v674
        %v1602 = vunpack.c.h.b16 %v674
        %v1603 = vunpack.c.l.b16 %v675
        %v1604 = vunpack.c.l.b16 %v676
        %v1605 = vunpack.c.h.b16 %v676
        %v1606 = vunpack.c.l.b16 %v677
        %v1607 = vunpack.c.h.b16 %v677
        %v1608 = vunpack.c.l.b16 %v678
        %v1609 = vunpack.c.h.b16 %v678
        %v1610 = vunpack.c.l.b16 %v679
        %v1611 = vunpack.c.l.b16 %v680
        %v1612 = vunpack.c.h.b16 %v680
        %v1613 = vunpack.c.l.b16 %v681
        %v1614 = vunpack.c.h.b16 %v681
        %v1615 = vunpack.c.l.b16 %v682
        %v1616 = vunpack.c.h.b16 %v682
        %v1617 = vunpack.c.l.b16 %v683
        %v1618 = vunpack.c.l.b16 %v684
        %v1619 = vunpack.c.h.b16 %v684
        %v1620 = vunpack.c.l.b16 %v685
        %v1621 = vunpack.c.h.b16 %v685
        %v1622 = vunpack.c.l.b16 %v686
        %v1623 = vunpack.c.h.b16 %v686
        %v1624 = vunpack.c.l.b16 %v687
        %v1625 = vunpack.c.l.b16 %v688
        %v1626 = vunpack.c.h.b16 %v688
        %v1627 = vunpack.c.l.b16 %v689
        %v1628 = vunpack.c.h.b16 %v689
        %v1629 = vunpack.c.l.b16 %v690
        %v1630 = vunpack.c.h.b16 %v690
        %v1631 = vunpack.c.l.b16 %v691
        %v1632 = vunpack.c.l.b16 %v692
        %v1633 = vunpack.c.h.b16 %v692
        %v1634 = vunpack.c.l.b16 %v693
        %v1635 = vunpack.c.h.b16 %v693
        %v1636 = vunpack.c.l.b16 %v694
        %v1637 = vunpack.c.h.b16 %v694
        %v1638 = vunpack.c.l.b16 %v695
        %v1639 = vunpack.c.l.b16 %v696
        %v1640 = vunpack.c.h.b16 %v696
        %v1641 = vunpack.c.l.b16 %v697
        %v1642 = vunpack.c.h.b16 %v697
        %v1643 = vunpack.c.l.b16 %v698
        %v1644 = vunpack.c.h.b16 %v698
        %v1645 = vunpack.c.l.b16 %v699
        %v1646 = vunpack.c.l.b16 %v700
        %v1647 = vunpack.c.h.b16 %v700
        %v1648 = vunpack.c.l.b16 %v701
        %v1649 = vunpack.c.h.b16 %v701
        %v1650 = vunpack.c.l.b16 %v702
        %v1651 = vunpack.c.h.b16 %v702
        %v1652 = vunpack.c.l.b16 %v703
        %v1653 = vunpack.c.l.b16 %v704
        %v1654 = vunpack.c.h.b16 %v704
        %v1655 = vunpack.c.l.b16 %v705
        %v1656 = vunpack.c.h.b16 %v705
        %v1657 = vunpack.c.l.b16 %v706
        %v1658 = vunpack.c.h.b16 %v706
        %v1659 = vunpack.c.l.b16 %v707
        %v1660 = vunpack.c.l.b16 %v708
        %v1661 = vunpack.c.h.b16 %v708
        %v1662 = vunpack.c.l.b16 %v709
        %v1663 = vunpack.c.h.b16 %v709
        %v1664 = vunpack.c.l.b16 %v710
        %v1665 = vunpack.c.h.b16 %v710
        %v1666 = vunpack.c.l.b16 %v711
        %v1667 = vunpack.c.l.b16 %v712
        %v1668 = vunpack.c.h.b16 %v712
        %v1669 = vunpack.c.l.b16 %v713
        %v1670 = vunpack.c.h.b16 %v713
        %v1671 = vunpack.c.l.b16 %v714
        %v1672 = vunpack.c.h.b16 %v714
        %v1673 = vunpack.c.l.b16 %v715
        %v1674 = vunpack.c.l.b16 %v716
        %v1675 = vunpack.c.h.b16 %v716
        %v1676 = vunpack.c.l.b16 %v717
        %v1677 = vunpack.c.h.b16 %v717
        %v1678 = vunpack.c.l.b16 %v718
        %v1679 = vunpack.c.h.b16 %v718
        %v1680 = vunpack.c.l.b16 %v719
        %v1681 = vunpack.c.l.b16 %v720
        %v1682 = vunpack.c.h.b16 %v720
        %v1683 = vunpack.c.l.b16 %v721
        %v1684 = vunpack.c.h.b16 %v721
        %v1685 = vunpack.c.l.b16 %v722
        %v1686 = vunpack.c.h.b16 %v722
        %v1687 = vunpack.c.l.b16 %v723
        %v1688 = vunpack.c.l.b16 %v724
        %v1689 = vunpack.c.h.b16 %v724
        %v1690 = vunpack.c.l.b16 %v725
        %v1691 = vunpack.c.h.b16 %v725
        %v1692 = vunpack.c.l.b16 %v726
        %v1693 = vunpack.c.h.b16 %v726
        %v1694 = vunpack.c.l.b16 %v727
        %v1695 = vunpack.c.l.b16 %v728
        %v1696 = vunpack.c.h.b16 %v728
        %v1697 = vunpack.c.l.b16 %v729
        %v1698 = vunpack.c.h.b16 %v729
        %v1699 = vunpack.c.l.b16 %v730
        %v1700 = vunpack.c.h.b16 %v730
        %v1701 = vunpack.c.l.b16 %v731
        %v1702 = vunpack.c.l.b16 %v732
        %v1703 = vunpack.c.h.b16 %v732
        %v1704 = vunpack.c.l.b16 %v733
        %v1705 = vunpack.c.h.b16 %v733
        %v1706 = vunpack.c.l.b16 %v734
        %v1707 = vunpack.c.h.b16 %v734
        %v1708 = vunpack.c.l.b16 %v735
        %v1709 = vunpack.c.l.b16 %v736
        %v1710 = vunpack.c.h.b16 %v736
        %v1711 = vunpack.c.l.b16 %v737
        %v1712 = vunpack.c.h.b16 %v737
        %v1713 = vunpack.c.l.b16 %v738
        %v1714 = vunpack.c.h.b16 %v738
        %v1715 = vunpack.c.l.b16 %v739
        %v1716 = vunpack.c.l.b16 %v740
        %v1717 = vunpack.c.h.b16 %v740
        %v1718 = vunpack.c.l.b16 %v741
        %v1719 = vunpack.c.h.b16 %v741
        %v1720 = vunpack.c.l.b16 %v742
        %v1721 = vunpack.c.h.b16 %v742
        %v1722 = vunpack.c.l.b16 %v743
        %v1723 = vunpack.c.l.b16 %v744
        %v1724 = vunpack.c.h.b16 %v744
        %v1725 = vunpack.c.l.b16 %v745
        %v1726 = vunpack.c.h.b16 %v745
        %v1727 = vunpack.c.l.b16 %v746
        %v1728 = vunpack.c.h.b16 %v746
        %v1729 = vunpack.c.l.b16 %v747
        %v1730 = vunpack.c.l.b16 %v748
        %v1731 = vunpack.c.h.b16 %v748
        %v1732 = vunpack.c.l.b16 %v749
        %v1733 = vunpack.c.h.b16 %v749
        %v1734 = vunpack.c.l.b16 %v750
        %v1735 = vunpack.c.h.b16 %v750
        %v1736 = vunpack.c.l.b16 %v751
        %v1737 = vunpack.c.l.b16 %v752
        %v1738 = vunpack.c.h.b16 %v752
        %v1739 = vunpack.c.l.b16 %v753
        %v1740 = vunpack.c.h.b16 %v753
        %v1741 = vunpack.c.l.b16 %v754
        %v1742 = vunpack.c.h.b16 %v754
        %v1743 = vunpack.c.l.b16 %v755
        %v1744 = vunpack.c.l.b16 %v756
        %v1745 = vunpack.c.h.b16 %v756
        %v1746 = vunpack.c.l.b16 %v757
        %v1747 = vunpack.c.h.b16 %v757
        %v1748 = vunpack.c.l.b16 %v758
        %v1749 = vunpack.c.h.b16 %v758
        %v1750 = vunpack.c.l.b16 %v759
        %v1751 = vunpack.c.l.b16 %v760
        %v1752 = vunpack.c.h.b16 %v760
        %v1753 = vunpack.c.l.b16 %v761
        %v1754 = vunpack.c.h.b16 %v761
        %v1755 = vunpack.c.l.b16 %v762
        %v1756 = vunpack.c.h.b16 %v762
        %v1757 = vunpack.c.l.b16 %v763
        %v1758 = vunpack.c.l.b16 %v764
        %v1759 = vunpack.c.h.b16 %v764
        %v1760 = vunpack.c.l.b16 %v765
        %v1761 = vunpack.c.h.b16 %v765
        %v1762 = vunpack.c.l.b16 %v766
        %v1763 = vunpack.c.h.b16 %v766
        %v1764 = vunpack.c.l.b16 %v767
        %v1765 = vunpack.c.l.b16 %v768
        %v1766 = vunpack.c.h.b16 %v768
        %v1767 = vunpack.c.l.b16 %v769
        %v1768 = vunpack.c.h.b16 %v769
        %v1769 = vunpack.c.l.b16 %v770
        %v1770 = vunpack.c.h.b16 %v770
        %v1771 = vunpack.c.l.b16 %v771
        %v1772 = vunpack.c.l.b16 %v772
        %v1773 = vunpack.c.h.b16 %v772
        %v1774 = vunpack.c.l.b16 %v773
        %v1775 = vunpack.c.h.b16 %v773
        %v1776 = vunpack.c.l.b16 %v774
        %v1777 = vunpack.c.h.b16 %v774
        %v1778 = vunpack.c.l.b16 %v775
        %v1779 = vunpack.c.l.b16 %v776
        %v1780 = vunpack.c.h.b16 %v776
        %v1781 = vunpack.c.l.b16 %v777
        %v1782 = vunpack.c.h.b16 %v777
        %v1783 = vunpack.c.l.b16 %v778
        %v1784 = vunpack.c.h.b16 %v778
        %v1785 = vunpack.c.l.b16 %v779
        %v1786 = vunpack.c.l.b16 %v780
        %v1787 = vunpack.c.h.b16 %v780
        %v1788 = vunpack.c.l.b16 %v781
        %v1789 = vunpack.c.h.b16 %v781
        %v1790 = vunpack.c.l.b16 %v782
        %v1791 = vunpack.c.h.b16 %v782
        %v1792 = vunpack.c.l.b16 %v783
        %v1793 = vunpack.c.l.b16 %v784
        %v1794 = vunpack.c.h.b16 %v784
        %v1795 = vunpack.c.l.b16 %v785
        %v1796 = vunpack.c.h.b16 %v785
        %v1797 = vunpack.c.l.b16 %v786
        %v1798 = vunpack.c.h.b16 %v786
        %v1799 = vunpack.c.l.b16 %v787
        %v1800 = vunpack.c.l.b16 %v788
        %v1801 = vunpack.c.h.b16 %v788
        %v1802 = vunpack.c.l.b16 %v789
        %v1803 = vunpack.c.h.b16 %v789
        %v1804 = vunpack.c.l.b16 %v790
        %v1805 = vunpack.c.h.b16 %v790
        %v1806 = vunpack.c.l.b16 %v791
        %v1807 = vunpack.c.l.b16 %v792
        %v1808 = vunpack.c.h.b16 %v792
        %v1809 = vunpack.c.l.b16 %v793
        %v1810 = vunpack.c.h.b16 %v793
        %v1811 = vunpack.c.l.b16 %v794
        %v1812 = vunpack.c.h.b16 %v794
        %v1813 = vunpack.c.l.b16 %v795
        %v1814 = vunpack.c.l.b16 %v796
        %v1815 = vunpack.c.h.b16 %v796
        %v1816 = vunpack.c.l.b16 %v797
        %v1817 = vunpack.c.h.b16 %v797
        %v1818 = vunpack.c.l.b16 %v798
        %v1819 = vunpack.c.h.b16 %v798
        %v1820 = vunpack.c.l.b16 %v799
        %v1821 = vunpack.c.l.b16 %v800
        %v1822 = vunpack.c.h.b16 %v800
        %v1823 = vunpack.c.l.b16 %v801
        %v1824 = vunpack.c.h.b16 %v801
        %v1825 = vunpack.c.l.b16 %v802
        %v1826 = vunpack.c.h.b16 %v802
        %v1827 = vunpack.c.l.b16 %v803
        %v1828 = vunpack.c.l.b16 %v804
        %v1829 = vunpack.c.h.b16 %v804
        %v1830 = vunpack.c.l.b16 %v805
        %v1831 = vunpack.c.h.b16 %v805
        %v1832 = vunpack.c.l.b16 %v806
        %v1833 = vunpack.c.h.b16 %v806
        %v1834 = vunpack.c.l.b16 %v807
        %v1835 = vunpack.c.l.b16 %v808
        %v1836 = vunpack.c.h.b16 %v808
        %v1837 = vunpack.c.l.b16 %v809
        %v1838 = vunpack.c.h.b16 %v809
        %v1839 = vunpack.c.l.b16 %v810
        %v1840 = vunpack.c.h.b16 %v810
        %v1841 = vunpack.c.l.b16 %v811
        %v1842 = vunpack.c.l.b16 %v812
        %v1843 = vunpack.c.h.b16 %v812
        %v1844 = vunpack.c.l.b16 %v813
        %v1845 = vunpack.c.h.b16 %v813
        %v1846 = vunpack.c.l.b16 %v814
        %v1847 = vunpack.c.h.b16 %v814
        %v1848 = vunpack.c.l.b16 %v815
        %v1849 = vunpack.c.l.b16 %v816
        %v1850 = vunpack.c.h.b16 %v816
        %v1851 = vunpack.c.l.b16 %v817
        %v1852 = vunpack.c.h.b16 %v817
        %v1853 = vunpack.c.l.b16 %v818
        %v1854 = vunpack.c.h.b16 %v818
        %v1855 = vunpack.c.l.b16 %v819
        %v1856 = vunpack.c.l.b16 %v820
        %v1857 = vunpack.c.h.b16 %v820
        %v1858 = vunpack.c.l.b16 %v821
        %v1859 = vunpack.c.h.b16 %v821
        %v1860 = vunpack.c.l.b16 %v822
        %v1861 = vunpack.c.h.b16 %v822
        %v1862 = vunpack.c.l.b16 %v823
        %v1863 = vunpack.c.l.b16 %v824
        %v1864 = vunpack.c.h.b16 %v824
        %v1865 = vunpack.c.l.b16 %v825
        %v1866 = vunpack.c.h.b16 %v825
        %v1867 = vunpack.c.l.b16 %v826
        %v1868 = vunpack.c.h.b16 %v826
        %v1869 = vunpack.c.l.b16 %v827
        %v1870 = vunpack.c.l.b16 %v828
        %v1871 = vunpack.c.h.b16 %v828
        %v1872 = vunpack.c.l.b16 %v829
        %v1873 = vunpack.c.h.b16 %v829
        %v1874 = vunpack.c.l.b16 %v830
        %v1875 = vunpack.c.h.b16 %v830
        %v1876 = vunpack.c.l.b16 %v831
        %v1877 = vunpack.c.l.b16 %v832
        %v1878 = vunpack.c.h.b16 %v832
        %v1879 = vunpack.c.l.b16 %v833
        %v1880 = vunpack.c.h.b16 %v833
        %v1881 = vunpack.c.l.b16 %v834
        %v1882 = vunpack.c.h.b16 %v834
        %v1883 = vunpack.c.l.b16 %v835
        %v1884 = vunpack.c.l.b16 %v836
        %v1885 = vunpack.c.h.b16 %v836
        %v1886 = vunpack.c.l.b16 %v837
        %v1887 = vunpack.c.h.b16 %v837
        %v1888 = vunpack.c.l.b16 %v838
        %v1889 = vunpack.c.h.b16 %v838
        %v1890 = vunpack.c.l.b16 %v839
        %v1891 = vunpack.c.l.b16 %v840
        %v1892 = vunpack.c.h.b16 %v840
        %v1893 = vunpack.c.l.b16 %v841
        %v1894 = vunpack.c.h.b16 %v841
        %v1895 = vunpack.c.l.b16 %v842
        %v1896 = vunpack.c.h.b16 %v842
        %v1897 = vunpack.c.l.b16 %v843
        %v1898 = vunpack.c.l.b16 %v844
        %v1899 = vunpack.c.h.b16 %v844
        %v1900 = vunpack.c.l.b16 %v845
        %v1901 = vunpack.c.h.b16 %v845
        %v1902 = vunpack.c.l.b16 %v846
        %v1903 = vunpack.c.h.b16 %v846
        %v1904 = vunpack.c.l.b16 %v847
        %v1905 = vunpack.c.l.b16 %v848
        %v1906 = vunpack.c.h.b16 %v848
        %v1907 = vunpack.c.l.b16 %v849
        %v1908 = vunpack.c.h.b16 %v849
        %v1909 = vunpack.c.l.b16 %v850
        %v1910 = vunpack.c.h.b16 %v850
        %v1911 = vunpack.c.l.b16 %v851
        %v1912 = vunpack.c.l.b16 %v852
        %v1913 = vunpack.c.h.b16 %v852
        %v1914 = vunpack.c.l.b16 %v853
        %v1915 = vunpack.c.h.b16 %v853
        %v1916 = vunpack.c.l.b16 %v854
        %v1917 = vunpack.c.h.b16 %v854
        %v1918 = vunpack.c.l.b16 %v855
        %v1919 = vunpack.c.l.b16 %v856
        %v1920 = vunpack.c.h.b16 %v856
        %v1921 = vunpack.c.l.b16 %v857
        %v1922 = vunpack.c.h.b16 %v857
        %v1923 = vunpack.c.l.b16 %v858
        %v1924 = vunpack.c.h.b16 %v858
        %v1925 = vunpack.c.l.b16 %v859
        %v1926 = vunpack.c.l.b16 %v860
        %v1927 = vunpack.c.h.b16 %v860
        %v1928 = vunpack.c.l.b16 %v861
        %v1929 = vunpack.c.h.b16 %v861
        %v1930 = vunpack.c.l.b16 %v862
        %v1931 = vunpack.c.h.b16 %v862
        %v1932 = vunpack.c.l.b16 %v863
        %v1933 = vunpack.c.l.b16 %v864
        %v1934 = vunpack.c.h.b16 %v864
        %v1935 = vunpack.c.l.b16 %v865
        %v1936 = vunpack.c.h.b16 %v865
        %v1937 = vunpack.c.l.b16 %v866
        %v1938 = vunpack.c.h.b16 %v866
        %v1939 = vunpack.c.l.b16 %v867
        %v1940 = vunpack.c.l.b16 %v868
        %v1941 = vunpack.c.h.b16 %v868
        %v1942 = vunpack.c.l.b16 %v869
        %v1943 = vunpack.c.h.b16 %v869
        %v1944 = vunpack.c.l.b16 %v870
        %v1945 = vunpack.c.h.b16 %v870
        %v1946 = vunpack.c.l.b16 %v871
        %v1947 = vunpack.c.l.b16 %v872
        %v1948 = vunpack.c.h.b16 %v872
        %v1949 = vunpack.c.l.b16 %v873
        %v1950 = vunpack.c.h.b16 %v873
        %v1951 = vunpack.c.l.b16 %v874
        %v1952 = vunpack.c.h.b16 %v874
        %v1953 = vunpack.c.l.b16 %v875
        %v1954 = vunpack.c.l.b16 %v876
        %v1955 = vunpack.c.h.b16 %v876
        %v1956 = vunpack.c.l.b16 %v877
        %v1957 = vunpack.c.h.b16 %v877
        %v1958 = vunpack.c.l.b16 %v878
        %v1959 = vunpack.c.h.b16 %v878
        %v1960 = vunpack.c.l.b16 %v879
        %v1961 = vunpack.c.l.b16 %v880
        %v1962 = vunpack.c.h.b16 %v880
        %v1963 = vunpack.c.l.b16 %v881
        %v1964 = vunpack.c.h.b16 %v881
        %v1965 = vunpack.c.l.b16 %v882
        %v1966 = vunpack.c.h.b16 %v882
        %v1967 = vunpack.c.l.b16 %v883
        %v1968 = vunpack.c.l.b16 %v884
        %v1969 = vunpack.c.h.b16 %v884
        %v1970 = vunpack.c.l.b16 %v885
        %v1971 = vunpack.c.h.b16 %v885
        %v1972 = vunpack.c.l.b16 %v886
        %v1973 = vunpack.c.h.b16 %v886
        %v1974 = vunpack.c.l.b16 %v887
        %v1975 = vunpack.c.l.b16 %v888
        %v1976 = vunpack.c.h.b16 %v888
        %v1977 = vunpack.c.l.b16 %v889
        %v1978 = vunpack.c.h.b16 %v889
        %v1979 = vunpack.c.l.b16 %v890
        %v1980 = vunpack.c.h.b16 %v890
        %v1981 = vunpack.c.l.b16 %v891
        %v1982 = vunpack.c.l.b16 %v892
        %v1983 = vunpack.c.h.b16 %v892
        %v1984 = vunpack.c.l.b16 %v893
        %v1985 = vunpack.c.h.b16 %v893
        %v1986 = vunpack.c.l.b16 %v894
        %v1987 = vunpack.c.h.b16 %v894
        %v1988 = vunpack.c.l.b16 %v895
        %v1989 = vpack.c.b16 %v1324, %v1317
        %v1990 = vpack.c.b16 %v1325, %v1318
        %v1991 = vpack.c.b16 %v1326, %v1319
        %v1992 = vpack.c.b16 %v1327, %v1320
        %v1993 = vpack.c.b16 %v1328, %v1321
        %v1994 = vpack.c.b16 %v1329, %v1322
        %v1995 = vpack.c.b16 %v1330, %v1323
        %v1996 = vpack.c.b16 %v1338, %v1331
        %v1997 = vpack.c.b16 %v1339, %v1332
        %v1998 = vpack.c.b16 %v1340, %v1333
        %v1999 = vpack.c.b16 %v1341, %v1334
        %v2000 = vpack.c.b16 %v1342, %v1335
        %v2001 = vpack.c.b16 %v1343, %v1336
        %v2002 = vpack.c.b16 %v1344, %v1337
        %v2003 = vpack.c.b16 %v1352, %v1345
        %v2004 = vpack.c.b16 %v1353, %v1346
        %v2005 = vpack.c.b16 %v1354, %v1347
        %v2006 = vpack.c.b16 %v1355, %v1348
        %v2007 = vpack.c.b16 %v1356, %v1349
        %v2008 = vpack.c.b16 %v1357, %v1350
        %v2009 = vpack.c.b16 %v1358, %v1351
        %v2010 = vpack.c.b16 %v1366, %v1359
        %v2011 = vpack.c.b16 %v1367, %v1360
        %v2012 = vpack.c.b16 %v1368, %v1361
        %v2013 = vpack.c.b16 %v1369, %v1362
        %v2014 = vpack.c.b16 %v1370, %v1363
        %v2015 = vpack.c.b16 %v1371, %v1364
        %v2016 = vpack.c.b16 %v1372, %v1365
        %v2017 = vpack.c.b16 %v1380, %v1373
        %v2018 = vpack.c.b16 %v1381, %v1374
        %v2019 = vpack.c.b16 %v1382, %v1375
        %v2020 = vpack.c.b16 %v1383, %v1376
        %v2021 = vpack.c.b16 %v1384, %v1377
        %v2022 = vpack.c.b16 %v1385, %v1378
        %v2023 = vpack.c.b16 %v1386, %v1379
        %v2024 = vpack.c.b16 %v1394, %v1387
        %v2025 = vpack.c.b16 %v1395, %v1388
        %v2026 = vpack.c.b16 %v1396, %v1389
        %v2027 = vpack.c.b16 %v1397, %v1390
        %v2028 = vpack.c.b16 %v1398, %v1391
        %v2029 = vpack.c.b16 %v1399, %v1392
        %v2030 = vpack.c.b16 %v1400, %v1393
        %v2031 = vpack.c.b16 %v1408, %v1401
        %v2032 = vpack.c.b16 %v1409, %v1402
        %v2033 = vpack.c.b16 %v1410, %v1403
        %v2034 = vpack.c.b16 %v1411, %v1404
        %v2035 = vpack.c.b16 %v1412, %v1405
        %v2036 = vpack.c.b16 %v1413, %v1406
        %v2037 = vpack.c.b16 %v1414, %v1407
        %v2038 = vpack.c.b16 %v1422, %v1415
        %v2039 = vpack.c.b16 %v1423, %v1416
        %v2040 = vpack.c.b16 %v1424, %v1417
        %v2041 = vpack.c.b16 %v1425, %v1418
        %v2042 = vpack.c.b16 %v1426, %v1419
        %v2043 = vpack.c.b16 %v1427, %v1420
        %v2044 = vpack.c.b16 %v1428, %v1421
        %v2045 = vpack.c.b16 %v1436, %v1429
        %v2046 = vpack.c.b16 %v1437, %v1430
        %v2047 = vpack.c.b16 %v1438, %v1431
        %v2048 = vpack.c.b16 %v1439, %v1432
        %v2049 = vpack.c.b16 %v1440, %v1433
        %v2050 = vpack.c.b16 %v1441, %v1434
        %v2051 = vpack.c.b16 %v1442, %v1435
        %v2052 = vpack.c.b16 %v1450, %v1443
        %v2053 = vpack.c.b16 %v1451, %v1444
        %v2054 = vpack.c.b16 %v1452, %v1445
        %v2055 = vpack.c.b16 %v1453, %v1446
        %v2056 = vpack.c.b16 %v1454, %v1447
        %v2057 = vpack.c.b16 %v1455, %v1448
        %v2058 = vpack.c.b16 %v1456, %v1449
        %v2059 = vpack.c.b16 %v1464, %v1457
        %v2060 = vpack.c.b16 %v1465, %v1458
        %v2061 = vpack.c.b16 %v1466, %v1459
        %v2062 = vpack.c.b16 %v1467, %v1460
        %v2063 = vpack.c.b16 %v1468, %v1461
        %v2064 = vpack.c.b16 %v1469, %v1462
        %v2065 = vpack.c.b16 %v1470, %v1463
        %v2066 = vpack.c.b16 %v1478, %v1471
        %v2067 = vpack.c.b16 %v1479, %v1472
        %v2068 = vpack.c.b16 %v1480, %v1473
        %v2069 = vpack.c.b16 %v1481, %v1474
        %v2070 = vpack.c.b16 %v1482, %v1475
        %v2071 = vpack.c.b16 %v1483, %v1476
        %v2072 = vpack.c.b16 %v1484, %v1477
        %v2073 = vpack.c.b16 %v1492, %v1485
        %v2074 = vpack.c.b16 %v1493, %v1486
        %v2075 = vpack.c.b16 %v1494, %v1487
        %v2076 = vpack.c.b16 %v1495, %v1488
        %v2077 = vpack.c.b16 %v1496, %v1489
        %v2078 = vpack.c.b16 %v1497, %v1490
        %v2079 = vpack.c.b16 %v1498, %v1491
        %v2080 = vpack.c.b16 %v1506, %v1499
        %v2081 = vpack.c.b16 %v1507, %v1500
        %v2082 = vpack.c.b16 %v1508, %v1501
        %v2083 = vpack.c.b16 %v1509, %v1502
        %v2084 = vpack.c.b16 %v1510, %v1503
        %v2085 = vpack.c.b16 %v1511, %v1504
        %v2086 = vpack.c.b16 %v1512, %v1505
        %v2087 = vpack.c.b16 %v1520, %v1513
        %v2088 = vpack.c.b16 %v1521, %v1514
        %v2089 = vpack.c.b16 %v1522, %v1515
        %v2090 = vpack.c.b16 %v1523, %v1516
        %v2091 = vpack.c.b16 %v1524, %v1517
        %v2092 = vpack.c.b16 %v1525, %v1518
        %v2093 = vpack.c.b16 %v1526, %v1519
        %v2094 = vpack.c.b16 %v1534, %v1527
        %v2095 = vpack.c.b16 %v1535, %v1528
        %v2096 = vpack.c.b16 %v1536, %v1529
        %v2097 = vpack.c.b16 %v1537, %v1530
        %v2098 = vpack.c.b16 %v1538, %v1531
        %v2099 = vpack.c.b16 %v1539, %v1532
        %v2100 = vpack.c.b16 %v1540, %v1533
        %v2101 = vpack.c.b16 %v1548, %v1541
        %v2102 = vpack.c.b16 %v1549, %v1542
        %v2103 = vpack.c.b16 %v1550, %v1543
        %v2104 = vpack.c.b16 %v1551, %v1544
        %v2105 = vpack.c.b16 %v1552, %v1545
        %v2106 = vpack.c.b16 %v1553, %v1546
        %v2107 = vpack.c.b16 %v1554, %v1547
        %v2108 = vpack.c.b16 %v1562, %v1555
        %v2109 = vpack.c.b16 %v1563, %v1556
        %v2110 = vpack.c.b16 %v1564, %v1557
        %v2111 = vpack.c.b16 %v1565, %v1558
        %v2112 = vpack.c.b16 %v1566, %v1559
        %v2113 = vpack.c.b16 %v1567, %v1560
        %v2114 = vpack.c.b16 %v1568, %v1561
        %v2115 = vpack.c.b16 %v1576, %v1569
        %v2116 = vpack.c.b16 %v1577, %v1570
        %v2117 = vpack.c.b16 %v1578, %v1571
        %v2118 = vpack.c.b16 %v1579, %v1572
        %v2119 = vpack.c.b16 %v1580, %v1573
        %v2120 = vpack.c.b16 %v1581, %v1574
        %v2121 = vpack.c.b16 %v1582, %v1575
        %v2122 = vpack.c.b16 %v1590, %v1583
        %v2123 = vpack.c.b16 %v1591, %v1584
        %v2124 = vpack.c.b16 %v1592, %v1585
        %v2125 = vpack.c.b16 %v1593, %v1586
        %v2126 = vpack.c.b16 %v1594, %v1587
        %v2127 = vpack.c.b16 %v1595, %v1588
        %v2128 = vpack.c.b16 %v1596, %v1589
        %v2129 = vpack.c.b16 %v1604, %v1597
        %v2130 = vpack.c.b16 %v1605, %v1598
        %v2131 = vpack.c.b16 %v1606, %v1599
        %v2132 = vpack.c.b16 %v1607, %v1600
        %v2133 = vpack.c.b16 %v1608, %v1601
        %v2134 = vpack.c.b16 %v1609, %v1602
        %v2135 = vpack.c.b16 %v1610, %v1603
        %v2136 = vpack.c.b16 %v1618, %v1611
        %v2137 = vpack.c.b16 %v1619, %v1612
        %v2138 = vpack.c.b16 %v1620, %v1613
        %v2139 = vpack.c.b16 %v1621, %v1614
        %v2140 = vpack.c.b16 %v1622, %v1615
        %v2141 = vpack.c.b16 %v1623, %v1616
        %v2142 = vpack.c.b16 %v1624, %v1617
        %v2143 = vpack.c.b16 %v1632, %v1625
        %v2144 = vpack.c.b16 %v1633, %v1626
        %v2145 = vpack.c.b16 %v1634, %v1627
        %v2146 = vpack.c.b16 %v1635, %v1628
        %v2147 = vpack.c.b16 %v1636, %v1629
        %v2148 = vpack.c.b16 %v1637, %v1630
        %v2149 = vpack.c.b16 %v1638, %v1631
        %v2150 = vpack.c.b16 %v1646, %v1639
        %v2151 = vpack.c.b16 %v1647, %v1640
        %v2152 = vpack.c.b16 %v1648, %v1641
        %v2153 = vpack.c.b16 %v1649, %v1642
        %v2154 = vpack.c.b16 %v1650, %v1643
        %v2155 = vpack.c.b16 %v1651, %v1644
        %v2156 = vpack.c.b16 %v1652, %v1645
        %v2157 = vpack.c.b16 %v1660, %v1653
        %v2158 = vpack.c.b16 %v1661, %v1654
        %v2159 = vpack.c.b16 %v1662, %v1655
        %v2160 = vpack.c.b16 %v1663, %v1656
        %v2161 = vpack.c.b16 %v1664, %v1657
        %v2162 = vpack.c.b16 %v1665, %v1658
        %v2163 = vpack.c.b16 %v1666, %v1659
        %v2164 = vpack.c.b16 %v1674, %v1667
        %v2165 = vpack.c.b16 %v1675, %v1668
        %v2166 = vpack.c.b16 %v1676, %v1669
        %v2167 = vpack.c.b16 %v1677, %v1670
        %v2168 = vpack.c.b16 %v1678, %v1671
        %v2169 = vpack.c.b16 %v1679, %v1672
        %v2170 = vpack.c.b16 %v1680, %v1673
        %v2171 = vpack.c.b16 %v1688, %v1681
        %v2172 = vpack.c.b16 %v1689, %v1682
        %v2173 = vpack.c.b16 %v1690, %v1683
        %v2174 = vpack.c.b16 %v1691, %v1684
        %v2175 = vpack.c.b16 %v1692, %v1685
        %v2176 = vpack.c.b16 %v1693, %v1686
        %v2177 = vpack.c.b16 %v1694, %v1687
        %v2178 = vpack.c.b16 %v1702, %v1695
        %v2179 = vpack.c.b16 %v1703, %v1696
        %v2180 = vpack.c.b16 %v1704, %v1697
        %v2181 = vpack.c.b16 %v1705, %v1698
        %v2182 = vpack.c.b16 %v1706, %v1699
        %v2183 = vpack.c.b16 %v1707, %v1700
        %v2184 = vpack.c.b16 %v1708, %v1701
        %v2185 = vpack.c.b16 %v1716, %v1709
        %v2186 = vpack.c.b16 %v1717, %v1710
        %v2187 = vpack.c.b16 %v1718, %v1711
        %v2188 = vpack.c.b16 %v1719, %v1712
        %v2189 = vpack.c.b16 %v1720, %v1713
        %v2190 = vpack.c.b16 %v1721, %v1714
        %v2191 = vpack.c.b16 %v1722, %v1715
        %v2192 = vpack.c.b16 %v1730, %v1723
        %v2193 = vpack.c.b16 %v1731, %v1724
        %v2194 = vpack.c.b16 %v1732, %v1725
        %v2195 = vpack.c.b16 %v1733, %v1726
        %v2196 = vpack.c.b16 %v1734, %v1727
        %v2197 = vpack.c.b16 %v1735, %v1728
        %v2198 = vpack.c.b16 %v1736, %v1729
        %v2199 = vpack.c.b16 %v1744, %v1737
        %v2200 = vpack.c.b16 %v1745, %v1738
        %v2201 = vpack.c.b16 %v1746, %v1739
        %v2202 = vpack.c.b16 %v1747, %v1740
        %v2203 = vpack.c.b16 %v1748, %v1741
        %v2204 = vpack.c.b16 %v1749, %v1742
        %v2205 = vpack.c.b16 %v1750, %v1743
        %v2206 = vpack.c.b16 %v1758, %v1751
        %v2207 = vpack.c.b16 %v1759, %v1752
        %v2208 = vpack.c.b16 %v1760, %v1753
        %v2209 = vpack.c.b16 %v1761, %v1754
        %v2210 = vpack.c.b16 %v1762, %v1755
        %v2211 = vpack.c.b16 %v1763, %v1756
        %v2212 = vpack.c.b16 %v1764, %v1757
        %v2213 = vpack.c.b16 %v1772, %v1765
        %v2214 = vpack.c.b16 %v1773, %v1766
        %v2215 = vpack.c.b16 %v1774, %v1767
        %v2216 = vpack.c.b16 %v1775, %v1768
        %v2217 = vpack.c.b16 %v1776, %v1769
        %v2218 = vpack.c.b16 %v1777, %v1770
        %v2219 = vpack.c.b16 %v1778, %v1771
        %v2220 = vpack.c.b16 %v1786, %v1779
        %v2221 = vpack.c.b16 %v1787, %v1780
        %v2222 = vpack.c.b16 %v1788, %v1781
        %v2223 = vpack.c.b16 %v1789, %v1782
        %v2224 = vpack.c.b16 %v1790, %v1783
        %v2225 = vpack.c.b16 %v1791, %v1784
        %v2226 = vpack.c.b16 %v1792, %v1785
        %v2227 = vpack.c.b16 %v1800, %v1793
        %v2228 = vpack.c.b16 %v1801, %v1794
        %v2229 = vpack.c.b16 %v1802, %v1795
        %v2230 = vpack.c.b16 %v1803, %v1796
        %v2231 = vpack.c.b16 %v1804, %v1797
        %v2232 = vpack.c.b16 %v1805, %v1798
        %v2233 = vpack.c.b16 %v1806, %v1799
        %v2234 = vpack.c.b16 %v1814, %v1807
        %v2235 = vpack.c.b16 %v1815, %v1808
        %v2236 = vpack.c.b16 %v1816, %v1809
        %v2237 = vpack.c.b16 %v1817, %v1810
        %v2238 = vpack.c.b16 %v1818, %v1811
        %v2239 = vpack.c.b16 %v1819, %v1812
        %v2240 = vpack.c.b16 %v1820, %v1813
        %v2241 = vpack.c.b16 %v1828, %v1821
        %v2242 = vpack.c.b16 %v1829, %v1822
        %v2243 = vpack.c.b16 %v1830, %v1823
        %v2244 = vpack.c.b16 %v1831, %v1824
        %v2245 = vpack.c.b16 %v1832, %v1825
        %v2246 = vpack.c.b16 %v1833, %v1826
        %v2247 = vpack.c.b16 %v1834, %v1827
        %v2248 = vpack.c.b16 %v1842, %v1835
        %v2249 = vpack.c.b16 %v1843, %v1836
        %v2250 = vpack.c.b16 %v1844, %v1837
        %v2251 = vpack.c.b16 %v1845, %v1838
        %v2252 = vpack.c.b16 %v1846, %v1839
        %v2253 = vpack.c.b16 %v1847, %v1840
        %v2254 = vpack.c.b16 %v1848, %v1841
        %v2255 = vpack.c.b16 %v1856, %v1849
        %v2256 = vpack.c.b16 %v1857, %v1850
        %v2257 = vpack.c.b16 %v1858, %v1851
        %v2258 = vpack.c.b16 %v1859, %v1852
        %v2259 = vpack.c.b16 %v1860, %v1853
        %v2260 = vpack.c.b16 %v1861, %v1854
        %v2261 = vpack.c.b16 %v1862, %v1855
        %v2262 = vpack.c.b16 %v1870, %v1863
        %v2263 = vpack.c.b16 %v1871, %v1864
        %v2264 = vpack.c.b16 %v1872, %v1865
        %v2265 = vpack.c.b16 %v1873, %v1866
        %v2266 = vpack.c.b16 %v1874, %v1867
        %v2267 = vpack.c.b16 %v1875, %v1868
        %v2268 = vpack.c.b16 %v1876, %v1869
        %v2269 = vpack.c.b16 %v1884, %v1877
        %v2270 = vpack.c.b16 %v1885, %v1878
        %v2271 = vpack.c.b16 %v1886, %v1879
        %v2272 = vpack.c.b16 %v1887, %v1880
        %v2273 = vpack.c.b16 %v1888, %v1881
        %v2274 = vpack.c.b16 %v1889, %v1882
        %v2275 = vpack.c.b16 %v1890, %v1883
        %v2276 = vpack.c.b16 %v1898, %v1891
        %v2277 = vpack.c.b16 %v1899, %v1892
        %v2278 = vpack.c.b16 %v1900, %v1893
        %v2279 = vpack.c.b16 %v1901, %v1894
        %v2280 = vpack.c.b16 %v1902, %v1895
        %v2281 = vpack.c.b16 %v1903, %v1896
        %v2282 = vpack.c.b16 %v1904, %v1897
        %v2283 = vpack.c.b16 %v1912, %v1905
        %v2284 = vpack.c.b16 %v1913, %v1906
        %v2285 = vpack.c.b16 %v1914, %v1907
        %v2286 = vpack.c.b16 %v1915, %v1908
        %v2287 = vpack.c.b16 %v1916, %v1909
        %v2288 = vpack.c.b16 %v1917, %v1910
        %v2289 = vpack.c.b16 %v1918, %v1911
        %v2290 = vpack.c.b16 %v1926, %v1919
        %v2291 = vpack.c.b16 %v1927, %v1920
        %v2292 = vpack.c.b16 %v1928, %v1921
        %v2293 = vpack.c.b16 %v1929, %v1922
        %v2294 = vpack.c.b16 %v1930, %v1923
        %v2295 = vpack.c.b16 %v1931, %v1924
        %v2296 = vpack.c.b16 %v1932, %v1925
        %v2297 = vpack.c.b16 %v1940, %v1933
        %v2298 = vpack.c.b16 %v1941, %v1934
        %v2299 = vpack.c.b16 %v1942, %v1935
        %v2300 = vpack.c.b16 %v1943, %v1936
        %v2301 = vpack.c.b16 %v1944, %v1937
        %v2302 = vpack.c.b16 %v1945, %v1938
        %v2303 = vpack.c.b16 %v1946, %v1939
        %v2304 = vpack.c.b16 %v1954, %v1947
        %v2305 = vpack.c.b16 %v1955, %v1948
        %v2306 = vpack.c.b16 %v1956, %v1949
        %v2307 = vpack.c.b16 %v1957, %v1950
        %v2308 = vpack.c.b16 %v1958, %v1951
        %v2309 = vpack.c.b16 %v1959, %v1952
        %v2310 = vpack.c.b16 %v1960, %v1953
        %v2311 = vpack.c.b16 %v1968, %v1961
        %v2312 = vpack.c.b16 %v1969, %v1962
        %v2313 = vpack.c.b16 %v1970, %v1963
        %v2314 = vpack.c.b16 %v1971, %v1964
        %v2315 = vpack.c.b16 %v1972, %v1965
        %v2316 = vpack.c.b16 %v1973, %v1966
        %v2317 = vpack.c.b16 %v1974, %v1967
        %v2318 = vpack.c.b16 %v1982, %v1975
        %v2319 = vpack.c.b16 %v1983, %v1976
        %v2320 = vpack.c.b16 %v1984, %v1977
        %v2321 = vpack.c.b16 %v1985, %v1978
        %v2322 = vpack.c.b16 %v1986, %v1979
        %v2323 = vpack.c.b16 %v1987, %v1980
        %v2324 = vpack.c.b16 %v1988, %v1981
        %2661 = vmatpush.bf16.msra.mxu0 %v2038
        %2662 = vmatpush.bf16.msra.mxu0 %v2031
        %2663 = vmatpush.bf16.msra.mxu0 %v2024
        %2664 = vmatpush.bf16.msra.mxu0 %v2017
        %2665 = vmatpush.bf16.msra.mxu0 %v2010
        %2666 = vmatpush.bf16.msra.mxu0 %v2003
        %2667 = vmatpush.bf16.msra.mxu0 %v1996
        %2668 = vmatpush.bf16.msra.mxu0 %v1989
        %2669 = vmatmul.bf16.gmra.mxu0 %v921
        %v2670 = vpop.f32.mrf.mxu0
        %v2671 = vadd.f32 %v898, %v2670
        %v2672 = vpop.f32.mrf.mxu0
        %2673 = vdwg.mxu0
        %2674 = vmatpush.bf16.msra.mxu0 %v2094
        %2675 = vmatpush.bf16.msra.mxu0 %v2087
        %2676 = vmatpush.bf16.msra.mxu0 %v2080
        %2677 = vmatpush.bf16.msra.mxu0 %v2073
        %2678 = vmatpush.bf16.msra.mxu0 %v2066
        %2679 = vmatpush.bf16.msra.mxu0 %v2059
        %2680 = vmatpush.bf16.msra.mxu0 %v2052
        %2681 = vmatpush.bf16.msra.mxu0 %v2045
        %2682 = vmatmul.bf16.gmra.mxu0 %v922
        %v2683 = vpop.f32.mrf.mxu0
        %v2684 = vadd.f32 %v2671, %v2683
        %v2685 = vpop.f32.mrf.mxu0
        %2686 = vdwg.mxu0
        %2687 = vmatpush.bf16.msra.mxu0 %v2150
        %2688 = vmatpush.bf16.msra.mxu0 %v2143
        %2689 = vmatpush.bf16.msra.mxu0 %v2136
        %2690 = vmatpush.bf16.msra.mxu0 %v2129
        %2691 = vmatpush.bf16.msra.mxu0 %v2122
        %2692 = vmatpush.bf16.msra.mxu0 %v2115
        %2693 = vmatpush.bf16.msra.mxu0 %v2108
        %2694 = vmatpush.bf16.msra.mxu0 %v2101
        %2695 = vmatmul.bf16.gmra.mxu0 %v923
        %v2696 = vpop.f32.mrf.mxu0
        %v2697 = vadd.f32 %v2684, %v2696
        %v2698 = vpop.f32.mrf.mxu0
        %2699 = vdwg.mxu0
        %2700 = vmatpush.bf16.msra.mxu0 %v2206
        %2701 = vmatpush.bf16.msra.mxu0 %v2199
        %2702 = vmatpush.bf16.msra.mxu0 %v2192
        %2703 = vmatpush.bf16.msra.mxu0 %v2185
        %2704 = vmatpush.bf16.msra.mxu0 %v2178
        %2705 = vmatpush.bf16.msra.mxu0 %v2171
        %2706 = vmatpush.bf16.msra.mxu0 %v2164
        %2707 = vmatpush.bf16.msra.mxu0 %v2157
        %2708 = vmatmul.bf16.gmra.mxu0 %v924
        %v2709 = vpop.f32.mrf.mxu0
        %v2710 = vadd.f32 %v2697, %v2709
        %v2711 = vpop.f32.mrf.mxu0
        %2712 = vdwg.mxu0
        %2713 = vmatpush.bf16.msra.mxu0 %v2262
        %2714 = vmatpush.bf16.msra.mxu0 %v2255
        %2715 = vmatpush.bf16.msra.mxu0 %v2248
        %2716 = vmatpush.bf16.msra.mxu0 %v2241
        %2717 = vmatpush.bf16.msra.mxu0 %v2234
        %2718 = vmatpush.bf16.msra.mxu0 %v2227
        %2719 = vmatpush.bf16.msra.mxu0 %v2220
        %2720 = vmatpush.bf16.msra.mxu0 %v2213
        %2721 = vmatmul.bf16.gmra.mxu0 %v925
        %v2722 = vpop.f32.mrf.mxu0
        %v2723 = vadd.f32 %v2710, %v2722
        %v2724 = vpop.f32.mrf.mxu0
        %2725 = vdwg.mxu0
        %2726 = vmatpush.bf16.msra.mxu0 %v2318
        %2727 = vmatpush.bf16.msra.mxu0 %v2311
        %2728 = vmatpush.bf16.msra.mxu0 %v2304
        %2729 = vmatpush.bf16.msra.mxu0 %v2297
        %2730 = vmatpush.bf16.msra.mxu0 %v2290
        %2731 = vmatpush.bf16.msra.mxu0 %v2283
        %2732 = vmatpush.bf16.msra.mxu0 %v2276
        %2733 = vmatpush.bf16.msra.mxu0 %v2269
        %2734 = vmatmul.bf16.gmra.mxu0 %v926
        %v2735 = vpop.f32.mrf.mxu0
        %v2736 = vadd.f32 %v2723, %v2735
        %v2737 = vpop.f32.mrf.mxu0
        %2738 = vdwg.mxu0
        %2739 = vmatpush.bf16.msra.mxu0 %v2039
        %2740 = vmatpush.bf16.msra.mxu0 %v2032
        %2741 = vmatpush.bf16.msra.mxu0 %v2025
        %2742 = vmatpush.bf16.msra.mxu0 %v2018
        %2743 = vmatpush.bf16.msra.mxu0 %v2011
        %2744 = vmatpush.bf16.msra.mxu0 %v2004
        %2745 = vmatpush.bf16.msra.mxu0 %v1997
        %2746 = vmatpush.bf16.msra.mxu0 %v1990
        %2747 = vmatmul.bf16.gmra.mxu0 %v921
        %v2748 = vpop.f32.mrf.mxu0
        %v2749 = vadd.f32 %v899, %v2748
        %v2750 = vpop.f32.mrf.mxu0
        %2751 = vdwg.mxu0
        %2752 = vmatpush.bf16.msra.mxu0 %v2095
        %2753 = vmatpush.bf16.msra.mxu0 %v2088
        %2754 = vmatpush.bf16.msra.mxu0 %v2081
        %2755 = vmatpush.bf16.msra.mxu0 %v2074
        %2756 = vmatpush.bf16.msra.mxu0 %v2067
        %2757 = vmatpush.bf16.msra.mxu0 %v2060
        %2758 = vmatpush.bf16.msra.mxu0 %v2053
        %2759 = vmatpush.bf16.msra.mxu0 %v2046
        %2760 = vmatmul.bf16.gmra.mxu0 %v922
        %v2761 = vpop.f32.mrf.mxu0
        %v2762 = vadd.f32 %v2749, %v2761
        %v2763 = vpop.f32.mrf.mxu0
        %2764 = vdwg.mxu0
        %2765 = vmatpush.bf16.msra.mxu0 %v2151
        %2766 = vmatpush.bf16.msra.mxu0 %v2144
        %2767 = vmatpush.bf16.msra.mxu0 %v2137
        %2768 = vmatpush.bf16.msra.mxu0 %v2130
        %2769 = vmatpush.bf16.msra.mxu0 %v2123
        %2770 = vmatpush.bf16.msra.mxu0 %v2116
        %2771 = vmatpush.bf16.msra.mxu0 %v2109
        %2772 = vmatpush.bf16.msra.mxu0 %v2102
        %2773 = vmatmul.bf16.gmra.mxu0 %v923
        %v2774 = vpop.f32.mrf.mxu0
        %v2775 = vadd.f32 %v2762, %v2774
        %v2776 = vpop.f32.mrf.mxu0
        %2777 = vdwg.mxu0
        %2778 = vmatpush.bf16.msra.mxu0 %v2207
        %2779 = vmatpush.bf16.msra.mxu0 %v2200
        %2780 = vmatpush.bf16.msra.mxu0 %v2193
        %2781 = vmatpush.bf16.msra.mxu0 %v2186
        %2782 = vmatpush.bf16.msra.mxu0 %v2179
        %2783 = vmatpush.bf16.msra.mxu0 %v2172
        %2784 = vmatpush.bf16.msra.mxu0 %v2165
        %2785 = vmatpush.bf16.msra.mxu0 %v2158
        %2786 = vmatmul.bf16.gmra.mxu0 %v924
        %v2787 = vpop.f32.mrf.mxu0
        %v2788 = vadd.f32 %v2775, %v2787
        %v2789 = vpop.f32.mrf.mxu0
        %2790 = vdwg.mxu0
        %2791 = vmatpush.bf16.msra.mxu0 %v2263
        %2792 = vmatpush.bf16.msra.mxu0 %v2256
        %2793 = vmatpush.bf16.msra.mxu0 %v2249
        %2794 = vmatpush.bf16.msra.mxu0 %v2242
        %2795 = vmatpush.bf16.msra.mxu0 %v2235
        %2796 = vmatpush.bf16.msra.mxu0 %v2228
        %2797 = vmatpush.bf16.msra.mxu0 %v2221
        %2798 = vmatpush.bf16.msra.mxu0 %v2214
        %2799 = vmatmul.bf16.gmra.mxu0 %v925
        %v2800 = vpop.f32.mrf.mxu0
        %v2801 = vadd.f32 %v2788, %v2800
        %v2802 = vpop.f32.mrf.mxu0
        %2803 = vdwg.mxu0
        %2804 = vmatpush.bf16.msra.mxu0 %v2319
        %2805 = vmatpush.bf16.msra.mxu0 %v2312
        %2806 = vmatpush.bf16.msra.mxu0 %v2305
        %2807 = vmatpush.bf16.msra.mxu0 %v2298
        %2808 = vmatpush.bf16.msra.mxu0 %v2291
        %2809 = vmatpush.bf16.msra.mxu0 %v2284
        %2810 = vmatpush.bf16.msra.mxu0 %v2277
        %2811 = vmatpush.bf16.msra.mxu0 %v2270
        %2812 = vmatmul.bf16.gmra.mxu0 %v926
        %v2813 = vpop.f32.mrf.mxu0
        %v2814 = vadd.f32 %v2801, %v2813
        %v2815 = vpop.f32.mrf.mxu0
        %2816 = vdwg.mxu0
        %2817 = vmatpush.bf16.msra.mxu0 %v2040
        %2818 = vmatpush.bf16.msra.mxu0 %v2033
        %2819 = vmatpush.bf16.msra.mxu0 %v2026
        %2820 = vmatpush.bf16.msra.mxu0 %v2019
        %2821 = vmatpush.bf16.msra.mxu0 %v2012
        %2822 = vmatpush.bf16.msra.mxu0 %v2005
        %2823 = vmatpush.bf16.msra.mxu0 %v1998
        %2824 = vmatpush.bf16.msra.mxu0 %v1991
        %2825 = vmatmul.bf16.gmra.mxu0 %v921
        %v2826 = vpop.f32.mrf.mxu0
        %v2827 = vadd.f32 %v900, %v2826
        %v2828 = vpop.f32.mrf.mxu0
        %2829 = vdwg.mxu0
        %2830 = vmatpush.bf16.msra.mxu0 %v2096
        %2831 = vmatpush.bf16.msra.mxu0 %v2089
        %2832 = vmatpush.bf16.msra.mxu0 %v2082
        %2833 = vmatpush.bf16.msra.mxu0 %v2075
        %2834 = vmatpush.bf16.msra.mxu0 %v2068
        %2835 = vmatpush.bf16.msra.mxu0 %v2061
        %2836 = vmatpush.bf16.msra.mxu0 %v2054
        %2837 = vmatpush.bf16.msra.mxu0 %v2047
        %2838 = vmatmul.bf16.gmra.mxu0 %v922
        %v2839 = vpop.f32.mrf.mxu0
        %v2840 = vadd.f32 %v2827, %v2839
        %v2841 = vpop.f32.mrf.mxu0
        %2842 = vdwg.mxu0
        %2843 = vmatpush.bf16.msra.mxu0 %v2152
        %2844 = vmatpush.bf16.msra.mxu0 %v2145
        %2845 = vmatpush.bf16.msra.mxu0 %v2138
        %2846 = vmatpush.bf16.msra.mxu0 %v2131
        %2847 = vmatpush.bf16.msra.mxu0 %v2124
        %2848 = vmatpush.bf16.msra.mxu0 %v2117
        %2849 = vmatpush.bf16.msra.mxu0 %v2110
        %2850 = vmatpush.bf16.msra.mxu0 %v2103
        %2851 = vmatmul.bf16.gmra.mxu0 %v923
        %v2852 = vpop.f32.mrf.mxu0
        %v2853 = vadd.f32 %v2840, %v2852
        %v2854 = vpop.f32.mrf.mxu0
        %2855 = vdwg.mxu0
        %2856 = vmatpush.bf16.msra.mxu0 %v2208
        %2857 = vmatpush.bf16.msra.mxu0 %v2201
        %2858 = vmatpush.bf16.msra.mxu0 %v2194
        %2859 = vmatpush.bf16.msra.mxu0 %v2187
        %2860 = vmatpush.bf16.msra.mxu0 %v2180
        %2861 = vmatpush.bf16.msra.mxu0 %v2173
        %2862 = vmatpush.bf16.msra.mxu0 %v2166
        %2863 = vmatpush.bf16.msra.mxu0 %v2159
        %2864 = vmatmul.bf16.gmra.mxu0 %v924
        %v2865 = vpop.f32.mrf.mxu0
        %v2866 = vadd.f32 %v2853, %v2865
        %v2867 = vpop.f32.mrf.mxu0
        %2868 = vdwg.mxu0
        %2869 = vmatpush.bf16.msra.mxu0 %v2264
        %2870 = vmatpush.bf16.msra.mxu0 %v2257
        %2871 = vmatpush.bf16.msra.mxu0 %v2250
        %2872 = vmatpush.bf16.msra.mxu0 %v2243
        %2873 = vmatpush.bf16.msra.mxu0 %v2236
        %2874 = vmatpush.bf16.msra.mxu0 %v2229
        %2875 = vmatpush.bf16.msra.mxu0 %v2222
        %2876 = vmatpush.bf16.msra.mxu0 %v2215
        %2877 = vmatmul.bf16.gmra.mxu0 %v925
        %v2878 = vpop.f32.mrf.mxu0
        %v2879 = vadd.f32 %v2866, %v2878
        %v2880 = vpop.f32.mrf.mxu0
        %2881 = vdwg.mxu0
        %2882 = vmatpush.bf16.msra.mxu0 %v2320
        %2883 = vmatpush.bf16.msra.mxu0 %v2313
        %2884 = vmatpush.bf16.msra.mxu0 %v2306
        %2885 = vmatpush.bf16.msra.mxu0 %v2299
        %2886 = vmatpush.bf16.msra.mxu0 %v2292
        %2887 = vmatpush.bf16.msra.mxu0 %v2285
        %2888 = vmatpush.bf16.msra.mxu0 %v2278
        %2889 = vmatpush.bf16.msra.mxu0 %v2271
        %2890 = vmatmul.bf16.gmra.mxu0 %v926
        %v2891 = vpop.f32.mrf.mxu0
        %v2892 = vadd.f32 %v2879, %v2891
        %v2893 = vpop.f32.mrf.mxu0
        %2894 = vdwg.mxu0
        %2895 = vmatpush.bf16.msra.mxu0 %v2041
        %2896 = vmatpush.bf16.msra.mxu0 %v2034
        %2897 = vmatpush.bf16.msra.mxu0 %v2027
        %2898 = vmatpush.bf16.msra.mxu0 %v2020
        %2899 = vmatpush.bf16.msra.mxu0 %v2013
        %2900 = vmatpush.bf16.msra.mxu0 %v2006
        %2901 = vmatpush.bf16.msra.mxu0 %v1999
        %2902 = vmatpush.bf16.msra.mxu0 %v1992
        %2903 = vmatmul.bf16.gmra.mxu0 %v921
        %v2904 = vpop.f32.mrf.mxu0
        %v2905 = vadd.f32 %v901, %v2904
        %v2906 = vpop.f32.mrf.mxu0
        %2907 = vdwg.mxu0
        %2908 = vmatpush.bf16.msra.mxu0 %v2097
        %2909 = vmatpush.bf16.msra.mxu0 %v2090
        %2910 = vmatpush.bf16.msra.mxu0 %v2083
        %2911 = vmatpush.bf16.msra.mxu0 %v2076
        %2912 = vmatpush.bf16.msra.mxu0 %v2069
        %2913 = vmatpush.bf16.msra.mxu0 %v2062
        %2914 = vmatpush.bf16.msra.mxu0 %v2055
        %2915 = vmatpush.bf16.msra.mxu0 %v2048
        %2916 = vmatmul.bf16.gmra.mxu0 %v922
        %v2917 = vpop.f32.mrf.mxu0
        %v2918 = vadd.f32 %v2905, %v2917
        %v2919 = vpop.f32.mrf.mxu0
        %2920 = vdwg.mxu0
        %2921 = vmatpush.bf16.msra.mxu0 %v2153
        %2922 = vmatpush.bf16.msra.mxu0 %v2146
        %2923 = vmatpush.bf16.msra.mxu0 %v2139
        %2924 = vmatpush.bf16.msra.mxu0 %v2132
        %2925 = vmatpush.bf16.msra.mxu0 %v2125
        %2926 = vmatpush.bf16.msra.mxu0 %v2118
        %2927 = vmatpush.bf16.msra.mxu0 %v2111
        %2928 = vmatpush.bf16.msra.mxu0 %v2104
        %2929 = vmatmul.bf16.gmra.mxu0 %v923
        %v2930 = vpop.f32.mrf.mxu0
        %v2931 = vadd.f32 %v2918, %v2930
        %v2932 = vpop.f32.mrf.mxu0
        %2933 = vdwg.mxu0
        %2934 = vmatpush.bf16.msra.mxu0 %v2209
        %2935 = vmatpush.bf16.msra.mxu0 %v2202
        %2936 = vmatpush.bf16.msra.mxu0 %v2195
        %2937 = vmatpush.bf16.msra.mxu0 %v2188
        %2938 = vmatpush.bf16.msra.mxu0 %v2181
        %2939 = vmatpush.bf16.msra.mxu0 %v2174
        %2940 = vmatpush.bf16.msra.mxu0 %v2167
        %2941 = vmatpush.bf16.msra.mxu0 %v2160
        %2942 = vmatmul.bf16.gmra.mxu0 %v924
        %v2943 = vpop.f32.mrf.mxu0
        %v2944 = vadd.f32 %v2931, %v2943
        %v2945 = vpop.f32.mrf.mxu0
        %2946 = vdwg.mxu0
        %2947 = vmatpush.bf16.msra.mxu0 %v2265
        %2948 = vmatpush.bf16.msra.mxu0 %v2258
        %2949 = vmatpush.bf16.msra.mxu0 %v2251
        %2950 = vmatpush.bf16.msra.mxu0 %v2244
        %2951 = vmatpush.bf16.msra.mxu0 %v2237
        %2952 = vmatpush.bf16.msra.mxu0 %v2230
        %2953 = vmatpush.bf16.msra.mxu0 %v2223
        %2954 = vmatpush.bf16.msra.mxu0 %v2216
        %2955 = vmatmul.bf16.gmra.mxu0 %v925
        %v2956 = vpop.f32.mrf.mxu0
        %v2957 = vadd.f32 %v2944, %v2956
        %v2958 = vpop.f32.mrf.mxu0
        %2959 = vdwg.mxu0
        %2960 = vmatpush.bf16.msra.mxu0 %v2321
        %2961 = vmatpush.bf16.msra.mxu0 %v2314
        %2962 = vmatpush.bf16.msra.mxu0 %v2307
        %2963 = vmatpush.bf16.msra.mxu0 %v2300
        %2964 = vmatpush.bf16.msra.mxu0 %v2293
        %2965 = vmatpush.bf16.msra.mxu0 %v2286
        %2966 = vmatpush.bf16.msra.mxu0 %v2279
        %2967 = vmatpush.bf16.msra.mxu0 %v2272
        %2968 = vmatmul.bf16.gmra.mxu0 %v926
        %v2969 = vpop.f32.mrf.mxu0
        %v2970 = vadd.f32 %v2957, %v2969
        %v2971 = vpop.f32.mrf.mxu0
        %2972 = vdwg.mxu0
        %2973 = vmatpush.bf16.msra.mxu0 %v2042
        %2974 = vmatpush.bf16.msra.mxu0 %v2035
        %2975 = vmatpush.bf16.msra.mxu0 %v2028
        %2976 = vmatpush.bf16.msra.mxu0 %v2021
        %2977 = vmatpush.bf16.msra.mxu0 %v2014
        %2978 = vmatpush.bf16.msra.mxu0 %v2007
        %2979 = vmatpush.bf16.msra.mxu0 %v2000
        %2980 = vmatpush.bf16.msra.mxu0 %v1993
        %2981 = vmatmul.bf16.gmra.mxu0 %v921
        %v2982 = vpop.f32.mrf.mxu0
        %v2983 = vadd.f32 %v902, %v2982
        %v2984 = vpop.f32.mrf.mxu0
        %2985 = vdwg.mxu0
        %2986 = vmatpush.bf16.msra.mxu0 %v2098
        %2987 = vmatpush.bf16.msra.mxu0 %v2091
        %2988 = vmatpush.bf16.msra.mxu0 %v2084
        %2989 = vmatpush.bf16.msra.mxu0 %v2077
        %2990 = vmatpush.bf16.msra.mxu0 %v2070
        %2991 = vmatpush.bf16.msra.mxu0 %v2063
        %2992 = vmatpush.bf16.msra.mxu0 %v2056
        %2993 = vmatpush.bf16.msra.mxu0 %v2049
        %2994 = vmatmul.bf16.gmra.mxu0 %v922
        %v2995 = vpop.f32.mrf.mxu0
        %v2996 = vadd.f32 %v2983, %v2995
        %v2997 = vpop.f32.mrf.mxu0
        %2998 = vdwg.mxu0
        %2999 = vmatpush.bf16.msra.mxu0 %v2154
        %3000 = vmatpush.bf16.msra.mxu0 %v2147
        %3001 = vmatpush.bf16.msra.mxu0 %v2140
        %3002 = vmatpush.bf16.msra.mxu0 %v2133
        %3003 = vmatpush.bf16.msra.mxu0 %v2126
        %3004 = vmatpush.bf16.msra.mxu0 %v2119
        %3005 = vmatpush.bf16.msra.mxu0 %v2112
        %3006 = vmatpush.bf16.msra.mxu0 %v2105
        %3007 = vmatmul.bf16.gmra.mxu0 %v923
        %v3008 = vpop.f32.mrf.mxu0
        %v3009 = vadd.f32 %v2996, %v3008
        %v3010 = vpop.f32.mrf.mxu0
        %3011 = vdwg.mxu0
        %3012 = vmatpush.bf16.msra.mxu0 %v2210
        %3013 = vmatpush.bf16.msra.mxu0 %v2203
        %3014 = vmatpush.bf16.msra.mxu0 %v2196
        %3015 = vmatpush.bf16.msra.mxu0 %v2189
        %3016 = vmatpush.bf16.msra.mxu0 %v2182
        %3017 = vmatpush.bf16.msra.mxu0 %v2175
        %3018 = vmatpush.bf16.msra.mxu0 %v2168
        %3019 = vmatpush.bf16.msra.mxu0 %v2161
        %3020 = vmatmul.bf16.gmra.mxu0 %v924
        %v3021 = vpop.f32.mrf.mxu0
        %v3022 = vadd.f32 %v3009, %v3021
        %v3023 = vpop.f32.mrf.mxu0
        %3024 = vdwg.mxu0
        %3025 = vmatpush.bf16.msra.mxu0 %v2266
        %3026 = vmatpush.bf16.msra.mxu0 %v2259
        %3027 = vmatpush.bf16.msra.mxu0 %v2252
        %3028 = vmatpush.bf16.msra.mxu0 %v2245
        %3029 = vmatpush.bf16.msra.mxu0 %v2238
        %3030 = vmatpush.bf16.msra.mxu0 %v2231
        %3031 = vmatpush.bf16.msra.mxu0 %v2224
        %3032 = vmatpush.bf16.msra.mxu0 %v2217
        %3033 = vmatmul.bf16.gmra.mxu0 %v925
        %v3034 = vpop.f32.mrf.mxu0
        %v3035 = vadd.f32 %v3022, %v3034
        %v3036 = vpop.f32.mrf.mxu0
        %3037 = vdwg.mxu0
        %3038 = vmatpush.bf16.msra.mxu0 %v2322
        %3039 = vmatpush.bf16.msra.mxu0 %v2315
        %3040 = vmatpush.bf16.msra.mxu0 %v2308
        %3041 = vmatpush.bf16.msra.mxu0 %v2301
        %3042 = vmatpush.bf16.msra.mxu0 %v2294
        %3043 = vmatpush.bf16.msra.mxu0 %v2287
        %3044 = vmatpush.bf16.msra.mxu0 %v2280
        %3045 = vmatpush.bf16.msra.mxu0 %v2273
        %3046 = vmatmul.bf16.gmra.mxu0 %v926
        %v3047 = vpop.f32.mrf.mxu0
        %v3048 = vadd.f32 %v3035, %v3047
        %v3049 = vpop.f32.mrf.mxu0
        %3050 = vdwg.mxu0
        %3051 = vmatpush.bf16.msra.mxu0 %v2043
        %3052 = vmatpush.bf16.msra.mxu0 %v2036
        %3053 = vmatpush.bf16.msra.mxu0 %v2029
        %3054 = vmatpush.bf16.msra.mxu0 %v2022
        %3055 = vmatpush.bf16.msra.mxu0 %v2015
        %3056 = vmatpush.bf16.msra.mxu0 %v2008
        %3057 = vmatpush.bf16.msra.mxu0 %v2001
        %3058 = vmatpush.bf16.msra.mxu0 %v1994
        %3059 = vmatmul.bf16.gmra.mxu0 %v921
        %v3060 = vpop.f32.mrf.mxu0
        %v3061 = vadd.f32 %v903, %v3060
        %v3062 = vpop.f32.mrf.mxu0
        %3063 = vdwg.mxu0
        %3064 = vmatpush.bf16.msra.mxu0 %v2099
        %3065 = vmatpush.bf16.msra.mxu0 %v2092
        %3066 = vmatpush.bf16.msra.mxu0 %v2085
        %3067 = vmatpush.bf16.msra.mxu0 %v2078
        %3068 = vmatpush.bf16.msra.mxu0 %v2071
        %3069 = vmatpush.bf16.msra.mxu0 %v2064
        %3070 = vmatpush.bf16.msra.mxu0 %v2057
        %3071 = vmatpush.bf16.msra.mxu0 %v2050
        %3072 = vmatmul.bf16.gmra.mxu0 %v922
        %v3073 = vpop.f32.mrf.mxu0
        %v3074 = vadd.f32 %v3061, %v3073
        %v3075 = vpop.f32.mrf.mxu0
        %3076 = vdwg.mxu0
        %3077 = vmatpush.bf16.msra.mxu0 %v2155
        %3078 = vmatpush.bf16.msra.mxu0 %v2148
        %3079 = vmatpush.bf16.msra.mxu0 %v2141
        %3080 = vmatpush.bf16.msra.mxu0 %v2134
        %3081 = vmatpush.bf16.msra.mxu0 %v2127
        %3082 = vmatpush.bf16.msra.mxu0 %v2120
        %3083 = vmatpush.bf16.msra.mxu0 %v2113
        %3084 = vmatpush.bf16.msra.mxu0 %v2106
        %3085 = vmatmul.bf16.gmra.mxu0 %v923
        %v3086 = vpop.f32.mrf.mxu0
        %v3087 = vadd.f32 %v3074, %v3086
        %v3088 = vpop.f32.mrf.mxu0
        %3089 = vdwg.mxu0
        %3090 = vmatpush.bf16.msra.mxu0 %v2211
        %3091 = vmatpush.bf16.msra.mxu0 %v2204
        %3092 = vmatpush.bf16.msra.mxu0 %v2197
        %3093 = vmatpush.bf16.msra.mxu0 %v2190
        %3094 = vmatpush.bf16.msra.mxu0 %v2183
        %3095 = vmatpush.bf16.msra.mxu0 %v2176
        %3096 = vmatpush.bf16.msra.mxu0 %v2169
        %3097 = vmatpush.bf16.msra.mxu0 %v2162
        %3098 = vmatmul.bf16.gmra.mxu0 %v924
        %v3099 = vpop.f32.mrf.mxu0
        %v3100 = vadd.f32 %v3087, %v3099
        %v3101 = vpop.f32.mrf.mxu0
        %3102 = vdwg.mxu0
        %3103 = vmatpush.bf16.msra.mxu0 %v2267
        %3104 = vmatpush.bf16.msra.mxu0 %v2260
        %3105 = vmatpush.bf16.msra.mxu0 %v2253
        %3106 = vmatpush.bf16.msra.mxu0 %v2246
        %3107 = vmatpush.bf16.msra.mxu0 %v2239
        %3108 = vmatpush.bf16.msra.mxu0 %v2232
        %3109 = vmatpush.bf16.msra.mxu0 %v2225
        %3110 = vmatpush.bf16.msra.mxu0 %v2218
        %3111 = vmatmul.bf16.gmra.mxu0 %v925
        %v3112 = vpop.f32.mrf.mxu0
        %v3113 = vadd.f32 %v3100, %v3112
        %v3114 = vpop.f32.mrf.mxu0
        %3115 = vdwg.mxu0
        %3116 = vmatpush.bf16.msra.mxu0 %v2323
        %3117 = vmatpush.bf16.msra.mxu0 %v2316
        %3118 = vmatpush.bf16.msra.mxu0 %v2309
        %3119 = vmatpush.bf16.msra.mxu0 %v2302
        %3120 = vmatpush.bf16.msra.mxu0 %v2295
        %3121 = vmatpush.bf16.msra.mxu0 %v2288
        %3122 = vmatpush.bf16.msra.mxu0 %v2281
        %3123 = vmatpush.bf16.msra.mxu0 %v2274
        %3124 = vmatmul.bf16.gmra.mxu0 %v926
        %v3125 = vpop.f32.mrf.mxu0
        %v3126 = vadd.f32 %v3113, %v3125
        %v3127 = vpop.f32.mrf.mxu0
        %3128 = vdwg.mxu0
        %3129 = vmatpush.bf16.msra.mxu0 %v2044
        %3130 = vmatpush.bf16.msra.mxu0 %v2037
        %3131 = vmatpush.bf16.msra.mxu0 %v2030
        %3132 = vmatpush.bf16.msra.mxu0 %v2023
        %3133 = vmatpush.bf16.msra.mxu0 %v2016
        %3134 = vmatpush.bf16.msra.mxu0 %v2009
        %3135 = vmatpush.bf16.msra.mxu0 %v2002
        %3136 = vmatpush.bf16.msra.mxu0 %v1995
        %3137 = vmatmul.bf16.gmra.mxu0 %v921
        %v3138 = vpop.f32.mrf.mxu0
        %v3139 = vadd.f32 %v904, %v3138
        %v3140 = vpop.f32.mrf.mxu0
        %3141 = vdwg.mxu0
        %3142 = vmatpush.bf16.msra.mxu0 %v2100
        %3143 = vmatpush.bf16.msra.mxu0 %v2093
        %3144 = vmatpush.bf16.msra.mxu0 %v2086
        %3145 = vmatpush.bf16.msra.mxu0 %v2079
        %3146 = vmatpush.bf16.msra.mxu0 %v2072
        %3147 = vmatpush.bf16.msra.mxu0 %v2065
        %3148 = vmatpush.bf16.msra.mxu0 %v2058
        %3149 = vmatpush.bf16.msra.mxu0 %v2051
        %3150 = vmatmul.bf16.gmra.mxu0 %v922
        %v3151 = vpop.f32.mrf.mxu0
        %v3152 = vadd.f32 %v3139, %v3151
        %v3153 = vpop.f32.mrf.mxu0
        %3154 = vdwg.mxu0
        %3155 = vmatpush.bf16.msra.mxu0 %v2156
        %3156 = vmatpush.bf16.msra.mxu0 %v2149
        %3157 = vmatpush.bf16.msra.mxu0 %v2142
        %3158 = vmatpush.bf16.msra.mxu0 %v2135
        %3159 = vmatpush.bf16.msra.mxu0 %v2128
        %3160 = vmatpush.bf16.msra.mxu0 %v2121
        %3161 = vmatpush.bf16.msra.mxu0 %v2114
        %3162 = vmatpush.bf16.msra.mxu0 %v2107
        %3163 = vmatmul.bf16.gmra.mxu0 %v923
        %v3164 = vpop.f32.mrf.mxu0
        %v3165 = vadd.f32 %v3152, %v3164
        %v3166 = vpop.f32.mrf.mxu0
        %3167 = vdwg.mxu0
        %3168 = vmatpush.bf16.msra.mxu0 %v2212
        %3169 = vmatpush.bf16.msra.mxu0 %v2205
        %3170 = vmatpush.bf16.msra.mxu0 %v2198
        %3171 = vmatpush.bf16.msra.mxu0 %v2191
        %3172 = vmatpush.bf16.msra.mxu0 %v2184
        %3173 = vmatpush.bf16.msra.mxu0 %v2177
        %3174 = vmatpush.bf16.msra.mxu0 %v2170
        %3175 = vmatpush.bf16.msra.mxu0 %v2163
        %3176 = vmatmul.bf16.gmra.mxu0 %v924
        %v3177 = vpop.f32.mrf.mxu0
        %v3178 = vadd.f32 %v3165, %v3177
        %v3179 = vpop.f32.mrf.mxu0
        %3180 = vdwg.mxu0
        %3181 = vmatpush.bf16.msra.mxu0 %v2268
        %3182 = vmatpush.bf16.msra.mxu0 %v2261
        %3183 = vmatpush.bf16.msra.mxu0 %v2254
        %3184 = vmatpush.bf16.msra.mxu0 %v2247
        %3185 = vmatpush.bf16.msra.mxu0 %v2240
        %3186 = vmatpush.bf16.msra.mxu0 %v2233
        %3187 = vmatpush.bf16.msra.mxu0 %v2226
        %3188 = vmatpush.bf16.msra.mxu0 %v2219
        %3189 = vmatmul.bf16.gmra.mxu0 %v925
        %v3190 = vpop.f32.mrf.mxu0
        %v3191 = vadd.f32 %v3178, %v3190
        %v3192 = vpop.f32.mrf.mxu0
        %3193 = vdwg.mxu0
        %3194 = vmatpush.bf16.msra.mxu0 %v2324
        %3195 = vmatpush.bf16.msra.mxu0 %v2317
        %3196 = vmatpush.bf16.msra.mxu0 %v2310
        %3197 = vmatpush.bf16.msra.mxu0 %v2303
        %3198 = vmatpush.bf16.msra.mxu0 %v2296
        %3199 = vmatpush.bf16.msra.mxu0 %v2289
        %3200 = vmatpush.bf16.msra.mxu0 %v2282
        %3201 = vmatpush.bf16.msra.mxu0 %v2275
        %3202 = vmatmul.bf16.gmra.mxu0 %v926
        %v3203 = vpop.f32.mrf.mxu0
        %v3204 = vadd.f32 %v3191, %v3203
        %v3205 = vpop.f32.mrf.mxu0
        %3206 = vdwg.mxu0
        %v3207 = vld [vmem:[#allocation2] sm:$0xff]
        %v3208 = vld [vmem:[#allocation2 + $0x8] sm:$0xff]
        %v3209 = vld [vmem:[#allocation2 + $0x10] sm:$0xff]
        %v3210 = vld [vmem:[#allocation2 + $0x18] sm:$0xff]
        %v3211 = vld [vmem:[#allocation2 + $0x20] sm:$0xff]
        %v3212 = vld [vmem:[#allocation2 + $0x28] sm:$0xff]
        %v3213 = vld [vmem:[#allocation2 + $0x30] sm:$0xff]
        %v3214 = vld [vmem:[#allocation2 + $0x38] sm:$0xff]
        %v3215 = vpack.c.bf16 %v2736, %v2736
        %v3216 = vpack.c.bf16 %v2814, %v2814
        %v3217 = vpack.c.bf16 %v2892, %v2892
        %v3218 = vpack.c.bf16 %v2970, %v2970
        %v3219 = vpack.c.bf16 %v3048, %v3048
        %v3220 = vpack.c.bf16 %v3126, %v3126
        %v3221 = vpack.c.bf16 %v3204, %v3204
        %v3222 = vld [vmem:[%s440] sm:$0xff]
        %v3223 = vld [vmem:[%s440 + $0x8] sm:$0xff]
        %v3224 = vld [vmem:[%s440 + $0x10] sm:$0xff]
        %v3225 = vld [vmem:[%s440 + $0x18] sm:$0xff]
        %v3226 = vld [vmem:[%s440 + $0x20] sm:$0xff]
        %v3227 = vld [vmem:[%s440 + $0x28] sm:$0xff]
        %v3228 = vld [vmem:[%s440 + $0x30] sm:$0xff]
        %v3229 = vld [vmem:[%s440 + $0x38] sm:$0xff]
        %v3230 = vld [vmem:[%s440 + $0x40] sm:$0xff]
        %v3231 = vld [vmem:[%s440 + $0x48] sm:$0xff]
        %v3232 = vld [vmem:[%s440 + $0x50] sm:$0xff]
        %v3233 = vld [vmem:[%s440 + $0x58] sm:$0xff]
        %v3234 = vld [vmem:[%s440 + $0x60] sm:$0xff]
        %v3235 = vld [vmem:[%s440 + $0x68] sm:$0xff]
        %v3236 = vld [vmem:[%s440 + $0x70] sm:$0xff]
        %v3237 = vld [vmem:[%s440 + $0x78] sm:$0xff]
        %v3238 = vld [vmem:[%s440 + $0x80] sm:$0xff]
        %v3239 = vld [vmem:[%s440 + $0x88] sm:$0xff]
        %v3240 = vld [vmem:[%s440 + $0x90] sm:$0xff]
        %v3241 = vld [vmem:[%s440 + $0x98] sm:$0xff]
        %v3242 = vld [vmem:[%s440 + $0xa0] sm:$0xff]
        %v3243 = vld [vmem:[%s440 + $0xa8] sm:$0xff]
        %v3244 = vld [vmem:[%s440 + $0xb0] sm:$0xff]
        %v3245 = vld [vmem:[%s440 + $0xb8] sm:$0xff]
        %v3246 = vld [vmem:[%s440 + $0xc0] sm:$0xff]
        %v3247 = vld [vmem:[%s440 + $0xc8] sm:$0xff]
        %v3248 = vld [vmem:[%s440 + $0xd0] sm:$0xff]
        %v3249 = vld [vmem:[%s440 + $0xd8] sm:$0xff]
        %v3250 = vld [vmem:[%s440 + $0xe0] sm:$0xff]
        %v3251 = vld [vmem:[%s440 + $0xe8] sm:$0xff]
        %v3252 = vld [vmem:[%s440 + $0xf0] sm:$0xff]
        %v3253 = vld [vmem:[%s440 + $0xf8] sm:$0xff]
        %v3254 = vld [vmem:[%s440 + $0x100] sm:$0xff]
        %v3255 = vld [vmem:[%s440 + $0x108] sm:$0xff]
        %v3256 = vld [vmem:[%s440 + $0x110] sm:$0xff]
        %v3257 = vld [vmem:[%s440 + $0x118] sm:$0xff]
        %v3258 = vld [vmem:[%s440 + $0x120] sm:$0xff]
        %v3259 = vld [vmem:[%s440 + $0x128] sm:$0xff]
        %v3260 = vld [vmem:[%s440 + $0x130] sm:$0xff]
        %v3261 = vld [vmem:[%s440 + $0x138] sm:$0xff]
        %v3262 = vld [vmem:[%s440 + $0x140] sm:$0xff]
        %v3263 = vld [vmem:[%s440 + $0x148] sm:$0xff]
        %v3264 = vld [vmem:[%s440 + $0x150] sm:$0xff]
        %v3265 = vld [vmem:[%s440 + $0x158] sm:$0xff]
        %v3266 = vld [vmem:[%s440 + $0x160] sm:$0xff]
        %v3267 = vld [vmem:[%s440 + $0x168] sm:$0xff]
        %v3268 = vld [vmem:[%s440 + $0x170] sm:$0xff]
        %v3269 = vld [vmem:[%s440 + $0x178] sm:$0xff]
        %v3270 = vld [vmem:[%s440 + $0x180] sm:$0xff]
        %v3271 = vld [vmem:[%s440 + $0x188] sm:$0xff]
        %v3272 = vld [vmem:[%s440 + $0x190] sm:$0xff]
        %v3273 = vld [vmem:[%s440 + $0x198] sm:$0xff]
        %v3274 = vld [vmem:[%s440 + $0x1a0] sm:$0xff]
        %v3275 = vld [vmem:[%s440 + $0x1a8] sm:$0xff]
        %v3276 = vld [vmem:[%s440 + $0x1b0] sm:$0xff]
        %v3277 = vld [vmem:[%s440 + $0x1b8] sm:$0xff]
        %v3278 = vld [vmem:[%s440 + $0x1c0] sm:$0xff]
        %v3279 = vld [vmem:[%s440 + $0x1c8] sm:$0xff]
        %v3280 = vld [vmem:[%s440 + $0x1d0] sm:$0xff]
        %v3281 = vld [vmem:[%s440 + $0x1d8] sm:$0xff]
        %v3282 = vld [vmem:[%s440 + $0x1e0] sm:$0xff]
        %v3283 = vld [vmem:[%s440 + $0x1e8] sm:$0xff]
        %v3284 = vld [vmem:[%s440 + $0x1f0] sm:$0xff]
        %v3285 = vld [vmem:[%s440 + $0x1f8] sm:$0xff]
        %v3286 = vld [vmem:[%s440 + $0x200] sm:$0xff]
        %v3287 = vld [vmem:[%s440 + $0x208] sm:$0xff]
        %v3288 = vld [vmem:[%s440 + $0x210] sm:$0xff]
        %v3289 = vld [vmem:[%s440 + $0x218] sm:$0xff]
        %v3290 = vld [vmem:[%s440 + $0x220] sm:$0xff]
        %v3291 = vld [vmem:[%s440 + $0x228] sm:$0xff]
        %v3292 = vld [vmem:[%s440 + $0x230] sm:$0xff]
        %v3293 = vld [vmem:[%s440 + $0x238] sm:$0xff]
        %v3294 = vld [vmem:[%s440 + $0x240] sm:$0xff]
        %v3295 = vld [vmem:[%s440 + $0x248] sm:$0xff]
        %v3296 = vld [vmem:[%s440 + $0x250] sm:$0xff]
        %v3297 = vld [vmem:[%s440 + $0x258] sm:$0xff]
        %v3298 = vld [vmem:[%s440 + $0x260] sm:$0xff]
        %v3299 = vld [vmem:[%s440 + $0x268] sm:$0xff]
        %v3300 = vld [vmem:[%s440 + $0x270] sm:$0xff]
        %v3301 = vld [vmem:[%s440 + $0x278] sm:$0xff]
        %v3302 = vld [vmem:[%s440 + $0x280] sm:$0xff]
        %v3303 = vld [vmem:[%s440 + $0x288] sm:$0xff]
        %v3304 = vld [vmem:[%s440 + $0x290] sm:$0xff]
        %v3305 = vld [vmem:[%s440 + $0x298] sm:$0xff]
        %v3306 = vld [vmem:[%s440 + $0x2a0] sm:$0xff]
        %v3307 = vld [vmem:[%s440 + $0x2a8] sm:$0xff]
        %v3308 = vld [vmem:[%s440 + $0x2b0] sm:$0xff]
        %v3309 = vld [vmem:[%s440 + $0x2b8] sm:$0xff]
        %v3310 = vld [vmem:[%s440 + $0x2c0] sm:$0xff]
        %v3311 = vld [vmem:[%s440 + $0x2c8] sm:$0xff]
        %v3312 = vld [vmem:[%s440 + $0x2d0] sm:$0xff]
        %v3313 = vld [vmem:[%s440 + $0x2d8] sm:$0xff]
        %v3314 = vld [vmem:[%s440 + $0x2e0] sm:$0xff]
        %v3315 = vld [vmem:[%s440 + $0x2e8] sm:$0xff]
        %v3316 = vld [vmem:[%s440 + $0x2f0] sm:$0xff]
        %v3317 = vld [vmem:[%s440 + $0x2f8] sm:$0xff]
        %v3318 = vld [vmem:[%s440 + $0x300] sm:$0xff]
        %v3319 = vld [vmem:[%s440 + $0x308] sm:$0xff]
        %v3320 = vld [vmem:[%s440 + $0x310] sm:$0xff]
        %v3321 = vld [vmem:[%s440 + $0x318] sm:$0xff]
        %v3322 = vld [vmem:[%s440 + $0x320] sm:$0xff]
        %v3323 = vld [vmem:[%s440 + $0x328] sm:$0xff]
        %v3324 = vld [vmem:[%s440 + $0x330] sm:$0xff]
        %v3325 = vld [vmem:[%s440 + $0x338] sm:$0xff]
        %v3326 = vld [vmem:[%s440 + $0x340] sm:$0xff]
        %v3327 = vld [vmem:[%s440 + $0x348] sm:$0xff]
        %v3328 = vld [vmem:[%s440 + $0x350] sm:$0xff]
        %v3329 = vld [vmem:[%s440 + $0x358] sm:$0xff]
        %v3330 = vld [vmem:[%s440 + $0x360] sm:$0xff]
        %v3331 = vld [vmem:[%s440 + $0x368] sm:$0xff]
        %v3332 = vld [vmem:[%s440 + $0x370] sm:$0xff]
        %v3333 = vld [vmem:[%s440 + $0x378] sm:$0xff]
        %v3334 = vld [vmem:[%s440 + $0x380] sm:$0xff]
        %v3335 = vld [vmem:[%s440 + $0x388] sm:$0xff]
        %v3336 = vld [vmem:[%s440 + $0x390] sm:$0xff]
        %v3337 = vld [vmem:[%s440 + $0x398] sm:$0xff]
        %v3338 = vld [vmem:[%s440 + $0x3a0] sm:$0xff]
        %v3339 = vld [vmem:[%s440 + $0x3a8] sm:$0xff]
        %v3340 = vld [vmem:[%s440 + $0x3b0] sm:$0xff]
        %v3341 = vld [vmem:[%s440 + $0x3b8] sm:$0xff]
        %v3342 = vld [vmem:[%s440 + $0x3c0] sm:$0xff]
        %v3343 = vld [vmem:[%s440 + $0x3c8] sm:$0xff]
        %v3344 = vld [vmem:[%s440 + $0x3d0] sm:$0xff]
        %v3345 = vld [vmem:[%s440 + $0x3d8] sm:$0xff]
        %v3346 = vld [vmem:[%s440 + $0x3e0] sm:$0xff]
        %v3347 = vld [vmem:[%s440 + $0x3e8] sm:$0xff]
        %v3348 = vld [vmem:[%s440 + $0x3f0] sm:$0xff]
        %v3349 = vld [vmem:[%s440 + $0x3f8] sm:$0xff]
        %v3350 = vld [vmem:[%s440 + $0x400] sm:$0xff]
        %v3351 = vld [vmem:[%s440 + $0x408] sm:$0xff]
        %v3352 = vld [vmem:[%s440 + $0x410] sm:$0xff]
        %v3353 = vld [vmem:[%s440 + $0x418] sm:$0xff]
        %v3354 = vld [vmem:[%s440 + $0x420] sm:$0xff]
        %v3355 = vld [vmem:[%s440 + $0x428] sm:$0xff]
        %v3356 = vld [vmem:[%s440 + $0x430] sm:$0xff]
        %v3357 = vld [vmem:[%s440 + $0x438] sm:$0xff]
        %v3358 = vld [vmem:[%s440 + $0x440] sm:$0xff]
        %v3359 = vld [vmem:[%s440 + $0x448] sm:$0xff]
        %v3360 = vld [vmem:[%s440 + $0x450] sm:$0xff]
        %v3361 = vld [vmem:[%s440 + $0x458] sm:$0xff]
        %v3362 = vld [vmem:[%s440 + $0x460] sm:$0xff]
        %v3363 = vld [vmem:[%s440 + $0x468] sm:$0xff]
        %v3364 = vld [vmem:[%s440 + $0x470] sm:$0xff]
        %v3365 = vld [vmem:[%s440 + $0x478] sm:$0xff]
        %v3366 = vld [vmem:[%s440 + $0x480] sm:$0xff]
        %v3367 = vld [vmem:[%s440 + $0x488] sm:$0xff]
        %v3368 = vld [vmem:[%s440 + $0x490] sm:$0xff]
        %v3369 = vld [vmem:[%s440 + $0x498] sm:$0xff]
        %v3370 = vld [vmem:[%s440 + $0x4a0] sm:$0xff]
        %v3371 = vld [vmem:[%s440 + $0x4a8] sm:$0xff]
        %v3372 = vld [vmem:[%s440 + $0x4b0] sm:$0xff]
        %v3373 = vld [vmem:[%s440 + $0x4b8] sm:$0xff]
        %v3374 = vld [vmem:[%s440 + $0x4c0] sm:$0xff]
        %v3375 = vld [vmem:[%s440 + $0x4c8] sm:$0xff]
        %v3376 = vld [vmem:[%s440 + $0x4d0] sm:$0xff]
        %v3377 = vld [vmem:[%s440 + $0x4d8] sm:$0xff]
        %v3378 = vld [vmem:[%s440 + $0x4e0] sm:$0xff]
        %v3379 = vld [vmem:[%s440 + $0x4e8] sm:$0xff]
        %v3380 = vld [vmem:[%s440 + $0x4f0] sm:$0xff]
        %v3381 = vld [vmem:[%s440 + $0x4f8] sm:$0xff]
        %v3382 = vld [vmem:[%s440 + $0x500] sm:$0xff]
        %v3383 = vld [vmem:[%s440 + $0x508] sm:$0xff]
        %v3384 = vld [vmem:[%s440 + $0x510] sm:$0xff]
        %v3385 = vld [vmem:[%s440 + $0x518] sm:$0xff]
        %v3386 = vld [vmem:[%s440 + $0x520] sm:$0xff]
        %v3387 = vld [vmem:[%s440 + $0x528] sm:$0xff]
        %v3388 = vld [vmem:[%s440 + $0x530] sm:$0xff]
        %v3389 = vld [vmem:[%s440 + $0x538] sm:$0xff]
        %v3390 = vld [vmem:[%s440 + $0x540] sm:$0xff]
        %v3391 = vld [vmem:[%s440 + $0x548] sm:$0xff]
        %v3392 = vld [vmem:[%s440 + $0x550] sm:$0xff]
        %v3393 = vld [vmem:[%s440 + $0x558] sm:$0xff]
        %v3394 = vld [vmem:[%s440 + $0x560] sm:$0xff]
        %v3395 = vld [vmem:[%s440 + $0x568] sm:$0xff]
        %v3396 = vld [vmem:[%s440 + $0x570] sm:$0xff]
        %v3397 = vld [vmem:[%s440 + $0x578] sm:$0xff]
        %v3398 = vld [vmem:[%s440 + $0x580] sm:$0xff]
        %v3399 = vld [vmem:[%s440 + $0x588] sm:$0xff]
        %v3400 = vld [vmem:[%s440 + $0x590] sm:$0xff]
        %v3401 = vld [vmem:[%s440 + $0x598] sm:$0xff]
        %v3402 = vld [vmem:[%s440 + $0x5a0] sm:$0xff]
        %v3403 = vld [vmem:[%s440 + $0x5a8] sm:$0xff]
        %v3404 = vld [vmem:[%s440 + $0x5b0] sm:$0xff]
        %v3405 = vld [vmem:[%s440 + $0x5b8] sm:$0xff]
        %v3406 = vld [vmem:[%s440 + $0x5c0] sm:$0xff]
        %v3407 = vld [vmem:[%s440 + $0x5c8] sm:$0xff]
        %v3408 = vld [vmem:[%s440 + $0x5d0] sm:$0xff]
        %v3409 = vld [vmem:[%s440 + $0x5d8] sm:$0xff]
        %v3410 = vld [vmem:[%s440 + $0x5e0] sm:$0xff]
        %v3411 = vld [vmem:[%s440 + $0x5e8] sm:$0xff]
        %v3412 = vld [vmem:[%s440 + $0x5f0] sm:$0xff]
        %v3413 = vld [vmem:[%s440 + $0x5f8] sm:$0xff]
        %v3414 = vld [vmem:[%s440 + $0x600] sm:$0xff]
        %v3415 = vld [vmem:[%s440 + $0x608] sm:$0xff]
        %v3416 = vld [vmem:[%s440 + $0x610] sm:$0xff]
        %v3417 = vld [vmem:[%s440 + $0x618] sm:$0xff]
        %v3418 = vld [vmem:[%s440 + $0x620] sm:$0xff]
        %v3419 = vld [vmem:[%s440 + $0x628] sm:$0xff]
        %v3420 = vld [vmem:[%s440 + $0x630] sm:$0xff]
        %v3421 = vld [vmem:[%s440 + $0x638] sm:$0xff]
        %v3422 = vld [vmem:[%s440 + $0x640] sm:$0xff]
        %v3423 = vld [vmem:[%s440 + $0x648] sm:$0xff]
        %v3424 = vld [vmem:[%s440 + $0x650] sm:$0xff]
        %v3425 = vld [vmem:[%s440 + $0x658] sm:$0xff]
        %v3426 = vld [vmem:[%s440 + $0x660] sm:$0xff]
        %v3427 = vld [vmem:[%s440 + $0x668] sm:$0xff]
        %v3428 = vld [vmem:[%s440 + $0x670] sm:$0xff]
        %v3429 = vld [vmem:[%s440 + $0x678] sm:$0xff]
        %v3430 = vld [vmem:[%s440 + $0x680] sm:$0xff]
        %v3431 = vld [vmem:[%s440 + $0x688] sm:$0xff]
        %v3432 = vld [vmem:[%s440 + $0x690] sm:$0xff]
        %v3433 = vld [vmem:[%s440 + $0x698] sm:$0xff]
        %v3434 = vld [vmem:[%s440 + $0x6a0] sm:$0xff]
        %v3435 = vld [vmem:[%s440 + $0x6a8] sm:$0xff]
        %v3436 = vld [vmem:[%s440 + $0x6b0] sm:$0xff]
        %v3437 = vld [vmem:[%s440 + $0x6b8] sm:$0xff]
        %v3438 = vld [vmem:[%s440 + $0x6c0] sm:$0xff]
        %v3439 = vld [vmem:[%s440 + $0x6c8] sm:$0xff]
        %v3440 = vld [vmem:[%s440 + $0x6d0] sm:$0xff]
        %v3441 = vld [vmem:[%s440 + $0x6d8] sm:$0xff]
        %v3442 = vld [vmem:[%s440 + $0x6e0] sm:$0xff]
        %v3443 = vld [vmem:[%s440 + $0x6e8] sm:$0xff]
        %v3444 = vld [vmem:[%s440 + $0x6f0] sm:$0xff]
        %v3445 = vld [vmem:[%s440 + $0x6f8] sm:$0xff]
        %v3446 = vld [vmem:[%s440 + $0x700] sm:$0xff]
        %v3447 = vld [vmem:[%s440 + $0x708] sm:$0xff]
        %v3448 = vld [vmem:[%s440 + $0x710] sm:$0xff]
        %v3449 = vld [vmem:[%s440 + $0x718] sm:$0xff]
        %v3450 = vld [vmem:[%s440 + $0x720] sm:$0xff]
        %v3451 = vld [vmem:[%s440 + $0x728] sm:$0xff]
        %v3452 = vld [vmem:[%s440 + $0x730] sm:$0xff]
        %v3453 = vld [vmem:[%s440 + $0x738] sm:$0xff]
        %v3454 = vld [vmem:[%s440 + $0x740] sm:$0xff]
        %v3455 = vld [vmem:[%s440 + $0x748] sm:$0xff]
        %v3456 = vld [vmem:[%s440 + $0x750] sm:$0xff]
        %v3457 = vld [vmem:[%s440 + $0x758] sm:$0xff]
        %v3458 = vld [vmem:[%s440 + $0x760] sm:$0xff]
        %v3459 = vld [vmem:[%s440 + $0x768] sm:$0xff]
        %v3460 = vld [vmem:[%s440 + $0x770] sm:$0xff]
        %v3461 = vld [vmem:[%s440 + $0x778] sm:$0xff]
        %v3462 = vld [vmem:[%s440 + $0x780] sm:$0xff]
        %v3463 = vld [vmem:[%s440 + $0x788] sm:$0xff]
        %v3464 = vld [vmem:[%s440 + $0x790] sm:$0xff]
        %v3465 = vld [vmem:[%s440 + $0x798] sm:$0xff]
        %v3466 = vld [vmem:[%s440 + $0x7a0] sm:$0xff]
        %v3467 = vld [vmem:[%s440 + $0x7a8] sm:$0xff]
        %v3468 = vld [vmem:[%s440 + $0x7b0] sm:$0xff]
        %v3469 = vld [vmem:[%s440 + $0x7b8] sm:$0xff]
        %v3470 = vld [vmem:[%s440 + $0x7c0] sm:$0xff]
        %v3471 = vld [vmem:[%s440 + $0x7c8] sm:$0xff]
        %v3472 = vld [vmem:[%s440 + $0x7d0] sm:$0xff]
        %v3473 = vld [vmem:[%s440 + $0x7d8] sm:$0xff]
        %v3474 = vld [vmem:[%s440 + $0x7e0] sm:$0xff]
        %v3475 = vld [vmem:[%s440 + $0x7e8] sm:$0xff]
        %v3476 = vld [vmem:[%s440 + $0x7f0] sm:$0xff]
        %v3477 = vld [vmem:[%s440 + $0x7f8] sm:$0xff]
        %v3478 = vld [vmem:[%s440 + $0x800] sm:$0xff]
        %v3479 = vld [vmem:[%s440 + $0x808] sm:$0xff]
        %v3480 = vld [vmem:[%s440 + $0x810] sm:$0xff]
        %v3481 = vld [vmem:[%s440 + $0x818] sm:$0xff]
        %v3482 = vld [vmem:[%s440 + $0x820] sm:$0xff]
        %v3483 = vld [vmem:[%s440 + $0x828] sm:$0xff]
        %v3484 = vld [vmem:[%s440 + $0x830] sm:$0xff]
        %v3485 = vld [vmem:[%s440 + $0x838] sm:$0xff]
        %v3486 = vld [vmem:[%s440 + $0x840] sm:$0xff]
        %v3487 = vld [vmem:[%s440 + $0x848] sm:$0xff]
        %v3488 = vld [vmem:[%s440 + $0x850] sm:$0xff]
        %v3489 = vld [vmem:[%s440 + $0x858] sm:$0xff]
        %v3490 = vld [vmem:[%s440 + $0x860] sm:$0xff]
        %v3491 = vld [vmem:[%s440 + $0x868] sm:$0xff]
        %v3492 = vld [vmem:[%s440 + $0x870] sm:$0xff]
        %v3493 = vld [vmem:[%s440 + $0x878] sm:$0xff]
        %v3494 = vld [vmem:[%s440 + $0x880] sm:$0xff]
        %v3495 = vld [vmem:[%s440 + $0x888] sm:$0xff]
        %v3496 = vld [vmem:[%s440 + $0x890] sm:$0xff]
        %v3497 = vld [vmem:[%s440 + $0x898] sm:$0xff]
        %v3498 = vld [vmem:[%s440 + $0x8a0] sm:$0xff]
        %v3499 = vld [vmem:[%s440 + $0x8a8] sm:$0xff]
        %v3500 = vld [vmem:[%s440 + $0x8b0] sm:$0xff]
        %v3501 = vld [vmem:[%s440 + $0x8b8] sm:$0xff]
        %v3502 = vld [vmem:[%s440 + $0x8c0] sm:$0xff]
        %v3503 = vld [vmem:[%s440 + $0x8c8] sm:$0xff]
        %v3504 = vld [vmem:[%s440 + $0x8d0] sm:$0xff]
        %v3505 = vld [vmem:[%s440 + $0x8d8] sm:$0xff]
        %v3506 = vld [vmem:[%s440 + $0x8e0] sm:$0xff]
        %v3507 = vld [vmem:[%s440 + $0x8e8] sm:$0xff]
        %v3508 = vld [vmem:[%s440 + $0x8f0] sm:$0xff]
        %v3509 = vld [vmem:[%s440 + $0x8f8] sm:$0xff]
        %v3510 = vld [vmem:[%s440 + $0x900] sm:$0xff]
        %v3511 = vld [vmem:[%s440 + $0x908] sm:$0xff]
        %v3512 = vld [vmem:[%s440 + $0x910] sm:$0xff]
        %v3513 = vld [vmem:[%s440 + $0x918] sm:$0xff]
        %v3514 = vld [vmem:[%s440 + $0x920] sm:$0xff]
        %v3515 = vld [vmem:[%s440 + $0x928] sm:$0xff]
        %v3516 = vld [vmem:[%s440 + $0x930] sm:$0xff]
        %v3517 = vld [vmem:[%s440 + $0x938] sm:$0xff]
        %v3518 = vld [vmem:[%s440 + $0x940] sm:$0xff]
        %v3519 = vld [vmem:[%s440 + $0x948] sm:$0xff]
        %v3520 = vld [vmem:[%s440 + $0x950] sm:$0xff]
        %v3521 = vld [vmem:[%s440 + $0x958] sm:$0xff]
        %v3522 = vld [vmem:[%s440 + $0x960] sm:$0xff]
        %v3523 = vld [vmem:[%s440 + $0x968] sm:$0xff]
        %v3524 = vld [vmem:[%s440 + $0x970] sm:$0xff]
        %v3525 = vld [vmem:[%s440 + $0x978] sm:$0xff]
        %v3526 = vld [vmem:[%s440 + $0x980] sm:$0xff]
        %v3527 = vld [vmem:[%s440 + $0x988] sm:$0xff]
        %v3528 = vld [vmem:[%s440 + $0x990] sm:$0xff]
        %v3529 = vld [vmem:[%s440 + $0x998] sm:$0xff]
        %v3530 = vld [vmem:[%s440 + $0x9a0] sm:$0xff]
        %v3531 = vld [vmem:[%s440 + $0x9a8] sm:$0xff]
        %v3532 = vld [vmem:[%s440 + $0x9b0] sm:$0xff]
        %v3533 = vld [vmem:[%s440 + $0x9b8] sm:$0xff]
        %v3534 = vld [vmem:[%s440 + $0x9c0] sm:$0xff]
        %v3535 = vld [vmem:[%s440 + $0x9c8] sm:$0xff]
        %v3536 = vld [vmem:[%s440 + $0x9d0] sm:$0xff]
        %v3537 = vld [vmem:[%s440 + $0x9d8] sm:$0xff]
        %v3538 = vld [vmem:[%s440 + $0x9e0] sm:$0xff]
        %v3539 = vld [vmem:[%s440 + $0x9e8] sm:$0xff]
        %v3540 = vld [vmem:[%s440 + $0x9f0] sm:$0xff]
        %v3541 = vld [vmem:[%s440 + $0x9f8] sm:$0xff]
        %v3542 = vld [vmem:[%s440 + $0xa00] sm:$0xff]
        %v3543 = vld [vmem:[%s440 + $0xa08] sm:$0xff]
        %v3544 = vld [vmem:[%s440 + $0xa10] sm:$0xff]
        %v3545 = vld [vmem:[%s440 + $0xa18] sm:$0xff]
        %v3546 = vld [vmem:[%s440 + $0xa20] sm:$0xff]
        %v3547 = vld [vmem:[%s440 + $0xa28] sm:$0xff]
        %v3548 = vld [vmem:[%s440 + $0xa30] sm:$0xff]
        %v3549 = vld [vmem:[%s440 + $0xa38] sm:$0xff]
        %v3550 = vld [vmem:[%s440 + $0xa40] sm:$0xff]
        %v3551 = vld [vmem:[%s440 + $0xa48] sm:$0xff]
        %v3552 = vld [vmem:[%s440 + $0xa50] sm:$0xff]
        %v3553 = vld [vmem:[%s440 + $0xa58] sm:$0xff]
        %v3554 = vld [vmem:[%s440 + $0xa60] sm:$0xff]
        %v3555 = vld [vmem:[%s440 + $0xa68] sm:$0xff]
        %v3556 = vld [vmem:[%s440 + $0xa70] sm:$0xff]
        %v3557 = vld [vmem:[%s440 + $0xa78] sm:$0xff]
        %v3558 = vld [vmem:[%s440 + $0xa80] sm:$0xff]
        %v3559 = vld [vmem:[%s440 + $0xa88] sm:$0xff]
        %v3560 = vld [vmem:[%s440 + $0xa90] sm:$0xff]
        %v3561 = vld [vmem:[%s440 + $0xa98] sm:$0xff]
        %v3562 = vld [vmem:[%s440 + $0xaa0] sm:$0xff]
        %v3563 = vld [vmem:[%s440 + $0xaa8] sm:$0xff]
        %v3564 = vld [vmem:[%s440 + $0xab0] sm:$0xff]
        %v3565 = vld [vmem:[%s440 + $0xab8] sm:$0xff]
        %v3566 = vld [vmem:[%s440 + $0xac0] sm:$0xff]
        %v3567 = vld [vmem:[%s440 + $0xac8] sm:$0xff]
        %v3568 = vld [vmem:[%s440 + $0xad0] sm:$0xff]
        %v3569 = vld [vmem:[%s440 + $0xad8] sm:$0xff]
        %v3570 = vld [vmem:[%s440 + $0xae0] sm:$0xff]
        %v3571 = vld [vmem:[%s440 + $0xae8] sm:$0xff]
        %v3572 = vld [vmem:[%s440 + $0xaf0] sm:$0xff]
        %v3573 = vld [vmem:[%s440 + $0xaf8] sm:$0xff]
        %v3574 = vld [vmem:[%s440 + $0xb00] sm:$0xff]
        %v3575 = vld [vmem:[%s440 + $0xb08] sm:$0xff]
        %v3576 = vld [vmem:[%s440 + $0xb10] sm:$0xff]
        %v3577 = vld [vmem:[%s440 + $0xb18] sm:$0xff]
        %v3578 = vld [vmem:[%s440 + $0xb20] sm:$0xff]
        %v3579 = vld [vmem:[%s440 + $0xb28] sm:$0xff]
        %v3580 = vld [vmem:[%s440 + $0xb30] sm:$0xff]
        %v3581 = vld [vmem:[%s440 + $0xb38] sm:$0xff]
        %v3582 = vld [vmem:[%s440 + $0xb40] sm:$0xff]
        %v3583 = vld [vmem:[%s440 + $0xb48] sm:$0xff]
        %v3584 = vld [vmem:[%s440 + $0xb50] sm:$0xff]
        %v3585 = vld [vmem:[%s440 + $0xb58] sm:$0xff]
        %v3586 = vld [vmem:[%s440 + $0xb60] sm:$0xff]
        %v3587 = vld [vmem:[%s440 + $0xb68] sm:$0xff]
        %v3588 = vld [vmem:[%s440 + $0xb70] sm:$0xff]
        %v3589 = vld [vmem:[%s440 + $0xb78] sm:$0xff]
        %v3590 = vld [vmem:[%s440 + $0xb80] sm:$0xff]
        %v3591 = vld [vmem:[%s440 + $0xb88] sm:$0xff]
        %v3592 = vld [vmem:[%s440 + $0xb90] sm:$0xff]
        %v3593 = vld [vmem:[%s440 + $0xb98] sm:$0xff]
        %v3594 = vld [vmem:[%s440 + $0xba0] sm:$0xff]
        %v3595 = vld [vmem:[%s440 + $0xba8] sm:$0xff]
        %v3596 = vld [vmem:[%s440 + $0xbb0] sm:$0xff]
        %v3597 = vld [vmem:[%s440 + $0xbb8] sm:$0xff]
        %v3598 = vld [vmem:[%s440 + $0xbc0] sm:$0xff]
        %v3599 = vld [vmem:[%s440 + $0xbc8] sm:$0xff]
        %v3600 = vld [vmem:[%s440 + $0xbd0] sm:$0xff]
        %v3601 = vld [vmem:[%s440 + $0xbd8] sm:$0xff]
        %v3602 = vld [vmem:[%s440 + $0xbe0] sm:$0xff]
        %v3603 = vld [vmem:[%s440 + $0xbe8] sm:$0xff]
        %v3604 = vld [vmem:[%s440 + $0xbf0] sm:$0xff]
        %v3605 = vld [vmem:[%s440 + $0xbf8] sm:$0xff]
        %v3606 = vld [vmem:[%s440 + $0xc00] sm:$0xff]
        %v3607 = vld [vmem:[%s440 + $0xc08] sm:$0xff]
        %v3608 = vld [vmem:[%s440 + $0xc10] sm:$0xff]
        %v3609 = vld [vmem:[%s440 + $0xc18] sm:$0xff]
        %v3610 = vld [vmem:[%s440 + $0xc20] sm:$0xff]
        %v3611 = vld [vmem:[%s440 + $0xc28] sm:$0xff]
        %v3612 = vld [vmem:[%s440 + $0xc30] sm:$0xff]
        %v3613 = vld [vmem:[%s440 + $0xc38] sm:$0xff]
        %v3614 = vld [vmem:[%s440 + $0xc40] sm:$0xff]
        %v3615 = vld [vmem:[%s440 + $0xc48] sm:$0xff]
        %v3616 = vld [vmem:[%s440 + $0xc50] sm:$0xff]
        %v3617 = vld [vmem:[%s440 + $0xc58] sm:$0xff]
        %v3618 = vld [vmem:[%s440 + $0xc60] sm:$0xff]
        %v3619 = vld [vmem:[%s440 + $0xc68] sm:$0xff]
        %v3620 = vld [vmem:[%s440 + $0xc70] sm:$0xff]
        %v3621 = vld [vmem:[%s440 + $0xc78] sm:$0xff]
        %v3622 = vld [vmem:[%s440 + $0xc80] sm:$0xff]
        %v3623 = vld [vmem:[%s440 + $0xc88] sm:$0xff]
        %v3624 = vld [vmem:[%s440 + $0xc90] sm:$0xff]
        %v3625 = vld [vmem:[%s440 + $0xc98] sm:$0xff]
        %v3626 = vld [vmem:[%s440 + $0xca0] sm:$0xff]
        %v3627 = vld [vmem:[%s440 + $0xca8] sm:$0xff]
        %v3628 = vld [vmem:[%s440 + $0xcb0] sm:$0xff]
        %v3629 = vld [vmem:[%s440 + $0xcb8] sm:$0xff]
        %v3630 = vld [vmem:[%s440 + $0xcc0] sm:$0xff]
        %v3631 = vld [vmem:[%s440 + $0xcc8] sm:$0xff]
        %v3632 = vld [vmem:[%s440 + $0xcd0] sm:$0xff]
        %v3633 = vld [vmem:[%s440 + $0xcd8] sm:$0xff]
        %v3634 = vld [vmem:[%s440 + $0xce0] sm:$0xff]
        %v3635 = vld [vmem:[%s440 + $0xce8] sm:$0xff]
        %v3636 = vld [vmem:[%s440 + $0xcf0] sm:$0xff]
        %v3637 = vld [vmem:[%s440 + $0xcf8] sm:$0xff]
        %v3638 = vld [vmem:[%s440 + $0xd00] sm:$0xff]
        %v3639 = vld [vmem:[%s440 + $0xd08] sm:$0xff]
        %v3640 = vld [vmem:[%s440 + $0xd10] sm:$0xff]
        %v3641 = vld [vmem:[%s440 + $0xd18] sm:$0xff]
        %v3642 = vld [vmem:[%s440 + $0xd20] sm:$0xff]
        %v3643 = vld [vmem:[%s440 + $0xd28] sm:$0xff]
        %v3644 = vld [vmem:[%s440 + $0xd30] sm:$0xff]
        %v3645 = vld [vmem:[%s440 + $0xd38] sm:$0xff]
        %v3646 = vld [vmem:[%s440 + $0xd40] sm:$0xff]
        %v3647 = vld [vmem:[%s440 + $0xd48] sm:$0xff]
        %v3648 = vld [vmem:[%s440 + $0xd50] sm:$0xff]
        %v3649 = vld [vmem:[%s440 + $0xd58] sm:$0xff]
        %v3650 = vld [vmem:[%s440 + $0xd60] sm:$0xff]
        %v3651 = vld [vmem:[%s440 + $0xd68] sm:$0xff]
        %v3652 = vld [vmem:[%s440 + $0xd70] sm:$0xff]
        %v3653 = vld [vmem:[%s440 + $0xd78] sm:$0xff]
        %v3654 = vld [vmem:[%s440 + $0xd80] sm:$0xff]
        %v3655 = vld [vmem:[%s440 + $0xd88] sm:$0xff]
        %v3656 = vld [vmem:[%s440 + $0xd90] sm:$0xff]
        %v3657 = vld [vmem:[%s440 + $0xd98] sm:$0xff]
        %v3658 = vld [vmem:[%s440 + $0xda0] sm:$0xff]
        %v3659 = vld [vmem:[%s440 + $0xda8] sm:$0xff]
        %v3660 = vld [vmem:[%s440 + $0xdb0] sm:$0xff]
        %v3661 = vld [vmem:[%s440 + $0xdb8] sm:$0xff]
        %v3662 = vld [vmem:[%s440 + $0xdc0] sm:$0xff]
        %v3663 = vld [vmem:[%s440 + $0xdc8] sm:$0xff]
        %v3664 = vld [vmem:[%s440 + $0xdd0] sm:$0xff]
        %v3665 = vld [vmem:[%s440 + $0xdd8] sm:$0xff]
        %v3666 = vld [vmem:[%s440 + $0xde0] sm:$0xff]
        %v3667 = vld [vmem:[%s440 + $0xde8] sm:$0xff]
        %v3668 = vld [vmem:[%s440 + $0xdf0] sm:$0xff]
        %v3669 = vld [vmem:[%s440 + $0xdf8] sm:$0xff]
        %v4118 = vunpack.c.l.b16 %v3222
        %v4119 = vunpack.c.h.b16 %v3222
        %v4120 = vunpack.c.l.b16 %v3223
        %v4121 = vunpack.c.h.b16 %v3223
        %v4122 = vunpack.c.l.b16 %v3224
        %v4123 = vunpack.c.h.b16 %v3224
        %v4124 = vunpack.c.l.b16 %v3225
        %v4125 = vunpack.c.h.b16 %v3225
        %v4126 = vunpack.c.l.b16 %v3226
        %v4127 = vunpack.c.h.b16 %v3226
        %v4128 = vunpack.c.l.b16 %v3227
        %v4129 = vunpack.c.h.b16 %v3227
        %v4130 = vunpack.c.l.b16 %v3228
        %v4131 = vunpack.c.h.b16 %v3228
        %v4132 = vunpack.c.l.b16 %v3229
        %v4133 = vunpack.c.h.b16 %v3229
        %v4134 = vunpack.c.l.b16 %v3230
        %v4135 = vunpack.c.h.b16 %v3230
        %v4136 = vunpack.c.l.b16 %v3231
        %v4137 = vunpack.c.h.b16 %v3231
        %v4138 = vunpack.c.l.b16 %v3232
        %v4139 = vunpack.c.h.b16 %v3232
        %v4140 = vunpack.c.l.b16 %v3233
        %v4141 = vunpack.c.h.b16 %v3233
        %v4142 = vunpack.c.l.b16 %v3234
        %v4143 = vunpack.c.h.b16 %v3234
        %v4144 = vunpack.c.l.b16 %v3235
        %v4145 = vunpack.c.h.b16 %v3235
        %v4146 = vunpack.c.l.b16 %v3236
        %v4147 = vunpack.c.h.b16 %v3236
        %v4148 = vunpack.c.l.b16 %v3237
        %v4149 = vunpack.c.h.b16 %v3237
        %v4150 = vunpack.c.l.b16 %v3238
        %v4151 = vunpack.c.h.b16 %v3238
        %v4152 = vunpack.c.l.b16 %v3239
        %v4153 = vunpack.c.h.b16 %v3239
        %v4154 = vunpack.c.l.b16 %v3240
        %v4155 = vunpack.c.h.b16 %v3240
        %v4156 = vunpack.c.l.b16 %v3241
        %v4157 = vunpack.c.h.b16 %v3241
        %v4158 = vunpack.c.l.b16 %v3242
        %v4159 = vunpack.c.h.b16 %v3242
        %v4160 = vunpack.c.l.b16 %v3243
        %v4161 = vunpack.c.h.b16 %v3243
        %v4162 = vunpack.c.l.b16 %v3244
        %v4163 = vunpack.c.h.b16 %v3244
        %v4164 = vunpack.c.l.b16 %v3245
        %v4165 = vunpack.c.h.b16 %v3245
        %v4166 = vunpack.c.l.b16 %v3246
        %v4167 = vunpack.c.h.b16 %v3246
        %v4168 = vunpack.c.l.b16 %v3247
        %v4169 = vunpack.c.h.b16 %v3247
        %v4170 = vunpack.c.l.b16 %v3248
        %v4171 = vunpack.c.h.b16 %v3248
        %v4172 = vunpack.c.l.b16 %v3249
        %v4173 = vunpack.c.h.b16 %v3249
        %v4174 = vunpack.c.l.b16 %v3250
        %v4175 = vunpack.c.h.b16 %v3250
        %v4176 = vunpack.c.l.b16 %v3251
        %v4177 = vunpack.c.h.b16 %v3251
        %v4178 = vunpack.c.l.b16 %v3252
        %v4179 = vunpack.c.h.b16 %v3252
        %v4180 = vunpack.c.l.b16 %v3253
        %v4181 = vunpack.c.h.b16 %v3253
        %v4182 = vunpack.c.l.b16 %v3254
        %v4183 = vunpack.c.h.b16 %v3254
        %v4184 = vunpack.c.l.b16 %v3255
        %v4185 = vunpack.c.h.b16 %v3255
        %v4186 = vunpack.c.l.b16 %v3256
        %v4187 = vunpack.c.h.b16 %v3256
        %v4188 = vunpack.c.l.b16 %v3257
        %v4189 = vunpack.c.h.b16 %v3257
        %v4190 = vunpack.c.l.b16 %v3258
        %v4191 = vunpack.c.h.b16 %v3258
        %v4192 = vunpack.c.l.b16 %v3259
        %v4193 = vunpack.c.h.b16 %v3259
        %v4194 = vunpack.c.l.b16 %v3260
        %v4195 = vunpack.c.h.b16 %v3260
        %v4196 = vunpack.c.l.b16 %v3261
        %v4197 = vunpack.c.h.b16 %v3261
        %v4198 = vunpack.c.l.b16 %v3262
        %v4199 = vunpack.c.h.b16 %v3262
        %v4200 = vunpack.c.l.b16 %v3263
        %v4201 = vunpack.c.h.b16 %v3263
        %v4202 = vunpack.c.l.b16 %v3264
        %v4203 = vunpack.c.h.b16 %v3264
        %v4204 = vunpack.c.l.b16 %v3265
        %v4205 = vunpack.c.h.b16 %v3265
        %v4206 = vunpack.c.l.b16 %v3266
        %v4207 = vunpack.c.h.b16 %v3266
        %v4208 = vunpack.c.l.b16 %v3267
        %v4209 = vunpack.c.h.b16 %v3267
        %v4210 = vunpack.c.l.b16 %v3268
        %v4211 = vunpack.c.h.b16 %v3268
        %v4212 = vunpack.c.l.b16 %v3269
        %v4213 = vunpack.c.h.b16 %v3269
        %v4214 = vunpack.c.l.b16 %v3270
        %v4215 = vunpack.c.h.b16 %v3270
        %v4216 = vunpack.c.l.b16 %v3271
        %v4217 = vunpack.c.h.b16 %v3271
        %v4218 = vunpack.c.l.b16 %v3272
        %v4219 = vunpack.c.h.b16 %v3272
        %v4220 = vunpack.c.l.b16 %v3273
        %v4221 = vunpack.c.h.b16 %v3273
        %v4222 = vunpack.c.l.b16 %v3274
        %v4223 = vunpack.c.h.b16 %v3274
        %v4224 = vunpack.c.l.b16 %v3275
        %v4225 = vunpack.c.h.b16 %v3275
        %v4226 = vunpack.c.l.b16 %v3276
        %v4227 = vunpack.c.h.b16 %v3276
        %v4228 = vunpack.c.l.b16 %v3277
        %v4229 = vunpack.c.h.b16 %v3277
        %v4230 = vunpack.c.l.b16 %v3278
        %v4231 = vunpack.c.h.b16 %v3278
        %v4232 = vunpack.c.l.b16 %v3279
        %v4233 = vunpack.c.h.b16 %v3279
        %v4234 = vunpack.c.l.b16 %v3280
        %v4235 = vunpack.c.h.b16 %v3280
        %v4236 = vunpack.c.l.b16 %v3281
        %v4237 = vunpack.c.h.b16 %v3281
        %v4238 = vunpack.c.l.b16 %v3282
        %v4239 = vunpack.c.h.b16 %v3282
        %v4240 = vunpack.c.l.b16 %v3283
        %v4241 = vunpack.c.h.b16 %v3283
        %v4242 = vunpack.c.l.b16 %v3284
        %v4243 = vunpack.c.h.b16 %v3284
        %v4244 = vunpack.c.l.b16 %v3285
        %v4245 = vunpack.c.h.b16 %v3285
        %v4246 = vunpack.c.l.b16 %v3286
        %v4247 = vunpack.c.h.b16 %v3286
        %v4248 = vunpack.c.l.b16 %v3287
        %v4249 = vunpack.c.h.b16 %v3287
        %v4250 = vunpack.c.l.b16 %v3288
        %v4251 = vunpack.c.h.b16 %v3288
        %v4252 = vunpack.c.l.b16 %v3289
        %v4253 = vunpack.c.h.b16 %v3289
        %v4254 = vunpack.c.l.b16 %v3290
        %v4255 = vunpack.c.h.b16 %v3290
        %v4256 = vunpack.c.l.b16 %v3291
        %v4257 = vunpack.c.h.b16 %v3291
        %v4258 = vunpack.c.l.b16 %v3292
        %v4259 = vunpack.c.h.b16 %v3292
        %v4260 = vunpack.c.l.b16 %v3293
        %v4261 = vunpack.c.h.b16 %v3293
        %v4262 = vunpack.c.l.b16 %v3294
        %v4263 = vunpack.c.h.b16 %v3294
        %v4264 = vunpack.c.l.b16 %v3295
        %v4265 = vunpack.c.h.b16 %v3295
        %v4266 = vunpack.c.l.b16 %v3296
        %v4267 = vunpack.c.h.b16 %v3296
        %v4268 = vunpack.c.l.b16 %v3297
        %v4269 = vunpack.c.h.b16 %v3297
        %v4270 = vunpack.c.l.b16 %v3298
        %v4271 = vunpack.c.h.b16 %v3298
        %v4272 = vunpack.c.l.b16 %v3299
        %v4273 = vunpack.c.h.b16 %v3299
        %v4274 = vunpack.c.l.b16 %v3300
        %v4275 = vunpack.c.h.b16 %v3300
        %v4276 = vunpack.c.l.b16 %v3301
        %v4277 = vunpack.c.h.b16 %v3301
        %v4278 = vunpack.c.l.b16 %v3302
        %v4279 = vunpack.c.h.b16 %v3302
        %v4280 = vunpack.c.l.b16 %v3303
        %v4281 = vunpack.c.h.b16 %v3303
        %v4282 = vunpack.c.l.b16 %v3304
        %v4283 = vunpack.c.h.b16 %v3304
        %v4284 = vunpack.c.l.b16 %v3305
        %v4285 = vunpack.c.h.b16 %v3305
        %v4286 = vunpack.c.l.b16 %v3306
        %v4287 = vunpack.c.h.b16 %v3306
        %v4288 = vunpack.c.l.b16 %v3307
        %v4289 = vunpack.c.h.b16 %v3307
        %v4290 = vunpack.c.l.b16 %v3308
        %v4291 = vunpack.c.h.b16 %v3308
        %v4292 = vunpack.c.l.b16 %v3309
        %v4293 = vunpack.c.h.b16 %v3309
        %v4294 = vunpack.c.l.b16 %v3310
        %v4295 = vunpack.c.h.b16 %v3310
        %v4296 = vunpack.c.l.b16 %v3311
        %v4297 = vunpack.c.h.b16 %v3311
        %v4298 = vunpack.c.l.b16 %v3312
        %v4299 = vunpack.c.h.b16 %v3312
        %v4300 = vunpack.c.l.b16 %v3313
        %v4301 = vunpack.c.h.b16 %v3313
        %v4302 = vunpack.c.l.b16 %v3314
        %v4303 = vunpack.c.h.b16 %v3314
        %v4304 = vunpack.c.l.b16 %v3315
        %v4305 = vunpack.c.h.b16 %v3315
        %v4306 = vunpack.c.l.b16 %v3316
        %v4307 = vunpack.c.h.b16 %v3316
        %v4308 = vunpack.c.l.b16 %v3317
        %v4309 = vunpack.c.h.b16 %v3317
        %v4310 = vunpack.c.l.b16 %v3318
        %v4311 = vunpack.c.h.b16 %v3318
        %v4312 = vunpack.c.l.b16 %v3319
        %v4313 = vunpack.c.h.b16 %v3319
        %v4314 = vunpack.c.l.b16 %v3320
        %v4315 = vunpack.c.h.b16 %v3320
        %v4316 = vunpack.c.l.b16 %v3321
        %v4317 = vunpack.c.h.b16 %v3321
        %v4318 = vunpack.c.l.b16 %v3322
        %v4319 = vunpack.c.h.b16 %v3322
        %v4320 = vunpack.c.l.b16 %v3323
        %v4321 = vunpack.c.h.b16 %v3323
        %v4322 = vunpack.c.l.b16 %v3324
        %v4323 = vunpack.c.h.b16 %v3324
        %v4324 = vunpack.c.l.b16 %v3325
        %v4325 = vunpack.c.h.b16 %v3325
        %v4326 = vunpack.c.l.b16 %v3326
        %v4327 = vunpack.c.h.b16 %v3326
        %v4328 = vunpack.c.l.b16 %v3327
        %v4329 = vunpack.c.h.b16 %v3327
        %v4330 = vunpack.c.l.b16 %v3328
        %v4331 = vunpack.c.h.b16 %v3328
        %v4332 = vunpack.c.l.b16 %v3329
        %v4333 = vunpack.c.h.b16 %v3329
        %v4334 = vunpack.c.l.b16 %v3330
        %v4335 = vunpack.c.h.b16 %v3330
        %v4336 = vunpack.c.l.b16 %v3331
        %v4337 = vunpack.c.h.b16 %v3331
        %v4338 = vunpack.c.l.b16 %v3332
        %v4339 = vunpack.c.h.b16 %v3332
        %v4340 = vunpack.c.l.b16 %v3333
        %v4341 = vunpack.c.h.b16 %v3333
        %v4342 = vunpack.c.l.b16 %v3334
        %v4343 = vunpack.c.h.b16 %v3334
        %v4344 = vunpack.c.l.b16 %v3335
        %v4345 = vunpack.c.h.b16 %v3335
        %v4346 = vunpack.c.l.b16 %v3336
        %v4347 = vunpack.c.h.b16 %v3336
        %v4348 = vunpack.c.l.b16 %v3337
        %v4349 = vunpack.c.h.b16 %v3337
        %v4350 = vunpack.c.l.b16 %v3338
        %v4351 = vunpack.c.h.b16 %v3338
        %v4352 = vunpack.c.l.b16 %v3339
        %v4353 = vunpack.c.h.b16 %v3339
        %v4354 = vunpack.c.l.b16 %v3340
        %v4355 = vunpack.c.h.b16 %v3340
        %v4356 = vunpack.c.l.b16 %v3341
        %v4357 = vunpack.c.h.b16 %v3341
        %v4358 = vunpack.c.l.b16 %v3342
        %v4359 = vunpack.c.h.b16 %v3342
        %v4360 = vunpack.c.l.b16 %v3343
        %v4361 = vunpack.c.h.b16 %v3343
        %v4362 = vunpack.c.l.b16 %v3344
        %v4363 = vunpack.c.h.b16 %v3344
        %v4364 = vunpack.c.l.b16 %v3345
        %v4365 = vunpack.c.h.b16 %v3345
        %v4366 = vunpack.c.l.b16 %v3346
        %v4367 = vunpack.c.h.b16 %v3346
        %v4368 = vunpack.c.l.b16 %v3347
        %v4369 = vunpack.c.h.b16 %v3347
        %v4370 = vunpack.c.l.b16 %v3348
        %v4371 = vunpack.c.h.b16 %v3348
        %v4372 = vunpack.c.l.b16 %v3349
        %v4373 = vunpack.c.h.b16 %v3349
        %v4374 = vunpack.c.l.b16 %v3350
        %v4375 = vunpack.c.h.b16 %v3350
        %v4376 = vunpack.c.l.b16 %v3351
        %v4377 = vunpack.c.h.b16 %v3351
        %v4378 = vunpack.c.l.b16 %v3352
        %v4379 = vunpack.c.h.b16 %v3352
        %v4380 = vunpack.c.l.b16 %v3353
        %v4381 = vunpack.c.h.b16 %v3353
        %v4382 = vunpack.c.l.b16 %v3354
        %v4383 = vunpack.c.h.b16 %v3354
        %v4384 = vunpack.c.l.b16 %v3355
        %v4385 = vunpack.c.h.b16 %v3355
        %v4386 = vunpack.c.l.b16 %v3356
        %v4387 = vunpack.c.h.b16 %v3356
        %v4388 = vunpack.c.l.b16 %v3357
        %v4389 = vunpack.c.h.b16 %v3357
        %v4390 = vunpack.c.l.b16 %v3358
        %v4391 = vunpack.c.h.b16 %v3358
        %v4392 = vunpack.c.l.b16 %v3359
        %v4393 = vunpack.c.h.b16 %v3359
        %v4394 = vunpack.c.l.b16 %v3360
        %v4395 = vunpack.c.h.b16 %v3360
        %v4396 = vunpack.c.l.b16 %v3361
        %v4397 = vunpack.c.h.b16 %v3361
        %v4398 = vunpack.c.l.b16 %v3362
        %v4399 = vunpack.c.h.b16 %v3362
        %v4400 = vunpack.c.l.b16 %v3363
        %v4401 = vunpack.c.h.b16 %v3363
        %v4402 = vunpack.c.l.b16 %v3364
        %v4403 = vunpack.c.h.b16 %v3364
        %v4404 = vunpack.c.l.b16 %v3365
        %v4405 = vunpack.c.h.b16 %v3365
        %v4406 = vunpack.c.l.b16 %v3366
        %v4407 = vunpack.c.h.b16 %v3366
        %v4408 = vunpack.c.l.b16 %v3367
        %v4409 = vunpack.c.h.b16 %v3367
        %v4410 = vunpack.c.l.b16 %v3368
        %v4411 = vunpack.c.h.b16 %v3368
        %v4412 = vunpack.c.l.b16 %v3369
        %v4413 = vunpack.c.h.b16 %v3369
        %v4414 = vunpack.c.l.b16 %v3370
        %v4415 = vunpack.c.h.b16 %v3370
        %v4416 = vunpack.c.l.b16 %v3371
        %v4417 = vunpack.c.h.b16 %v3371
        %v4418 = vunpack.c.l.b16 %v3372
        %v4419 = vunpack.c.h.b16 %v3372
        %v4420 = vunpack.c.l.b16 %v3373
        %v4421 = vunpack.c.h.b16 %v3373
        %v4422 = vunpack.c.l.b16 %v3374
        %v4423 = vunpack.c.h.b16 %v3374
        %v4424 = vunpack.c.l.b16 %v3375
        %v4425 = vunpack.c.h.b16 %v3375
        %v4426 = vunpack.c.l.b16 %v3376
        %v4427 = vunpack.c.h.b16 %v3376
        %v4428 = vunpack.c.l.b16 %v3377
        %v4429 = vunpack.c.h.b16 %v3377
        %v4430 = vunpack.c.l.b16 %v3378
        %v4431 = vunpack.c.h.b16 %v3378
        %v4432 = vunpack.c.l.b16 %v3379
        %v4433 = vunpack.c.h.b16 %v3379
        %v4434 = vunpack.c.l.b16 %v3380
        %v4435 = vunpack.c.h.b16 %v3380
        %v4436 = vunpack.c.l.b16 %v3381
        %v4437 = vunpack.c.h.b16 %v3381
        %v4438 = vunpack.c.l.b16 %v3382
        %v4439 = vunpack.c.h.b16 %v3382
        %v4440 = vunpack.c.l.b16 %v3383
        %v4441 = vunpack.c.h.b16 %v3383
        %v4442 = vunpack.c.l.b16 %v3384
        %v4443 = vunpack.c.h.b16 %v3384
        %v4444 = vunpack.c.l.b16 %v3385
        %v4445 = vunpack.c.h.b16 %v3385
        %v4446 = vunpack.c.l.b16 %v3386
        %v4447 = vunpack.c.h.b16 %v3386
        %v4448 = vunpack.c.l.b16 %v3387
        %v4449 = vunpack.c.h.b16 %v3387
        %v4450 = vunpack.c.l.b16 %v3388
        %v4451 = vunpack.c.h.b16 %v3388
        %v4452 = vunpack.c.l.b16 %v3389
        %v4453 = vunpack.c.h.b16 %v3389
        %v4454 = vunpack.c.l.b16 %v3390
        %v4455 = vunpack.c.h.b16 %v3390
        %v4456 = vunpack.c.l.b16 %v3391
        %v4457 = vunpack.c.h.b16 %v3391
        %v4458 = vunpack.c.l.b16 %v3392
        %v4459 = vunpack.c.h.b16 %v3392
        %v4460 = vunpack.c.l.b16 %v3393
        %v4461 = vunpack.c.h.b16 %v3393
        %v4462 = vunpack.c.l.b16 %v3394
        %v4463 = vunpack.c.h.b16 %v3394
        %v4464 = vunpack.c.l.b16 %v3395
        %v4465 = vunpack.c.h.b16 %v3395
        %v4466 = vunpack.c.l.b16 %v3396
        %v4467 = vunpack.c.h.b16 %v3396
        %v4468 = vunpack.c.l.b16 %v3397
        %v4469 = vunpack.c.h.b16 %v3397
        %v4470 = vunpack.c.l.b16 %v3398
        %v4471 = vunpack.c.h.b16 %v3398
        %v4472 = vunpack.c.l.b16 %v3399
        %v4473 = vunpack.c.h.b16 %v3399
        %v4474 = vunpack.c.l.b16 %v3400
        %v4475 = vunpack.c.h.b16 %v3400
        %v4476 = vunpack.c.l.b16 %v3401
        %v4477 = vunpack.c.h.b16 %v3401
        %v4478 = vunpack.c.l.b16 %v3402
        %v4479 = vunpack.c.h.b16 %v3402
        %v4480 = vunpack.c.l.b16 %v3403
        %v4481 = vunpack.c.h.b16 %v3403
        %v4482 = vunpack.c.l.b16 %v3404
        %v4483 = vunpack.c.h.b16 %v3404
        %v4484 = vunpack.c.l.b16 %v3405
        %v4485 = vunpack.c.h.b16 %v3405
        %v4486 = vunpack.c.l.b16 %v3406
        %v4487 = vunpack.c.h.b16 %v3406
        %v4488 = vunpack.c.l.b16 %v3407
        %v4489 = vunpack.c.h.b16 %v3407
        %v4490 = vunpack.c.l.b16 %v3408
        %v4491 = vunpack.c.h.b16 %v3408
        %v4492 = vunpack.c.l.b16 %v3409
        %v4493 = vunpack.c.h.b16 %v3409
        %v4494 = vunpack.c.l.b16 %v3410
        %v4495 = vunpack.c.h.b16 %v3410
        %v4496 = vunpack.c.l.b16 %v3411
        %v4497 = vunpack.c.h.b16 %v3411
        %v4498 = vunpack.c.l.b16 %v3412
        %v4499 = vunpack.c.h.b16 %v3412
        %v4500 = vunpack.c.l.b16 %v3413
        %v4501 = vunpack.c.h.b16 %v3413
        %v4502 = vunpack.c.l.b16 %v3414
        %v4503 = vunpack.c.h.b16 %v3414
        %v4504 = vunpack.c.l.b16 %v3415
        %v4505 = vunpack.c.h.b16 %v3415
        %v4506 = vunpack.c.l.b16 %v3416
        %v4507 = vunpack.c.h.b16 %v3416
        %v4508 = vunpack.c.l.b16 %v3417
        %v4509 = vunpack.c.h.b16 %v3417
        %v4510 = vunpack.c.l.b16 %v3418
        %v4511 = vunpack.c.h.b16 %v3418
        %v4512 = vunpack.c.l.b16 %v3419
        %v4513 = vunpack.c.h.b16 %v3419
        %v4514 = vunpack.c.l.b16 %v3420
        %v4515 = vunpack.c.h.b16 %v3420
        %v4516 = vunpack.c.l.b16 %v3421
        %v4517 = vunpack.c.h.b16 %v3421
        %v4518 = vunpack.c.l.b16 %v3422
        %v4519 = vunpack.c.h.b16 %v3422
        %v4520 = vunpack.c.l.b16 %v3423
        %v4521 = vunpack.c.h.b16 %v3423
        %v4522 = vunpack.c.l.b16 %v3424
        %v4523 = vunpack.c.h.b16 %v3424
        %v4524 = vunpack.c.l.b16 %v3425
        %v4525 = vunpack.c.h.b16 %v3425
        %v4526 = vunpack.c.l.b16 %v3426
        %v4527 = vunpack.c.h.b16 %v3426
        %v4528 = vunpack.c.l.b16 %v3427
        %v4529 = vunpack.c.h.b16 %v3427
        %v4530 = vunpack.c.l.b16 %v3428
        %v4531 = vunpack.c.h.b16 %v3428
        %v4532 = vunpack.c.l.b16 %v3429
        %v4533 = vunpack.c.h.b16 %v3429
        %v4534 = vunpack.c.l.b16 %v3430
        %v4535 = vunpack.c.h.b16 %v3430
        %v4536 = vunpack.c.l.b16 %v3431
        %v4537 = vunpack.c.h.b16 %v3431
        %v4538 = vunpack.c.l.b16 %v3432
        %v4539 = vunpack.c.h.b16 %v3432
        %v4540 = vunpack.c.l.b16 %v3433
        %v4541 = vunpack.c.h.b16 %v3433
        %v4542 = vunpack.c.l.b16 %v3434
        %v4543 = vunpack.c.h.b16 %v3434
        %v4544 = vunpack.c.l.b16 %v3435
        %v4545 = vunpack.c.h.b16 %v3435
        %v4546 = vunpack.c.l.b16 %v3436
        %v4547 = vunpack.c.h.b16 %v3436
        %v4548 = vunpack.c.l.b16 %v3437
        %v4549 = vunpack.c.h.b16 %v3437
        %v4550 = vunpack.c.l.b16 %v3438
        %v4551 = vunpack.c.h.b16 %v3438
        %v4552 = vunpack.c.l.b16 %v3439
        %v4553 = vunpack.c.h.b16 %v3439
        %v4554 = vunpack.c.l.b16 %v3440
        %v4555 = vunpack.c.h.b16 %v3440
        %v4556 = vunpack.c.l.b16 %v3441
        %v4557 = vunpack.c.h.b16 %v3441
        %v4558 = vunpack.c.l.b16 %v3442
        %v4559 = vunpack.c.h.b16 %v3442
        %v4560 = vunpack.c.l.b16 %v3443
        %v4561 = vunpack.c.h.b16 %v3443
        %v4562 = vunpack.c.l.b16 %v3444
        %v4563 = vunpack.c.h.b16 %v3444
        %v4564 = vunpack.c.l.b16 %v3445
        %v4565 = vunpack.c.h.b16 %v3445
        %v4566 = vunpack.c.l.b16 %v3446
        %v4567 = vunpack.c.h.b16 %v3446
        %v4568 = vunpack.c.l.b16 %v3447
        %v4569 = vunpack.c.h.b16 %v3447
        %v4570 = vunpack.c.l.b16 %v3448
        %v4571 = vunpack.c.h.b16 %v3448
        %v4572 = vunpack.c.l.b16 %v3449
        %v4573 = vunpack.c.h.b16 %v3449
        %v4574 = vunpack.c.l.b16 %v3450
        %v4575 = vunpack.c.h.b16 %v3450
        %v4576 = vunpack.c.l.b16 %v3451
        %v4577 = vunpack.c.h.b16 %v3451
        %v4578 = vunpack.c.l.b16 %v3452
        %v4579 = vunpack.c.h.b16 %v3452
        %v4580 = vunpack.c.l.b16 %v3453
        %v4581 = vunpack.c.h.b16 %v3453
        %v4582 = vunpack.c.l.b16 %v3454
        %v4583 = vunpack.c.h.b16 %v3454
        %v4584 = vunpack.c.l.b16 %v3455
        %v4585 = vunpack.c.h.b16 %v3455
        %v4586 = vunpack.c.l.b16 %v3456
        %v4587 = vunpack.c.h.b16 %v3456
        %v4588 = vunpack.c.l.b16 %v3457
        %v4589 = vunpack.c.h.b16 %v3457
        %v4590 = vunpack.c.l.b16 %v3458
        %v4591 = vunpack.c.h.b16 %v3458
        %v4592 = vunpack.c.l.b16 %v3459
        %v4593 = vunpack.c.h.b16 %v3459
        %v4594 = vunpack.c.l.b16 %v3460
        %v4595 = vunpack.c.h.b16 %v3460
        %v4596 = vunpack.c.l.b16 %v3461
        %v4597 = vunpack.c.h.b16 %v3461
        %v4598 = vunpack.c.l.b16 %v3462
        %v4599 = vunpack.c.h.b16 %v3462
        %v4600 = vunpack.c.l.b16 %v3463
        %v4601 = vunpack.c.h.b16 %v3463
        %v4602 = vunpack.c.l.b16 %v3464
        %v4603 = vunpack.c.h.b16 %v3464
        %v4604 = vunpack.c.l.b16 %v3465
        %v4605 = vunpack.c.h.b16 %v3465
        %v4606 = vunpack.c.l.b16 %v3466
        %v4607 = vunpack.c.h.b16 %v3466
        %v4608 = vunpack.c.l.b16 %v3467
        %v4609 = vunpack.c.h.b16 %v3467
        %v4610 = vunpack.c.l.b16 %v3468
        %v4611 = vunpack.c.h.b16 %v3468
        %v4612 = vunpack.c.l.b16 %v3469
        %v4613 = vunpack.c.h.b16 %v3469
        %v4614 = vunpack.c.l.b16 %v3470
        %v4615 = vunpack.c.h.b16 %v3470
        %v4616 = vunpack.c.l.b16 %v3471
        %v4617 = vunpack.c.h.b16 %v3471
        %v4618 = vunpack.c.l.b16 %v3472
        %v4619 = vunpack.c.h.b16 %v3472
        %v4620 = vunpack.c.l.b16 %v3473
        %v4621 = vunpack.c.h.b16 %v3473
        %v4622 = vunpack.c.l.b16 %v3474
        %v4623 = vunpack.c.h.b16 %v3474
        %v4624 = vunpack.c.l.b16 %v3475
        %v4625 = vunpack.c.h.b16 %v3475
        %v4626 = vunpack.c.l.b16 %v3476
        %v4627 = vunpack.c.h.b16 %v3476
        %v4628 = vunpack.c.l.b16 %v3477
        %v4629 = vunpack.c.h.b16 %v3477
        %v4630 = vunpack.c.l.b16 %v3478
        %v4631 = vunpack.c.h.b16 %v3478
        %v4632 = vunpack.c.l.b16 %v3479
        %v4633 = vunpack.c.h.b16 %v3479
        %v4634 = vunpack.c.l.b16 %v3480
        %v4635 = vunpack.c.h.b16 %v3480
        %v4636 = vunpack.c.l.b16 %v3481
        %v4637 = vunpack.c.h.b16 %v3481
        %v4638 = vunpack.c.l.b16 %v3482
        %v4639 = vunpack.c.h.b16 %v3482
        %v4640 = vunpack.c.l.b16 %v3483
        %v4641 = vunpack.c.h.b16 %v3483
        %v4642 = vunpack.c.l.b16 %v3484
        %v4643 = vunpack.c.h.b16 %v3484
        %v4644 = vunpack.c.l.b16 %v3485
        %v4645 = vunpack.c.h.b16 %v3485
        %v4646 = vunpack.c.l.b16 %v3486
        %v4647 = vunpack.c.h.b16 %v3486
        %v4648 = vunpack.c.l.b16 %v3487
        %v4649 = vunpack.c.h.b16 %v3487
        %v4650 = vunpack.c.l.b16 %v3488
        %v4651 = vunpack.c.h.b16 %v3488
        %v4652 = vunpack.c.l.b16 %v3489
        %v4653 = vunpack.c.h.b16 %v3489
        %v4654 = vunpack.c.l.b16 %v3490
        %v4655 = vunpack.c.h.b16 %v3490
        %v4656 = vunpack.c.l.b16 %v3491
        %v4657 = vunpack.c.h.b16 %v3491
        %v4658 = vunpack.c.l.b16 %v3492
        %v4659 = vunpack.c.h.b16 %v3492
        %v4660 = vunpack.c.l.b16 %v3493
        %v4661 = vunpack.c.h.b16 %v3493
        %v4662 = vunpack.c.l.b16 %v3494
        %v4663 = vunpack.c.h.b16 %v3494
        %v4664 = vunpack.c.l.b16 %v3495
        %v4665 = vunpack.c.h.b16 %v3495
        %v4666 = vunpack.c.l.b16 %v3496
        %v4667 = vunpack.c.h.b16 %v3496
        %v4668 = vunpack.c.l.b16 %v3497
        %v4669 = vunpack.c.h.b16 %v3497
        %v4670 = vunpack.c.l.b16 %v3498
        %v4671 = vunpack.c.h.b16 %v3498
        %v4672 = vunpack.c.l.b16 %v3499
        %v4673 = vunpack.c.h.b16 %v3499
        %v4674 = vunpack.c.l.b16 %v3500
        %v4675 = vunpack.c.h.b16 %v3500
        %v4676 = vunpack.c.l.b16 %v3501
        %v4677 = vunpack.c.h.b16 %v3501
        %v4678 = vunpack.c.l.b16 %v3502
        %v4679 = vunpack.c.h.b16 %v3502
        %v4680 = vunpack.c.l.b16 %v3503
        %v4681 = vunpack.c.h.b16 %v3503
        %v4682 = vunpack.c.l.b16 %v3504
        %v4683 = vunpack.c.h.b16 %v3504
        %v4684 = vunpack.c.l.b16 %v3505
        %v4685 = vunpack.c.h.b16 %v3505
        %v4686 = vunpack.c.l.b16 %v3506
        %v4687 = vunpack.c.h.b16 %v3506
        %v4688 = vunpack.c.l.b16 %v3507
        %v4689 = vunpack.c.h.b16 %v3507
        %v4690 = vunpack.c.l.b16 %v3508
        %v4691 = vunpack.c.h.b16 %v3508
        %v4692 = vunpack.c.l.b16 %v3509
        %v4693 = vunpack.c.h.b16 %v3509
        %v4694 = vunpack.c.l.b16 %v3510
        %v4695 = vunpack.c.h.b16 %v3510
        %v4696 = vunpack.c.l.b16 %v3511
        %v4697 = vunpack.c.h.b16 %v3511
        %v4698 = vunpack.c.l.b16 %v3512
        %v4699 = vunpack.c.h.b16 %v3512
        %v4700 = vunpack.c.l.b16 %v3513
        %v4701 = vunpack.c.h.b16 %v3513
        %v4702 = vunpack.c.l.b16 %v3514
        %v4703 = vunpack.c.h.b16 %v3514
        %v4704 = vunpack.c.l.b16 %v3515
        %v4705 = vunpack.c.h.b16 %v3515
        %v4706 = vunpack.c.l.b16 %v3516
        %v4707 = vunpack.c.h.b16 %v3516
        %v4708 = vunpack.c.l.b16 %v3517
        %v4709 = vunpack.c.h.b16 %v3517
        %v4710 = vunpack.c.l.b16 %v3518
        %v4711 = vunpack.c.h.b16 %v3518
        %v4712 = vunpack.c.l.b16 %v3519
        %v4713 = vunpack.c.h.b16 %v3519
        %v4714 = vunpack.c.l.b16 %v3520
        %v4715 = vunpack.c.h.b16 %v3520
        %v4716 = vunpack.c.l.b16 %v3521
        %v4717 = vunpack.c.h.b16 %v3521
        %v4718 = vunpack.c.l.b16 %v3522
        %v4719 = vunpack.c.h.b16 %v3522
        %v4720 = vunpack.c.l.b16 %v3523
        %v4721 = vunpack.c.h.b16 %v3523
        %v4722 = vunpack.c.l.b16 %v3524
        %v4723 = vunpack.c.h.b16 %v3524
        %v4724 = vunpack.c.l.b16 %v3525
        %v4725 = vunpack.c.h.b16 %v3525
        %v4726 = vunpack.c.l.b16 %v3526
        %v4727 = vunpack.c.h.b16 %v3526
        %v4728 = vunpack.c.l.b16 %v3527
        %v4729 = vunpack.c.h.b16 %v3527
        %v4730 = vunpack.c.l.b16 %v3528
        %v4731 = vunpack.c.h.b16 %v3528
        %v4732 = vunpack.c.l.b16 %v3529
        %v4733 = vunpack.c.h.b16 %v3529
        %v4734 = vunpack.c.l.b16 %v3530
        %v4735 = vunpack.c.h.b16 %v3530
        %v4736 = vunpack.c.l.b16 %v3531
        %v4737 = vunpack.c.h.b16 %v3531
        %v4738 = vunpack.c.l.b16 %v3532
        %v4739 = vunpack.c.h.b16 %v3532
        %v4740 = vunpack.c.l.b16 %v3533
        %v4741 = vunpack.c.h.b16 %v3533
        %v4742 = vunpack.c.l.b16 %v3534
        %v4743 = vunpack.c.h.b16 %v3534
        %v4744 = vunpack.c.l.b16 %v3535
        %v4745 = vunpack.c.h.b16 %v3535
        %v4746 = vunpack.c.l.b16 %v3536
        %v4747 = vunpack.c.h.b16 %v3536
        %v4748 = vunpack.c.l.b16 %v3537
        %v4749 = vunpack.c.h.b16 %v3537
        %v4750 = vunpack.c.l.b16 %v3538
        %v4751 = vunpack.c.h.b16 %v3538
        %v4752 = vunpack.c.l.b16 %v3539
        %v4753 = vunpack.c.h.b16 %v3539
        %v4754 = vunpack.c.l.b16 %v3540
        %v4755 = vunpack.c.h.b16 %v3540
        %v4756 = vunpack.c.l.b16 %v3541
        %v4757 = vunpack.c.h.b16 %v3541
        %v4758 = vunpack.c.l.b16 %v3542
        %v4759 = vunpack.c.h.b16 %v3542
        %v4760 = vunpack.c.l.b16 %v3543
        %v4761 = vunpack.c.h.b16 %v3543
        %v4762 = vunpack.c.l.b16 %v3544
        %v4763 = vunpack.c.h.b16 %v3544
        %v4764 = vunpack.c.l.b16 %v3545
        %v4765 = vunpack.c.h.b16 %v3545
        %v4766 = vunpack.c.l.b16 %v3546
        %v4767 = vunpack.c.h.b16 %v3546
        %v4768 = vunpack.c.l.b16 %v3547
        %v4769 = vunpack.c.h.b16 %v3547
        %v4770 = vunpack.c.l.b16 %v3548
        %v4771 = vunpack.c.h.b16 %v3548
        %v4772 = vunpack.c.l.b16 %v3549
        %v4773 = vunpack.c.h.b16 %v3549
        %v4774 = vunpack.c.l.b16 %v3550
        %v4775 = vunpack.c.h.b16 %v3550
        %v4776 = vunpack.c.l.b16 %v3551
        %v4777 = vunpack.c.h.b16 %v3551
        %v4778 = vunpack.c.l.b16 %v3552
        %v4779 = vunpack.c.h.b16 %v3552
        %v4780 = vunpack.c.l.b16 %v3553
        %v4781 = vunpack.c.h.b16 %v3553
        %v4782 = vunpack.c.l.b16 %v3554
        %v4783 = vunpack.c.h.b16 %v3554
        %v4784 = vunpack.c.l.b16 %v3555
        %v4785 = vunpack.c.h.b16 %v3555
        %v4786 = vunpack.c.l.b16 %v3556
        %v4787 = vunpack.c.h.b16 %v3556
        %v4788 = vunpack.c.l.b16 %v3557
        %v4789 = vunpack.c.h.b16 %v3557
        %v4790 = vunpack.c.l.b16 %v3558
        %v4791 = vunpack.c.h.b16 %v3558
        %v4792 = vunpack.c.l.b16 %v3559
        %v4793 = vunpack.c.h.b16 %v3559
        %v4794 = vunpack.c.l.b16 %v3560
        %v4795 = vunpack.c.h.b16 %v3560
        %v4796 = vunpack.c.l.b16 %v3561
        %v4797 = vunpack.c.h.b16 %v3561
        %v4798 = vunpack.c.l.b16 %v3562
        %v4799 = vunpack.c.h.b16 %v3562
        %v4800 = vunpack.c.l.b16 %v3563
        %v4801 = vunpack.c.h.b16 %v3563
        %v4802 = vunpack.c.l.b16 %v3564
        %v4803 = vunpack.c.h.b16 %v3564
        %v4804 = vunpack.c.l.b16 %v3565
        %v4805 = vunpack.c.h.b16 %v3565
        %v4806 = vunpack.c.l.b16 %v3566
        %v4807 = vunpack.c.h.b16 %v3566
        %v4808 = vunpack.c.l.b16 %v3567
        %v4809 = vunpack.c.h.b16 %v3567
        %v4810 = vunpack.c.l.b16 %v3568
        %v4811 = vunpack.c.h.b16 %v3568
        %v4812 = vunpack.c.l.b16 %v3569
        %v4813 = vunpack.c.h.b16 %v3569
        %v4814 = vunpack.c.l.b16 %v3570
        %v4815 = vunpack.c.h.b16 %v3570
        %v4816 = vunpack.c.l.b16 %v3571
        %v4817 = vunpack.c.h.b16 %v3571
        %v4818 = vunpack.c.l.b16 %v3572
        %v4819 = vunpack.c.h.b16 %v3572
        %v4820 = vunpack.c.l.b16 %v3573
        %v4821 = vunpack.c.h.b16 %v3573
        %v4822 = vunpack.c.l.b16 %v3574
        %v4823 = vunpack.c.h.b16 %v3574
        %v4824 = vunpack.c.l.b16 %v3575
        %v4825 = vunpack.c.h.b16 %v3575
        %v4826 = vunpack.c.l.b16 %v3576
        %v4827 = vunpack.c.h.b16 %v3576
        %v4828 = vunpack.c.l.b16 %v3577
        %v4829 = vunpack.c.h.b16 %v3577
        %v4830 = vunpack.c.l.b16 %v3578
        %v4831 = vunpack.c.h.b16 %v3578
        %v4832 = vunpack.c.l.b16 %v3579
        %v4833 = vunpack.c.h.b16 %v3579
        %v4834 = vunpack.c.l.b16 %v3580
        %v4835 = vunpack.c.h.b16 %v3580
        %v4836 = vunpack.c.l.b16 %v3581
        %v4837 = vunpack.c.h.b16 %v3581
        %v4838 = vunpack.c.l.b16 %v3582
        %v4839 = vunpack.c.h.b16 %v3582
        %v4840 = vunpack.c.l.b16 %v3583
        %v4841 = vunpack.c.h.b16 %v3583
        %v4842 = vunpack.c.l.b16 %v3584
        %v4843 = vunpack.c.h.b16 %v3584
        %v4844 = vunpack.c.l.b16 %v3585
        %v4845 = vunpack.c.h.b16 %v3585
        %v4846 = vunpack.c.l.b16 %v3586
        %v4847 = vunpack.c.h.b16 %v3586
        %v4848 = vunpack.c.l.b16 %v3587
        %v4849 = vunpack.c.h.b16 %v3587
        %v4850 = vunpack.c.l.b16 %v3588
        %v4851 = vunpack.c.h.b16 %v3588
        %v4852 = vunpack.c.l.b16 %v3589
        %v4853 = vunpack.c.h.b16 %v3589
        %v4854 = vunpack.c.l.b16 %v3590
        %v4855 = vunpack.c.h.b16 %v3590
        %v4856 = vunpack.c.l.b16 %v3591
        %v4857 = vunpack.c.h.b16 %v3591
        %v4858 = vunpack.c.l.b16 %v3592
        %v4859 = vunpack.c.h.b16 %v3592
        %v4860 = vunpack.c.l.b16 %v3593
        %v4861 = vunpack.c.h.b16 %v3593
        %v4862 = vunpack.c.l.b16 %v3594
        %v4863 = vunpack.c.h.b16 %v3594
        %v4864 = vunpack.c.l.b16 %v3595
        %v4865 = vunpack.c.h.b16 %v3595
        %v4866 = vunpack.c.l.b16 %v3596
        %v4867 = vunpack.c.h.b16 %v3596
        %v4868 = vunpack.c.l.b16 %v3597
        %v4869 = vunpack.c.h.b16 %v3597
        %v4870 = vunpack.c.l.b16 %v3598
        %v4871 = vunpack.c.h.b16 %v3598
        %v4872 = vunpack.c.l.b16 %v3599
        %v4873 = vunpack.c.h.b16 %v3599
        %v4874 = vunpack.c.l.b16 %v3600
        %v4875 = vunpack.c.h.b16 %v3600
        %v4876 = vunpack.c.l.b16 %v3601
        %v4877 = vunpack.c.h.b16 %v3601
        %v4878 = vunpack.c.l.b16 %v3602
        %v4879 = vunpack.c.h.b16 %v3602
        %v4880 = vunpack.c.l.b16 %v3603
        %v4881 = vunpack.c.h.b16 %v3603
        %v4882 = vunpack.c.l.b16 %v3604
        %v4883 = vunpack.c.h.b16 %v3604
        %v4884 = vunpack.c.l.b16 %v3605
        %v4885 = vunpack.c.h.b16 %v3605
        %v4886 = vunpack.c.l.b16 %v3606
        %v4887 = vunpack.c.h.b16 %v3606
        %v4888 = vunpack.c.l.b16 %v3607
        %v4889 = vunpack.c.h.b16 %v3607
        %v4890 = vunpack.c.l.b16 %v3608
        %v4891 = vunpack.c.h.b16 %v3608
        %v4892 = vunpack.c.l.b16 %v3609
        %v4893 = vunpack.c.h.b16 %v3609
        %v4894 = vunpack.c.l.b16 %v3610
        %v4895 = vunpack.c.h.b16 %v3610
        %v4896 = vunpack.c.l.b16 %v3611
        %v4897 = vunpack.c.h.b16 %v3611
        %v4898 = vunpack.c.l.b16 %v3612
        %v4899 = vunpack.c.h.b16 %v3612
        %v4900 = vunpack.c.l.b16 %v3613
        %v4901 = vunpack.c.h.b16 %v3613
        %v4902 = vunpack.c.l.b16 %v3614
        %v4903 = vunpack.c.h.b16 %v3614
        %v4904 = vunpack.c.l.b16 %v3615
        %v4905 = vunpack.c.h.b16 %v3615
        %v4906 = vunpack.c.l.b16 %v3616
        %v4907 = vunpack.c.h.b16 %v3616
        %v4908 = vunpack.c.l.b16 %v3617
        %v4909 = vunpack.c.h.b16 %v3617
        %v4910 = vunpack.c.l.b16 %v3618
        %v4911 = vunpack.c.h.b16 %v3618
        %v4912 = vunpack.c.l.b16 %v3619
        %v4913 = vunpack.c.h.b16 %v3619
        %v4914 = vunpack.c.l.b16 %v3620
        %v4915 = vunpack.c.h.b16 %v3620
        %v4916 = vunpack.c.l.b16 %v3621
        %v4917 = vunpack.c.h.b16 %v3621
        %v4918 = vunpack.c.l.b16 %v3622
        %v4919 = vunpack.c.h.b16 %v3622
        %v4920 = vunpack.c.l.b16 %v3623
        %v4921 = vunpack.c.h.b16 %v3623
        %v4922 = vunpack.c.l.b16 %v3624
        %v4923 = vunpack.c.h.b16 %v3624
        %v4924 = vunpack.c.l.b16 %v3625
        %v4925 = vunpack.c.h.b16 %v3625
        %v4926 = vunpack.c.l.b16 %v3626
        %v4927 = vunpack.c.h.b16 %v3626
        %v4928 = vunpack.c.l.b16 %v3627
        %v4929 = vunpack.c.h.b16 %v3627
        %v4930 = vunpack.c.l.b16 %v3628
        %v4931 = vunpack.c.h.b16 %v3628
        %v4932 = vunpack.c.l.b16 %v3629
        %v4933 = vunpack.c.h.b16 %v3629
        %v4934 = vunpack.c.l.b16 %v3630
        %v4935 = vunpack.c.h.b16 %v3630
        %v4936 = vunpack.c.l.b16 %v3631
        %v4937 = vunpack.c.h.b16 %v3631
        %v4938 = vunpack.c.l.b16 %v3632
        %v4939 = vunpack.c.h.b16 %v3632
        %v4940 = vunpack.c.l.b16 %v3633
        %v4941 = vunpack.c.h.b16 %v3633
        %v4942 = vunpack.c.l.b16 %v3634
        %v4943 = vunpack.c.h.b16 %v3634
        %v4944 = vunpack.c.l.b16 %v3635
        %v4945 = vunpack.c.h.b16 %v3635
        %v4946 = vunpack.c.l.b16 %v3636
        %v4947 = vunpack.c.h.b16 %v3636
        %v4948 = vunpack.c.l.b16 %v3637
        %v4949 = vunpack.c.h.b16 %v3637
        %v4950 = vunpack.c.l.b16 %v3638
        %v4951 = vunpack.c.h.b16 %v3638
        %v4952 = vunpack.c.l.b16 %v3639
        %v4953 = vunpack.c.h.b16 %v3639
        %v4954 = vunpack.c.l.b16 %v3640
        %v4955 = vunpack.c.h.b16 %v3640
        %v4956 = vunpack.c.l.b16 %v3641
        %v4957 = vunpack.c.h.b16 %v3641
        %v4958 = vunpack.c.l.b16 %v3642
        %v4959 = vunpack.c.h.b16 %v3642
        %v4960 = vunpack.c.l.b16 %v3643
        %v4961 = vunpack.c.h.b16 %v3643
        %v4962 = vunpack.c.l.b16 %v3644
        %v4963 = vunpack.c.h.b16 %v3644
        %v4964 = vunpack.c.l.b16 %v3645
        %v4965 = vunpack.c.h.b16 %v3645
        %v4966 = vunpack.c.l.b16 %v3646
        %v4967 = vunpack.c.h.b16 %v3646
        %v4968 = vunpack.c.l.b16 %v3647
        %v4969 = vunpack.c.h.b16 %v3647
        %v4970 = vunpack.c.l.b16 %v3648
        %v4971 = vunpack.c.h.b16 %v3648
        %v4972 = vunpack.c.l.b16 %v3649
        %v4973 = vunpack.c.h.b16 %v3649
        %v4974 = vunpack.c.l.b16 %v3650
        %v4975 = vunpack.c.h.b16 %v3650
        %v4976 = vunpack.c.l.b16 %v3651
        %v4977 = vunpack.c.h.b16 %v3651
        %v4978 = vunpack.c.l.b16 %v3652
        %v4979 = vunpack.c.h.b16 %v3652
        %v4980 = vunpack.c.l.b16 %v3653
        %v4981 = vunpack.c.h.b16 %v3653
        %v4982 = vunpack.c.l.b16 %v3654
        %v4983 = vunpack.c.h.b16 %v3654
        %v4984 = vunpack.c.l.b16 %v3655
        %v4985 = vunpack.c.h.b16 %v3655
        %v4986 = vunpack.c.l.b16 %v3656
        %v4987 = vunpack.c.h.b16 %v3656
        %v4988 = vunpack.c.l.b16 %v3657
        %v4989 = vunpack.c.h.b16 %v3657
        %v4990 = vunpack.c.l.b16 %v3658
        %v4991 = vunpack.c.h.b16 %v3658
        %v4992 = vunpack.c.l.b16 %v3659
        %v4993 = vunpack.c.h.b16 %v3659
        %v4994 = vunpack.c.l.b16 %v3660
        %v4995 = vunpack.c.h.b16 %v3660
        %v4996 = vunpack.c.l.b16 %v3661
        %v4997 = vunpack.c.h.b16 %v3661
        %v4998 = vunpack.c.l.b16 %v3662
        %v4999 = vunpack.c.h.b16 %v3662
        %v5000 = vunpack.c.l.b16 %v3663
        %v5001 = vunpack.c.h.b16 %v3663
        %v5002 = vunpack.c.l.b16 %v3664
        %v5003 = vunpack.c.h.b16 %v3664
        %v5004 = vunpack.c.l.b16 %v3665
        %v5005 = vunpack.c.h.b16 %v3665
        %v5006 = vunpack.c.l.b16 %v3666
        %v5007 = vunpack.c.h.b16 %v3666
        %v5008 = vunpack.c.l.b16 %v3667
        %v5009 = vunpack.c.h.b16 %v3667
        %v5010 = vunpack.c.l.b16 %v3668
        %v5011 = vunpack.c.h.b16 %v3668
        %v5012 = vunpack.c.l.b16 %v3669
        %v5013 = vunpack.c.h.b16 %v3669
        %v5014 = vpack.c.b16 %v4126, %v4118
        %v5015 = vpack.c.b16 %v4127, %v4119
        %v5016 = vpack.c.b16 %v4128, %v4120
        %v5017 = vpack.c.b16 %v4129, %v4121
        %v5018 = vpack.c.b16 %v4130, %v4122
        %v5019 = vpack.c.b16 %v4131, %v4123
        %v5020 = vpack.c.b16 %v4132, %v4124
        %v5021 = vpack.c.b16 %v4133, %v4125
        %v5022 = vpack.c.b16 %v4142, %v4134
        %v5023 = vpack.c.b16 %v4143, %v4135
        %v5024 = vpack.c.b16 %v4144, %v4136
        %v5025 = vpack.c.b16 %v4145, %v4137
        %v5026 = vpack.c.b16 %v4146, %v4138
        %v5027 = vpack.c.b16 %v4147, %v4139
        %v5028 = vpack.c.b16 %v4148, %v4140
        %v5029 = vpack.c.b16 %v4149, %v4141
        %v5030 = vpack.c.b16 %v4158, %v4150
        %v5031 = vpack.c.b16 %v4159, %v4151
        %v5032 = vpack.c.b16 %v4160, %v4152
        %v5033 = vpack.c.b16 %v4161, %v4153
        %v5034 = vpack.c.b16 %v4162, %v4154
        %v5035 = vpack.c.b16 %v4163, %v4155
        %v5036 = vpack.c.b16 %v4164, %v4156
        %v5037 = vpack.c.b16 %v4165, %v4157
        %v5038 = vpack.c.b16 %v4174, %v4166
        %v5039 = vpack.c.b16 %v4175, %v4167
        %v5040 = vpack.c.b16 %v4176, %v4168
        %v5041 = vpack.c.b16 %v4177, %v4169
        %v5042 = vpack.c.b16 %v4178, %v4170
        %v5043 = vpack.c.b16 %v4179, %v4171
        %v5044 = vpack.c.b16 %v4180, %v4172
        %v5045 = vpack.c.b16 %v4181, %v4173
        %v5046 = vpack.c.b16 %v4190, %v4182
        %v5047 = vpack.c.b16 %v4191, %v4183
        %v5048 = vpack.c.b16 %v4192, %v4184
        %v5049 = vpack.c.b16 %v4193, %v4185
        %v5050 = vpack.c.b16 %v4194, %v4186
        %v5051 = vpack.c.b16 %v4195, %v4187
        %v5052 = vpack.c.b16 %v4196, %v4188
        %v5053 = vpack.c.b16 %v4197, %v4189
        %v5054 = vpack.c.b16 %v4206, %v4198
        %v5055 = vpack.c.b16 %v4207, %v4199
        %v5056 = vpack.c.b16 %v4208, %v4200
        %v5057 = vpack.c.b16 %v4209, %v4201
        %v5058 = vpack.c.b16 %v4210, %v4202
        %v5059 = vpack.c.b16 %v4211, %v4203
        %v5060 = vpack.c.b16 %v4212, %v4204
        %v5061 = vpack.c.b16 %v4213, %v4205
        %v5062 = vpack.c.b16 %v4222, %v4214
        %v5063 = vpack.c.b16 %v4223, %v4215
        %v5064 = vpack.c.b16 %v4224, %v4216
        %v5065 = vpack.c.b16 %v4225, %v4217
        %v5066 = vpack.c.b16 %v4226, %v4218
        %v5067 = vpack.c.b16 %v4227, %v4219
        %v5068 = vpack.c.b16 %v4228, %v4220
        %v5069 = vpack.c.b16 %v4229, %v4221
        %v5070 = vpack.c.b16 %v4238, %v4230
        %v5071 = vpack.c.b16 %v4239, %v4231
        %v5072 = vpack.c.b16 %v4240, %v4232
        %v5073 = vpack.c.b16 %v4241, %v4233
        %v5074 = vpack.c.b16 %v4242, %v4234
        %v5075 = vpack.c.b16 %v4243, %v4235
        %v5076 = vpack.c.b16 %v4244, %v4236
        %v5077 = vpack.c.b16 %v4245, %v4237
        %v5078 = vpack.c.b16 %v4254, %v4246
        %v5079 = vpack.c.b16 %v4255, %v4247
        %v5080 = vpack.c.b16 %v4256, %v4248
        %v5081 = vpack.c.b16 %v4257, %v4249
        %v5082 = vpack.c.b16 %v4258, %v4250
        %v5083 = vpack.c.b16 %v4259, %v4251
        %v5084 = vpack.c.b16 %v4260, %v4252
        %v5085 = vpack.c.b16 %v4261, %v4253
        %v5086 = vpack.c.b16 %v4270, %v4262
        %v5087 = vpack.c.b16 %v4271, %v4263
        %v5088 = vpack.c.b16 %v4272, %v4264
        %v5089 = vpack.c.b16 %v4273, %v4265
        %v5090 = vpack.c.b16 %v4274, %v4266
        %v5091 = vpack.c.b16 %v4275, %v4267
        %v5092 = vpack.c.b16 %v4276, %v4268
        %v5093 = vpack.c.b16 %v4277, %v4269
        %v5094 = vpack.c.b16 %v4286, %v4278
        %v5095 = vpack.c.b16 %v4287, %v4279
        %v5096 = vpack.c.b16 %v4288, %v4280
        %v5097 = vpack.c.b16 %v4289, %v4281
        %v5098 = vpack.c.b16 %v4290, %v4282
        %v5099 = vpack.c.b16 %v4291, %v4283
        %v5100 = vpack.c.b16 %v4292, %v4284
        %v5101 = vpack.c.b16 %v4293, %v4285
        %v5102 = vpack.c.b16 %v4302, %v4294
        %v5103 = vpack.c.b16 %v4303, %v4295
        %v5104 = vpack.c.b16 %v4304, %v4296
        %v5105 = vpack.c.b16 %v4305, %v4297
        %v5106 = vpack.c.b16 %v4306, %v4298
        %v5107 = vpack.c.b16 %v4307, %v4299
        %v5108 = vpack.c.b16 %v4308, %v4300
        %v5109 = vpack.c.b16 %v4309, %v4301
        %v5110 = vpack.c.b16 %v4318, %v4310
        %v5111 = vpack.c.b16 %v4319, %v4311
        %v5112 = vpack.c.b16 %v4320, %v4312
        %v5113 = vpack.c.b16 %v4321, %v4313
        %v5114 = vpack.c.b16 %v4322, %v4314
        %v5115 = vpack.c.b16 %v4323, %v4315
        %v5116 = vpack.c.b16 %v4324, %v4316
        %v5117 = vpack.c.b16 %v4325, %v4317
        %v5118 = vpack.c.b16 %v4334, %v4326
        %v5119 = vpack.c.b16 %v4335, %v4327
        %v5120 = vpack.c.b16 %v4336, %v4328
        %v5121 = vpack.c.b16 %v4337, %v4329
        %v5122 = vpack.c.b16 %v4338, %v4330
        %v5123 = vpack.c.b16 %v4339, %v4331
        %v5124 = vpack.c.b16 %v4340, %v4332
        %v5125 = vpack.c.b16 %v4341, %v4333
        %v5126 = vpack.c.b16 %v4350, %v4342
        %v5127 = vpack.c.b16 %v4351, %v4343
        %v5128 = vpack.c.b16 %v4352, %v4344
        %v5129 = vpack.c.b16 %v4353, %v4345
        %v5130 = vpack.c.b16 %v4354, %v4346
        %v5131 = vpack.c.b16 %v4355, %v4347
        %v5132 = vpack.c.b16 %v4356, %v4348
        %v5133 = vpack.c.b16 %v4357, %v4349
        %v5134 = vpack.c.b16 %v4366, %v4358
        %v5135 = vpack.c.b16 %v4367, %v4359
        %v5136 = vpack.c.b16 %v4368, %v4360
        %v5137 = vpack.c.b16 %v4369, %v4361
        %v5138 = vpack.c.b16 %v4370, %v4362
        %v5139 = vpack.c.b16 %v4371, %v4363
        %v5140 = vpack.c.b16 %v4372, %v4364
        %v5141 = vpack.c.b16 %v4373, %v4365
        %v5142 = vpack.c.b16 %v4382, %v4374
        %v5143 = vpack.c.b16 %v4383, %v4375
        %v5144 = vpack.c.b16 %v4384, %v4376
        %v5145 = vpack.c.b16 %v4385, %v4377
        %v5146 = vpack.c.b16 %v4386, %v4378
        %v5147 = vpack.c.b16 %v4387, %v4379
        %v5148 = vpack.c.b16 %v4388, %v4380
        %v5149 = vpack.c.b16 %v4389, %v4381
        %v5150 = vpack.c.b16 %v4398, %v4390
        %v5151 = vpack.c.b16 %v4399, %v4391
        %v5152 = vpack.c.b16 %v4400, %v4392
        %v5153 = vpack.c.b16 %v4401, %v4393
        %v5154 = vpack.c.b16 %v4402, %v4394
        %v5155 = vpack.c.b16 %v4403, %v4395
        %v5156 = vpack.c.b16 %v4404, %v4396
        %v5157 = vpack.c.b16 %v4405, %v4397
        %v5158 = vpack.c.b16 %v4414, %v4406
        %v5159 = vpack.c.b16 %v4415, %v4407
        %v5160 = vpack.c.b16 %v4416, %v4408
        %v5161 = vpack.c.b16 %v4417, %v4409
        %v5162 = vpack.c.b16 %v4418, %v4410
        %v5163 = vpack.c.b16 %v4419, %v4411
        %v5164 = vpack.c.b16 %v4420, %v4412
        %v5165 = vpack.c.b16 %v4421, %v4413
        %v5166 = vpack.c.b16 %v4430, %v4422
        %v5167 = vpack.c.b16 %v4431, %v4423
        %v5168 = vpack.c.b16 %v4432, %v4424
        %v5169 = vpack.c.b16 %v4433, %v4425
        %v5170 = vpack.c.b16 %v4434, %v4426
        %v5171 = vpack.c.b16 %v4435, %v4427
        %v5172 = vpack.c.b16 %v4436, %v4428
        %v5173 = vpack.c.b16 %v4437, %v4429
        %v5174 = vpack.c.b16 %v4446, %v4438
        %v5175 = vpack.c.b16 %v4447, %v4439
        %v5176 = vpack.c.b16 %v4448, %v4440
        %v5177 = vpack.c.b16 %v4449, %v4441
        %v5178 = vpack.c.b16 %v4450, %v4442
        %v5179 = vpack.c.b16 %v4451, %v4443
        %v5180 = vpack.c.b16 %v4452, %v4444
        %v5181 = vpack.c.b16 %v4453, %v4445
        %v5182 = vpack.c.b16 %v4462, %v4454
        %v5183 = vpack.c.b16 %v4463, %v4455
        %v5184 = vpack.c.b16 %v4464, %v4456
        %v5185 = vpack.c.b16 %v4465, %v4457
        %v5186 = vpack.c.b16 %v4466, %v4458
        %v5187 = vpack.c.b16 %v4467, %v4459
        %v5188 = vpack.c.b16 %v4468, %v4460
        %v5189 = vpack.c.b16 %v4469, %v4461
        %v5190 = vpack.c.b16 %v4478, %v4470
        %v5191 = vpack.c.b16 %v4479, %v4471
        %v5192 = vpack.c.b16 %v4480, %v4472
        %v5193 = vpack.c.b16 %v4481, %v4473
        %v5194 = vpack.c.b16 %v4482, %v4474
        %v5195 = vpack.c.b16 %v4483, %v4475
        %v5196 = vpack.c.b16 %v4484, %v4476
        %v5197 = vpack.c.b16 %v4485, %v4477
        %v5198 = vpack.c.b16 %v4494, %v4486
        %v5199 = vpack.c.b16 %v4495, %v4487
        %v5200 = vpack.c.b16 %v4496, %v4488
        %v5201 = vpack.c.b16 %v4497, %v4489
        %v5202 = vpack.c.b16 %v4498, %v4490
        %v5203 = vpack.c.b16 %v4499, %v4491
        %v5204 = vpack.c.b16 %v4500, %v4492
        %v5205 = vpack.c.b16 %v4501, %v4493
        %v5206 = vpack.c.b16 %v4510, %v4502
        %v5207 = vpack.c.b16 %v4511, %v4503
        %v5208 = vpack.c.b16 %v4512, %v4504
        %v5209 = vpack.c.b16 %v4513, %v4505
        %v5210 = vpack.c.b16 %v4514, %v4506
        %v5211 = vpack.c.b16 %v4515, %v4507
        %v5212 = vpack.c.b16 %v4516, %v4508
        %v5213 = vpack.c.b16 %v4517, %v4509
        %v5214 = vpack.c.b16 %v4526, %v4518
        %v5215 = vpack.c.b16 %v4527, %v4519
        %v5216 = vpack.c.b16 %v4528, %v4520
        %v5217 = vpack.c.b16 %v4529, %v4521
        %v5218 = vpack.c.b16 %v4530, %v4522
        %v5219 = vpack.c.b16 %v4531, %v4523
        %v5220 = vpack.c.b16 %v4532, %v4524
        %v5221 = vpack.c.b16 %v4533, %v4525
        %v5222 = vpack.c.b16 %v4542, %v4534
        %v5223 = vpack.c.b16 %v4543, %v4535
        %v5224 = vpack.c.b16 %v4544, %v4536
        %v5225 = vpack.c.b16 %v4545, %v4537
        %v5226 = vpack.c.b16 %v4546, %v4538
        %v5227 = vpack.c.b16 %v4547, %v4539
        %v5228 = vpack.c.b16 %v4548, %v4540
        %v5229 = vpack.c.b16 %v4549, %v4541
        %v5230 = vpack.c.b16 %v4558, %v4550
        %v5231 = vpack.c.b16 %v4559, %v4551
        %v5232 = vpack.c.b16 %v4560, %v4552
        %v5233 = vpack.c.b16 %v4561, %v4553
        %v5234 = vpack.c.b16 %v4562, %v4554
        %v5235 = vpack.c.b16 %v4563, %v4555
        %v5236 = vpack.c.b16 %v4564, %v4556
        %v5237 = vpack.c.b16 %v4565, %v4557
        %v5238 = vpack.c.b16 %v4574, %v4566
        %v5239 = vpack.c.b16 %v4575, %v4567
        %v5240 = vpack.c.b16 %v4576, %v4568
        %v5241 = vpack.c.b16 %v4577, %v4569
        %v5242 = vpack.c.b16 %v4578, %v4570
        %v5243 = vpack.c.b16 %v4579, %v4571
        %v5244 = vpack.c.b16 %v4580, %v4572
        %v5245 = vpack.c.b16 %v4581, %v4573
        %v5246 = vpack.c.b16 %v4590, %v4582
        %v5247 = vpack.c.b16 %v4591, %v4583
        %v5248 = vpack.c.b16 %v4592, %v4584
        %v5249 = vpack.c.b16 %v4593, %v4585
        %v5250 = vpack.c.b16 %v4594, %v4586
        %v5251 = vpack.c.b16 %v4595, %v4587
        %v5252 = vpack.c.b16 %v4596, %v4588
        %v5253 = vpack.c.b16 %v4597, %v4589
        %v5254 = vpack.c.b16 %v4606, %v4598
        %v5255 = vpack.c.b16 %v4607, %v4599
        %v5256 = vpack.c.b16 %v4608, %v4600
        %v5257 = vpack.c.b16 %v4609, %v4601
        %v5258 = vpack.c.b16 %v4610, %v4602
        %v5259 = vpack.c.b16 %v4611, %v4603
        %v5260 = vpack.c.b16 %v4612, %v4604
        %v5261 = vpack.c.b16 %v4613, %v4605
        %v5262 = vpack.c.b16 %v4622, %v4614
        %v5263 = vpack.c.b16 %v4623, %v4615
        %v5264 = vpack.c.b16 %v4624, %v4616
        %v5265 = vpack.c.b16 %v4625, %v4617
        %v5266 = vpack.c.b16 %v4626, %v4618
        %v5267 = vpack.c.b16 %v4627, %v4619
        %v5268 = vpack.c.b16 %v4628, %v4620
        %v5269 = vpack.c.b16 %v4629, %v4621
        %v5270 = vpack.c.b16 %v4638, %v4630
        %v5271 = vpack.c.b16 %v4639, %v4631
        %v5272 = vpack.c.b16 %v4640, %v4632
        %v5273 = vpack.c.b16 %v4641, %v4633
        %v5274 = vpack.c.b16 %v4642, %v4634
        %v5275 = vpack.c.b16 %v4643, %v4635
        %v5276 = vpack.c.b16 %v4644, %v4636
        %v5277 = vpack.c.b16 %v4645, %v4637
        %v5278 = vpack.c.b16 %v4654, %v4646
        %v5279 = vpack.c.b16 %v4655, %v4647
        %v5280 = vpack.c.b16 %v4656, %v4648
        %v5281 = vpack.c.b16 %v4657, %v4649
        %v5282 = vpack.c.b16 %v4658, %v4650
        %v5283 = vpack.c.b16 %v4659, %v4651
        %v5284 = vpack.c.b16 %v4660, %v4652
        %v5285 = vpack.c.b16 %v4661, %v4653
        %v5286 = vpack.c.b16 %v4670, %v4662
        %v5287 = vpack.c.b16 %v4671, %v4663
        %v5288 = vpack.c.b16 %v4672, %v4664
        %v5289 = vpack.c.b16 %v4673, %v4665
        %v5290 = vpack.c.b16 %v4674, %v4666
        %v5291 = vpack.c.b16 %v4675, %v4667
        %v5292 = vpack.c.b16 %v4676, %v4668
        %v5293 = vpack.c.b16 %v4677, %v4669
        %v5294 = vpack.c.b16 %v4686, %v4678
        %v5295 = vpack.c.b16 %v4687, %v4679
        %v5296 = vpack.c.b16 %v4688, %v4680
        %v5297 = vpack.c.b16 %v4689, %v4681
        %v5298 = vpack.c.b16 %v4690, %v4682
        %v5299 = vpack.c.b16 %v4691, %v4683
        %v5300 = vpack.c.b16 %v4692, %v4684
        %v5301 = vpack.c.b16 %v4693, %v4685
        %v5302 = vpack.c.b16 %v4702, %v4694
        %v5303 = vpack.c.b16 %v4703, %v4695
        %v5304 = vpack.c.b16 %v4704, %v4696
        %v5305 = vpack.c.b16 %v4705, %v4697
        %v5306 = vpack.c.b16 %v4706, %v4698
        %v5307 = vpack.c.b16 %v4707, %v4699
        %v5308 = vpack.c.b16 %v4708, %v4700
        %v5309 = vpack.c.b16 %v4709, %v4701
        %v5310 = vpack.c.b16 %v4718, %v4710
        %v5311 = vpack.c.b16 %v4719, %v4711
        %v5312 = vpack.c.b16 %v4720, %v4712
        %v5313 = vpack.c.b16 %v4721, %v4713
        %v5314 = vpack.c.b16 %v4722, %v4714
        %v5315 = vpack.c.b16 %v4723, %v4715
        %v5316 = vpack.c.b16 %v4724, %v4716
        %v5317 = vpack.c.b16 %v4725, %v4717
        %v5318 = vpack.c.b16 %v4734, %v4726
        %v5319 = vpack.c.b16 %v4735, %v4727
        %v5320 = vpack.c.b16 %v4736, %v4728
        %v5321 = vpack.c.b16 %v4737, %v4729
        %v5322 = vpack.c.b16 %v4738, %v4730
        %v5323 = vpack.c.b16 %v4739, %v4731
        %v5324 = vpack.c.b16 %v4740, %v4732
        %v5325 = vpack.c.b16 %v4741, %v4733
        %v5326 = vpack.c.b16 %v4750, %v4742
        %v5327 = vpack.c.b16 %v4751, %v4743
        %v5328 = vpack.c.b16 %v4752, %v4744
        %v5329 = vpack.c.b16 %v4753, %v4745
        %v5330 = vpack.c.b16 %v4754, %v4746
        %v5331 = vpack.c.b16 %v4755, %v4747
        %v5332 = vpack.c.b16 %v4756, %v4748
        %v5333 = vpack.c.b16 %v4757, %v4749
        %v5334 = vpack.c.b16 %v4766, %v4758
        %v5335 = vpack.c.b16 %v4767, %v4759
        %v5336 = vpack.c.b16 %v4768, %v4760
        %v5337 = vpack.c.b16 %v4769, %v4761
        %v5338 = vpack.c.b16 %v4770, %v4762
        %v5339 = vpack.c.b16 %v4771, %v4763
        %v5340 = vpack.c.b16 %v4772, %v4764
        %v5341 = vpack.c.b16 %v4773, %v4765
        %v5342 = vpack.c.b16 %v4782, %v4774
        %v5343 = vpack.c.b16 %v4783, %v4775
        %v5344 = vpack.c.b16 %v4784, %v4776
        %v5345 = vpack.c.b16 %v4785, %v4777
        %v5346 = vpack.c.b16 %v4786, %v4778
        %v5347 = vpack.c.b16 %v4787, %v4779
        %v5348 = vpack.c.b16 %v4788, %v4780
        %v5349 = vpack.c.b16 %v4789, %v4781
        %v5350 = vpack.c.b16 %v4798, %v4790
        %v5351 = vpack.c.b16 %v4799, %v4791
        %v5352 = vpack.c.b16 %v4800, %v4792
        %v5353 = vpack.c.b16 %v4801, %v4793
        %v5354 = vpack.c.b16 %v4802, %v4794
        %v5355 = vpack.c.b16 %v4803, %v4795
        %v5356 = vpack.c.b16 %v4804, %v4796
        %v5357 = vpack.c.b16 %v4805, %v4797
        %v5358 = vpack.c.b16 %v4814, %v4806
        %v5359 = vpack.c.b16 %v4815, %v4807
        %v5360 = vpack.c.b16 %v4816, %v4808
        %v5361 = vpack.c.b16 %v4817, %v4809
        %v5362 = vpack.c.b16 %v4818, %v4810
        %v5363 = vpack.c.b16 %v4819, %v4811
        %v5364 = vpack.c.b16 %v4820, %v4812
        %v5365 = vpack.c.b16 %v4821, %v4813
        %v5366 = vpack.c.b16 %v4830, %v4822
        %v5367 = vpack.c.b16 %v4831, %v4823
        %v5368 = vpack.c.b16 %v4832, %v4824
        %v5369 = vpack.c.b16 %v4833, %v4825
        %v5370 = vpack.c.b16 %v4834, %v4826
        %v5371 = vpack.c.b16 %v4835, %v4827
        %v5372 = vpack.c.b16 %v4836, %v4828
        %v5373 = vpack.c.b16 %v4837, %v4829
        %v5374 = vpack.c.b16 %v4846, %v4838
        %v5375 = vpack.c.b16 %v4847, %v4839
        %v5376 = vpack.c.b16 %v4848, %v4840
        %v5377 = vpack.c.b16 %v4849, %v4841
        %v5378 = vpack.c.b16 %v4850, %v4842
        %v5379 = vpack.c.b16 %v4851, %v4843
        %v5380 = vpack.c.b16 %v4852, %v4844
        %v5381 = vpack.c.b16 %v4853, %v4845
        %v5382 = vpack.c.b16 %v4862, %v4854
        %v5383 = vpack.c.b16 %v4863, %v4855
        %v5384 = vpack.c.b16 %v4864, %v4856
        %v5385 = vpack.c.b16 %v4865, %v4857
        %v5386 = vpack.c.b16 %v4866, %v4858
        %v5387 = vpack.c.b16 %v4867, %v4859
        %v5388 = vpack.c.b16 %v4868, %v4860
        %v5389 = vpack.c.b16 %v4869, %v4861
        %v5390 = vpack.c.b16 %v4878, %v4870
        %v5391 = vpack.c.b16 %v4879, %v4871
        %v5392 = vpack.c.b16 %v4880, %v4872
        %v5393 = vpack.c.b16 %v4881, %v4873
        %v5394 = vpack.c.b16 %v4882, %v4874
        %v5395 = vpack.c.b16 %v4883, %v4875
        %v5396 = vpack.c.b16 %v4884, %v4876
        %v5397 = vpack.c.b16 %v4885, %v4877
        %v5398 = vpack.c.b16 %v4894, %v4886
        %v5399 = vpack.c.b16 %v4895, %v4887
        %v5400 = vpack.c.b16 %v4896, %v4888
        %v5401 = vpack.c.b16 %v4897, %v4889
        %v5402 = vpack.c.b16 %v4898, %v4890
        %v5403 = vpack.c.b16 %v4899, %v4891
        %v5404 = vpack.c.b16 %v4900, %v4892
        %v5405 = vpack.c.b16 %v4901, %v4893
        %v5406 = vpack.c.b16 %v4910, %v4902
        %v5407 = vpack.c.b16 %v4911, %v4903
        %v5408 = vpack.c.b16 %v4912, %v4904
        %v5409 = vpack.c.b16 %v4913, %v4905
        %v5410 = vpack.c.b16 %v4914, %v4906
        %v5411 = vpack.c.b16 %v4915, %v4907
        %v5412 = vpack.c.b16 %v4916, %v4908
        %v5413 = vpack.c.b16 %v4917, %v4909
        %v5414 = vpack.c.b16 %v4926, %v4918
        %v5415 = vpack.c.b16 %v4927, %v4919
        %v5416 = vpack.c.b16 %v4928, %v4920
        %v5417 = vpack.c.b16 %v4929, %v4921
        %v5418 = vpack.c.b16 %v4930, %v4922
        %v5419 = vpack.c.b16 %v4931, %v4923
        %v5420 = vpack.c.b16 %v4932, %v4924
        %v5421 = vpack.c.b16 %v4933, %v4925
        %v5422 = vpack.c.b16 %v4942, %v4934
        %v5423 = vpack.c.b16 %v4943, %v4935
        %v5424 = vpack.c.b16 %v4944, %v4936
        %v5425 = vpack.c.b16 %v4945, %v4937
        %v5426 = vpack.c.b16 %v4946, %v4938
        %v5427 = vpack.c.b16 %v4947, %v4939
        %v5428 = vpack.c.b16 %v4948, %v4940
        %v5429 = vpack.c.b16 %v4949, %v4941
        %v5430 = vpack.c.b16 %v4958, %v4950
        %v5431 = vpack.c.b16 %v4959, %v4951
        %v5432 = vpack.c.b16 %v4960, %v4952
        %v5433 = vpack.c.b16 %v4961, %v4953
        %v5434 = vpack.c.b16 %v4962, %v4954
        %v5435 = vpack.c.b16 %v4963, %v4955
        %v5436 = vpack.c.b16 %v4964, %v4956
        %v5437 = vpack.c.b16 %v4965, %v4957
        %v5438 = vpack.c.b16 %v4974, %v4966
        %v5439 = vpack.c.b16 %v4975, %v4967
        %v5440 = vpack.c.b16 %v4976, %v4968
        %v5441 = vpack.c.b16 %v4977, %v4969
        %v5442 = vpack.c.b16 %v4978, %v4970
        %v5443 = vpack.c.b16 %v4979, %v4971
        %v5444 = vpack.c.b16 %v4980, %v4972
        %v5445 = vpack.c.b16 %v4981, %v4973
        %v5446 = vpack.c.b16 %v4990, %v4982
        %v5447 = vpack.c.b16 %v4991, %v4983
        %v5448 = vpack.c.b16 %v4992, %v4984
        %v5449 = vpack.c.b16 %v4993, %v4985
        %v5450 = vpack.c.b16 %v4994, %v4986
        %v5451 = vpack.c.b16 %v4995, %v4987
        %v5452 = vpack.c.b16 %v4996, %v4988
        %v5453 = vpack.c.b16 %v4997, %v4989
        %v5454 = vpack.c.b16 %v5006, %v4998
        %v5455 = vpack.c.b16 %v5007, %v4999
        %v5456 = vpack.c.b16 %v5008, %v5000
        %v5457 = vpack.c.b16 %v5009, %v5001
        %v5458 = vpack.c.b16 %v5010, %v5002
        %v5459 = vpack.c.b16 %v5011, %v5003
        %v5460 = vpack.c.b16 %v5012, %v5004
        %v5461 = vpack.c.b16 %v5013, %v5005
        %5910 = vmatpush.bf16.msra.mxu0 %v5070
        %5911 = vmatpush.bf16.msra.mxu0 %v5062
        %5912 = vmatpush.bf16.msra.mxu0 %v5054
        %5913 = vmatpush.bf16.msra.mxu0 %v5046
        %5914 = vmatpush.bf16.msra.mxu0 %v5038
        %5915 = vmatpush.bf16.msra.mxu0 %v5030
        %5916 = vmatpush.bf16.msra.mxu0 %v5022
        %5917 = vmatpush.bf16.msra.mxu0 %v5014
        %5918 = vmatmul.bf16.gmra.mxu0 %v3215
        %v5919 = vpop.f32.mrf.mxu0
        %v5920 = vadd.f32 0.0, %v5919
        %v5921 = vpop.f32.mrf.mxu0
        %5922 = vdwg.mxu0
        %5923 = vmatpush.bf16.msra.mxu0 %v5134
        %5924 = vmatpush.bf16.msra.mxu0 %v5126
        %5925 = vmatpush.bf16.msra.mxu0 %v5118
        %5926 = vmatpush.bf16.msra.mxu0 %v5110
        %5927 = vmatpush.bf16.msra.mxu0 %v5102
        %5928 = vmatpush.bf16.msra.mxu0 %v5094
        %5929 = vmatpush.bf16.msra.mxu0 %v5086
        %5930 = vmatpush.bf16.msra.mxu0 %v5078
        %5931 = vmatmul.bf16.gmra.mxu0 %v3216
        %v5932 = vpop.f32.mrf.mxu0
        %v5933 = vadd.f32 %v5920, %v5932
        %v5934 = vpop.f32.mrf.mxu0
        %5935 = vdwg.mxu0
        %5936 = vmatpush.bf16.msra.mxu0 %v5198
        %5937 = vmatpush.bf16.msra.mxu0 %v5190
        %5938 = vmatpush.bf16.msra.mxu0 %v5182
        %5939 = vmatpush.bf16.msra.mxu0 %v5174
        %5940 = vmatpush.bf16.msra.mxu0 %v5166
        %5941 = vmatpush.bf16.msra.mxu0 %v5158
        %5942 = vmatpush.bf16.msra.mxu0 %v5150
        %5943 = vmatpush.bf16.msra.mxu0 %v5142
        %5944 = vmatmul.bf16.gmra.mxu0 %v3217
        %v5945 = vpop.f32.mrf.mxu0
        %v5946 = vadd.f32 %v5933, %v5945
        %v5947 = vpop.f32.mrf.mxu0
        %5948 = vdwg.mxu0
        %5949 = vmatpush.bf16.msra.mxu0 %v5262
        %5950 = vmatpush.bf16.msra.mxu0 %v5254
        %5951 = vmatpush.bf16.msra.mxu0 %v5246
        %5952 = vmatpush.bf16.msra.mxu0 %v5238
        %5953 = vmatpush.bf16.msra.mxu0 %v5230
        %5954 = vmatpush.bf16.msra.mxu0 %v5222
        %5955 = vmatpush.bf16.msra.mxu0 %v5214
        %5956 = vmatpush.bf16.msra.mxu0 %v5206
        %5957 = vmatmul.bf16.gmra.mxu0 %v3218
        %v5958 = vpop.f32.mrf.mxu0
        %v5959 = vadd.f32 %v5946, %v5958
        %v5960 = vpop.f32.mrf.mxu0
        %5961 = vdwg.mxu0
        %5962 = vmatpush.bf16.msra.mxu0 %v5326
        %5963 = vmatpush.bf16.msra.mxu0 %v5318
        %5964 = vmatpush.bf16.msra.mxu0 %v5310
        %5965 = vmatpush.bf16.msra.mxu0 %v5302
        %5966 = vmatpush.bf16.msra.mxu0 %v5294
        %5967 = vmatpush.bf16.msra.mxu0 %v5286
        %5968 = vmatpush.bf16.msra.mxu0 %v5278
        %5969 = vmatpush.bf16.msra.mxu0 %v5270
        %5970 = vmatmul.bf16.gmra.mxu0 %v3219
        %v5971 = vpop.f32.mrf.mxu0
        %v5972 = vadd.f32 %v5959, %v5971
        %v5973 = vpop.f32.mrf.mxu0
        %5974 = vdwg.mxu0
        %5975 = vmatpush.bf16.msra.mxu0 %v5390
        %5976 = vmatpush.bf16.msra.mxu0 %v5382
        %5977 = vmatpush.bf16.msra.mxu0 %v5374
        %5978 = vmatpush.bf16.msra.mxu0 %v5366
        %5979 = vmatpush.bf16.msra.mxu0 %v5358
        %5980 = vmatpush.bf16.msra.mxu0 %v5350
        %5981 = vmatpush.bf16.msra.mxu0 %v5342
        %5982 = vmatpush.bf16.msra.mxu0 %v5334
        %5983 = vmatmul.bf16.gmra.mxu0 %v3220
        %v5984 = vpop.f32.mrf.mxu0
        %v5985 = vadd.f32 %v5972, %v5984
        %v5986 = vpop.f32.mrf.mxu0
        %5987 = vdwg.mxu0
        %5988 = vmatpush.bf16.msra.mxu0 %v5454
        %5989 = vmatpush.bf16.msra.mxu0 %v5446
        %5990 = vmatpush.bf16.msra.mxu0 %v5438
        %5991 = vmatpush.bf16.msra.mxu0 %v5430
        %5992 = vmatpush.bf16.msra.mxu0 %v5422
        %5993 = vmatpush.bf16.msra.mxu0 %v5414
        %5994 = vmatpush.bf16.msra.mxu0 %v5406
        %5995 = vmatpush.bf16.msra.mxu0 %v5398
        %5996 = vmatmul.bf16.gmra.mxu0 %v3221
        %v5997 = vpop.f32.mrf.mxu0
        %v5998 = vadd.f32 %v5985, %v5997
        %v5999 = vpop.f32.mrf.mxu0
        %6000 = vdwg.mxu0
        %6001 = vmatpush.bf16.msra.mxu0 %v5071
        %6002 = vmatpush.bf16.msra.mxu0 %v5063
        %6003 = vmatpush.bf16.msra.mxu0 %v5055
        %6004 = vmatpush.bf16.msra.mxu0 %v5047
        %6005 = vmatpush.bf16.msra.mxu0 %v5039
        %6006 = vmatpush.bf16.msra.mxu0 %v5031
        %6007 = vmatpush.bf16.msra.mxu0 %v5023
        %6008 = vmatpush.bf16.msra.mxu0 %v5015
        %6009 = vmatmul.bf16.gmra.mxu0 %v3215
        %v6010 = vpop.f32.mrf.mxu0
        %v6011 = vadd.f32 0.0, %v6010
        %v6012 = vpop.f32.mrf.mxu0
        %6013 = vdwg.mxu0
        %6014 = vmatpush.bf16.msra.mxu0 %v5135
        %6015 = vmatpush.bf16.msra.mxu0 %v5127
        %6016 = vmatpush.bf16.msra.mxu0 %v5119
        %6017 = vmatpush.bf16.msra.mxu0 %v5111
        %6018 = vmatpush.bf16.msra.mxu0 %v5103
        %6019 = vmatpush.bf16.msra.mxu0 %v5095
        %6020 = vmatpush.bf16.msra.mxu0 %v5087
        %6021 = vmatpush.bf16.msra.mxu0 %v5079
        %6022 = vmatmul.bf16.gmra.mxu0 %v3216
        %v6023 = vpop.f32.mrf.mxu0
        %v6024 = vadd.f32 %v6011, %v6023
        %v6025 = vpop.f32.mrf.mxu0
        %6026 = vdwg.mxu0
        %6027 = vmatpush.bf16.msra.mxu0 %v5199
        %6028 = vmatpush.bf16.msra.mxu0 %v5191
        %6029 = vmatpush.bf16.msra.mxu0 %v5183
        %6030 = vmatpush.bf16.msra.mxu0 %v5175
        %6031 = vmatpush.bf16.msra.mxu0 %v5167
        %6032 = vmatpush.bf16.msra.mxu0 %v5159
        %6033 = vmatpush.bf16.msra.mxu0 %v5151
        %6034 = vmatpush.bf16.msra.mxu0 %v5143
        %6035 = vmatmul.bf16.gmra.mxu0 %v3217
        %v6036 = vpop.f32.mrf.mxu0
        %v6037 = vadd.f32 %v6024, %v6036
        %v6038 = vpop.f32.mrf.mxu0
        %6039 = vdwg.mxu0
        %6040 = vmatpush.bf16.msra.mxu0 %v5263
        %6041 = vmatpush.bf16.msra.mxu0 %v5255
        %6042 = vmatpush.bf16.msra.mxu0 %v5247
        %6043 = vmatpush.bf16.msra.mxu0 %v5239
        %6044 = vmatpush.bf16.msra.mxu0 %v5231
        %6045 = vmatpush.bf16.msra.mxu0 %v5223
        %6046 = vmatpush.bf16.msra.mxu0 %v5215
        %6047 = vmatpush.bf16.msra.mxu0 %v5207
        %6048 = vmatmul.bf16.gmra.mxu0 %v3218
        %v6049 = vpop.f32.mrf.mxu0
        %v6050 = vadd.f32 %v6037, %v6049
        %v6051 = vpop.f32.mrf.mxu0
        %6052 = vdwg.mxu0
        %6053 = vmatpush.bf16.msra.mxu0 %v5327
        %6054 = vmatpush.bf16.msra.mxu0 %v5319
        %6055 = vmatpush.bf16.msra.mxu0 %v5311
        %6056 = vmatpush.bf16.msra.mxu0 %v5303
        %6057 = vmatpush.bf16.msra.mxu0 %v5295
        %6058 = vmatpush.bf16.msra.mxu0 %v5287
        %6059 = vmatpush.bf16.msra.mxu0 %v5279
        %6060 = vmatpush.bf16.msra.mxu0 %v5271
        %6061 = vmatmul.bf16.gmra.mxu0 %v3219
        %v6062 = vpop.f32.mrf.mxu0
        %v6063 = vadd.f32 %v6050, %v6062
        %v6064 = vpop.f32.mrf.mxu0
        %6065 = vdwg.mxu0
        %6066 = vmatpush.bf16.msra.mxu0 %v5391
        %6067 = vmatpush.bf16.msra.mxu0 %v5383
        %6068 = vmatpush.bf16.msra.mxu0 %v5375
        %6069 = vmatpush.bf16.msra.mxu0 %v5367
        %6070 = vmatpush.bf16.msra.mxu0 %v5359
        %6071 = vmatpush.bf16.msra.mxu0 %v5351
        %6072 = vmatpush.bf16.msra.mxu0 %v5343
        %6073 = vmatpush.bf16.msra.mxu0 %v5335
        %6074 = vmatmul.bf16.gmra.mxu0 %v3220
        %v6075 = vpop.f32.mrf.mxu0
        %v6076 = vadd.f32 %v6063, %v6075
        %v6077 = vpop.f32.mrf.mxu0
        %6078 = vdwg.mxu0
        %6079 = vmatpush.bf16.msra.mxu0 %v5455
        %6080 = vmatpush.bf16.msra.mxu0 %v5447
        %6081 = vmatpush.bf16.msra.mxu0 %v5439
        %6082 = vmatpush.bf16.msra.mxu0 %v5431
        %6083 = vmatpush.bf16.msra.mxu0 %v5423
        %6084 = vmatpush.bf16.msra.mxu0 %v5415
        %6085 = vmatpush.bf16.msra.mxu0 %v5407
        %6086 = vmatpush.bf16.msra.mxu0 %v5399
        %6087 = vmatmul.bf16.gmra.mxu0 %v3221
        %v6088 = vpop.f32.mrf.mxu0
        %v6089 = vadd.f32 %v6076, %v6088
        %v6090 = vpop.f32.mrf.mxu0
        %6091 = vdwg.mxu0
        %6092 = vmatpush.bf16.msra.mxu0 %v5072
        %6093 = vmatpush.bf16.msra.mxu0 %v5064
        %6094 = vmatpush.bf16.msra.mxu0 %v5056
        %6095 = vmatpush.bf16.msra.mxu0 %v5048
        %6096 = vmatpush.bf16.msra.mxu0 %v5040
        %6097 = vmatpush.bf16.msra.mxu0 %v5032
        %6098 = vmatpush.bf16.msra.mxu0 %v5024
        %6099 = vmatpush.bf16.msra.mxu0 %v5016
        %6100 = vmatmul.bf16.gmra.mxu0 %v3215
        %v6101 = vpop.f32.mrf.mxu0
        %v6102 = vadd.f32 0.0, %v6101
        %v6103 = vpop.f32.mrf.mxu0
        %6104 = vdwg.mxu0
        %6105 = vmatpush.bf16.msra.mxu0 %v5136
        %6106 = vmatpush.bf16.msra.mxu0 %v5128
        %6107 = vmatpush.bf16.msra.mxu0 %v5120
        %6108 = vmatpush.bf16.msra.mxu0 %v5112
        %6109 = vmatpush.bf16.msra.mxu0 %v5104
        %6110 = vmatpush.bf16.msra.mxu0 %v5096
        %6111 = vmatpush.bf16.msra.mxu0 %v5088
        %6112 = vmatpush.bf16.msra.mxu0 %v5080
        %6113 = vmatmul.bf16.gmra.mxu0 %v3216
        %v6114 = vpop.f32.mrf.mxu0
        %v6115 = vadd.f32 %v6102, %v6114
        %v6116 = vpop.f32.mrf.mxu0
        %6117 = vdwg.mxu0
        %6118 = vmatpush.bf16.msra.mxu0 %v5200
        %6119 = vmatpush.bf16.msra.mxu0 %v5192
        %6120 = vmatpush.bf16.msra.mxu0 %v5184
        %6121 = vmatpush.bf16.msra.mxu0 %v5176
        %6122 = vmatpush.bf16.msra.mxu0 %v5168
        %6123 = vmatpush.bf16.msra.mxu0 %v5160
        %6124 = vmatpush.bf16.msra.mxu0 %v5152
        %6125 = vmatpush.bf16.msra.mxu0 %v5144
        %6126 = vmatmul.bf16.gmra.mxu0 %v3217
        %v6127 = vpop.f32.mrf.mxu0
        %v6128 = vadd.f32 %v6115, %v6127
        %v6129 = vpop.f32.mrf.mxu0
        %6130 = vdwg.mxu0
        %6131 = vmatpush.bf16.msra.mxu0 %v5264
        %6132 = vmatpush.bf16.msra.mxu0 %v5256
        %6133 = vmatpush.bf16.msra.mxu0 %v5248
        %6134 = vmatpush.bf16.msra.mxu0 %v5240
        %6135 = vmatpush.bf16.msra.mxu0 %v5232
        %6136 = vmatpush.bf16.msra.mxu0 %v5224
        %6137 = vmatpush.bf16.msra.mxu0 %v5216
        %6138 = vmatpush.bf16.msra.mxu0 %v5208
        %6139 = vmatmul.bf16.gmra.mxu0 %v3218
        %v6140 = vpop.f32.mrf.mxu0
        %v6141 = vadd.f32 %v6128, %v6140
        %v6142 = vpop.f32.mrf.mxu0
        %6143 = vdwg.mxu0
        %6144 = vmatpush.bf16.msra.mxu0 %v5328
        %6145 = vmatpush.bf16.msra.mxu0 %v5320
        %6146 = vmatpush.bf16.msra.mxu0 %v5312
        %6147 = vmatpush.bf16.msra.mxu0 %v5304
        %6148 = vmatpush.bf16.msra.mxu0 %v5296
        %6149 = vmatpush.bf16.msra.mxu0 %v5288
        %6150 = vmatpush.bf16.msra.mxu0 %v5280
        %6151 = vmatpush.bf16.msra.mxu0 %v5272
        %6152 = vmatmul.bf16.gmra.mxu0 %v3219
        %v6153 = vpop.f32.mrf.mxu0
        %v6154 = vadd.f32 %v6141, %v6153
        %v6155 = vpop.f32.mrf.mxu0
        %6156 = vdwg.mxu0
        %6157 = vmatpush.bf16.msra.mxu0 %v5392
        %6158 = vmatpush.bf16.msra.mxu0 %v5384
        %6159 = vmatpush.bf16.msra.mxu0 %v5376
        %6160 = vmatpush.bf16.msra.mxu0 %v5368
        %6161 = vmatpush.bf16.msra.mxu0 %v5360
        %6162 = vmatpush.bf16.msra.mxu0 %v5352
        %6163 = vmatpush.bf16.msra.mxu0 %v5344
        %6164 = vmatpush.bf16.msra.mxu0 %v5336
        %6165 = vmatmul.bf16.gmra.mxu0 %v3220
        %v6166 = vpop.f32.mrf.mxu0
        %v6167 = vadd.f32 %v6154, %v6166
        %v6168 = vpop.f32.mrf.mxu0
        %6169 = vdwg.mxu0
        %6170 = vmatpush.bf16.msra.mxu0 %v5456
        %6171 = vmatpush.bf16.msra.mxu0 %v5448
        %6172 = vmatpush.bf16.msra.mxu0 %v5440
        %6173 = vmatpush.bf16.msra.mxu0 %v5432
        %6174 = vmatpush.bf16.msra.mxu0 %v5424
        %6175 = vmatpush.bf16.msra.mxu0 %v5416
        %6176 = vmatpush.bf16.msra.mxu0 %v5408
        %6177 = vmatpush.bf16.msra.mxu0 %v5400
        %6178 = vmatmul.bf16.gmra.mxu0 %v3221
        %v6179 = vpop.f32.mrf.mxu0
        %v6180 = vadd.f32 %v6167, %v6179
        %v6181 = vpop.f32.mrf.mxu0
        %6182 = vdwg.mxu0
        %6183 = vmatpush.bf16.msra.mxu0 %v5073
        %6184 = vmatpush.bf16.msra.mxu0 %v5065
        %6185 = vmatpush.bf16.msra.mxu0 %v5057
        %6186 = vmatpush.bf16.msra.mxu0 %v5049
        %6187 = vmatpush.bf16.msra.mxu0 %v5041
        %6188 = vmatpush.bf16.msra.mxu0 %v5033
        %6189 = vmatpush.bf16.msra.mxu0 %v5025
        %6190 = vmatpush.bf16.msra.mxu0 %v5017
        %6191 = vmatmul.bf16.gmra.mxu0 %v3215
        %v6192 = vpop.f32.mrf.mxu0
        %v6193 = vadd.f32 0.0, %v6192
        %v6194 = vpop.f32.mrf.mxu0
        %6195 = vdwg.mxu0
        %6196 = vmatpush.bf16.msra.mxu0 %v5137
        %6197 = vmatpush.bf16.msra.mxu0 %v5129
        %6198 = vmatpush.bf16.msra.mxu0 %v5121
        %6199 = vmatpush.bf16.msra.mxu0 %v5113
        %6200 = vmatpush.bf16.msra.mxu0 %v5105
        %6201 = vmatpush.bf16.msra.mxu0 %v5097
        %6202 = vmatpush.bf16.msra.mxu0 %v5089
        %6203 = vmatpush.bf16.msra.mxu0 %v5081
        %6204 = vmatmul.bf16.gmra.mxu0 %v3216
        %v6205 = vpop.f32.mrf.mxu0
        %v6206 = vadd.f32 %v6193, %v6205
        %v6207 = vpop.f32.mrf.mxu0
        %6208 = vdwg.mxu0
        %6209 = vmatpush.bf16.msra.mxu0 %v5201
        %6210 = vmatpush.bf16.msra.mxu0 %v5193
        %6211 = vmatpush.bf16.msra.mxu0 %v5185
        %6212 = vmatpush.bf16.msra.mxu0 %v5177
        %6213 = vmatpush.bf16.msra.mxu0 %v5169
        %6214 = vmatpush.bf16.msra.mxu0 %v5161
        %6215 = vmatpush.bf16.msra.mxu0 %v5153
        %6216 = vmatpush.bf16.msra.mxu0 %v5145
        %6217 = vmatmul.bf16.gmra.mxu0 %v3217
        %v6218 = vpop.f32.mrf.mxu0
        %v6219 = vadd.f32 %v6206, %v6218
        %v6220 = vpop.f32.mrf.mxu0
        %6221 = vdwg.mxu0
        %6222 = vmatpush.bf16.msra.mxu0 %v5265
        %6223 = vmatpush.bf16.msra.mxu0 %v5257
        %6224 = vmatpush.bf16.msra.mxu0 %v5249
        %6225 = vmatpush.bf16.msra.mxu0 %v5241
        %6226 = vmatpush.bf16.msra.mxu0 %v5233
        %6227 = vmatpush.bf16.msra.mxu0 %v5225
        %6228 = vmatpush.bf16.msra.mxu0 %v5217
        %6229 = vmatpush.bf16.msra.mxu0 %v5209
        %6230 = vmatmul.bf16.gmra.mxu0 %v3218
        %v6231 = vpop.f32.mrf.mxu0
        %v6232 = vadd.f32 %v6219, %v6231
        %v6233 = vpop.f32.mrf.mxu0
        %6234 = vdwg.mxu0
        %6235 = vmatpush.bf16.msra.mxu0 %v5329
        %6236 = vmatpush.bf16.msra.mxu0 %v5321
        %6237 = vmatpush.bf16.msra.mxu0 %v5313
        %6238 = vmatpush.bf16.msra.mxu0 %v5305
        %6239 = vmatpush.bf16.msra.mxu0 %v5297
        %6240 = vmatpush.bf16.msra.mxu0 %v5289
        %6241 = vmatpush.bf16.msra.mxu0 %v5281
        %6242 = vmatpush.bf16.msra.mxu0 %v5273
        %6243 = vmatmul.bf16.gmra.mxu0 %v3219
        %v6244 = vpop.f32.mrf.mxu0
        %v6245 = vadd.f32 %v6232, %v6244
        %v6246 = vpop.f32.mrf.mxu0
        %6247 = vdwg.mxu0
        %6248 = vmatpush.bf16.msra.mxu0 %v5393
        %6249 = vmatpush.bf16.msra.mxu0 %v5385
        %6250 = vmatpush.bf16.msra.mxu0 %v5377
        %6251 = vmatpush.bf16.msra.mxu0 %v5369
        %6252 = vmatpush.bf16.msra.mxu0 %v5361
        %6253 = vmatpush.bf16.msra.mxu0 %v5353
        %6254 = vmatpush.bf16.msra.mxu0 %v5345
        %6255 = vmatpush.bf16.msra.mxu0 %v5337
        %6256 = vmatmul.bf16.gmra.mxu0 %v3220
        %v6257 = vpop.f32.mrf.mxu0
        %v6258 = vadd.f32 %v6245, %v6257
        %v6259 = vpop.f32.mrf.mxu0
        %6260 = vdwg.mxu0
        %6261 = vmatpush.bf16.msra.mxu0 %v5457
        %6262 = vmatpush.bf16.msra.mxu0 %v5449
        %6263 = vmatpush.bf16.msra.mxu0 %v5441
        %6264 = vmatpush.bf16.msra.mxu0 %v5433
        %6265 = vmatpush.bf16.msra.mxu0 %v5425
        %6266 = vmatpush.bf16.msra.mxu0 %v5417
        %6267 = vmatpush.bf16.msra.mxu0 %v5409
        %6268 = vmatpush.bf16.msra.mxu0 %v5401
        %6269 = vmatmul.bf16.gmra.mxu0 %v3221
        %v6270 = vpop.f32.mrf.mxu0
        %v6271 = vadd.f32 %v6258, %v6270
        %v6272 = vpop.f32.mrf.mxu0
        %6273 = vdwg.mxu0
        %6274 = vmatpush.bf16.msra.mxu0 %v5074
        %6275 = vmatpush.bf16.msra.mxu0 %v5066
        %6276 = vmatpush.bf16.msra.mxu0 %v5058
        %6277 = vmatpush.bf16.msra.mxu0 %v5050
        %6278 = vmatpush.bf16.msra.mxu0 %v5042
        %6279 = vmatpush.bf16.msra.mxu0 %v5034
        %6280 = vmatpush.bf16.msra.mxu0 %v5026
        %6281 = vmatpush.bf16.msra.mxu0 %v5018
        %6282 = vmatmul.bf16.gmra.mxu0 %v3215
        %v6283 = vpop.f32.mrf.mxu0
        %v6284 = vadd.f32 0.0, %v6283
        %v6285 = vpop.f32.mrf.mxu0
        %6286 = vdwg.mxu0
        %6287 = vmatpush.bf16.msra.mxu0 %v5138
        %6288 = vmatpush.bf16.msra.mxu0 %v5130
        %6289 = vmatpush.bf16.msra.mxu0 %v5122
        %6290 = vmatpush.bf16.msra.mxu0 %v5114
        %6291 = vmatpush.bf16.msra.mxu0 %v5106
        %6292 = vmatpush.bf16.msra.mxu0 %v5098
        %6293 = vmatpush.bf16.msra.mxu0 %v5090
        %6294 = vmatpush.bf16.msra.mxu0 %v5082
        %6295 = vmatmul.bf16.gmra.mxu0 %v3216
        %v6296 = vpop.f32.mrf.mxu0
        %v6297 = vadd.f32 %v6284, %v6296
        %v6298 = vpop.f32.mrf.mxu0
        %6299 = vdwg.mxu0
        %6300 = vmatpush.bf16.msra.mxu0 %v5202
        %6301 = vmatpush.bf16.msra.mxu0 %v5194
        %6302 = vmatpush.bf16.msra.mxu0 %v5186
        %6303 = vmatpush.bf16.msra.mxu0 %v5178
        %6304 = vmatpush.bf16.msra.mxu0 %v5170
        %6305 = vmatpush.bf16.msra.mxu0 %v5162
        %6306 = vmatpush.bf16.msra.mxu0 %v5154
        %6307 = vmatpush.bf16.msra.mxu0 %v5146
        %6308 = vmatmul.bf16.gmra.mxu0 %v3217
        %v6309 = vpop.f32.mrf.mxu0
        %v6310 = vadd.f32 %v6297, %v6309
        %v6311 = vpop.f32.mrf.mxu0
        %6312 = vdwg.mxu0
        %6313 = vmatpush.bf16.msra.mxu0 %v5266
        %6314 = vmatpush.bf16.msra.mxu0 %v5258
        %6315 = vmatpush.bf16.msra.mxu0 %v5250
        %6316 = vmatpush.bf16.msra.mxu0 %v5242
        %6317 = vmatpush.bf16.msra.mxu0 %v5234
        %6318 = vmatpush.bf16.msra.mxu0 %v5226
        %6319 = vmatpush.bf16.msra.mxu0 %v5218
        %6320 = vmatpush.bf16.msra.mxu0 %v5210
        %6321 = vmatmul.bf16.gmra.mxu0 %v3218
        %v6322 = vpop.f32.mrf.mxu0
        %v6323 = vadd.f32 %v6310, %v6322
        %v6324 = vpop.f32.mrf.mxu0
        %6325 = vdwg.mxu0
        %6326 = vmatpush.bf16.msra.mxu0 %v5330
        %6327 = vmatpush.bf16.msra.mxu0 %v5322
        %6328 = vmatpush.bf16.msra.mxu0 %v5314
        %6329 = vmatpush.bf16.msra.mxu0 %v5306
        %6330 = vmatpush.bf16.msra.mxu0 %v5298
        %6331 = vmatpush.bf16.msra.mxu0 %v5290
        %6332 = vmatpush.bf16.msra.mxu0 %v5282
        %6333 = vmatpush.bf16.msra.mxu0 %v5274
        %6334 = vmatmul.bf16.gmra.mxu0 %v3219
        %v6335 = vpop.f32.mrf.mxu0
        %v6336 = vadd.f32 %v6323, %v6335
        %v6337 = vpop.f32.mrf.mxu0
        %6338 = vdwg.mxu0
        %6339 = vmatpush.bf16.msra.mxu0 %v5394
        %6340 = vmatpush.bf16.msra.mxu0 %v5386
        %6341 = vmatpush.bf16.msra.mxu0 %v5378
        %6342 = vmatpush.bf16.msra.mxu0 %v5370
        %6343 = vmatpush.bf16.msra.mxu0 %v5362
        %6344 = vmatpush.bf16.msra.mxu0 %v5354
        %6345 = vmatpush.bf16.msra.mxu0 %v5346
        %6346 = vmatpush.bf16.msra.mxu0 %v5338
        %6347 = vmatmul.bf16.gmra.mxu0 %v3220
        %v6348 = vpop.f32.mrf.mxu0
        %v6349 = vadd.f32 %v6336, %v6348
        %v6350 = vpop.f32.mrf.mxu0
        %6351 = vdwg.mxu0
        %6352 = vmatpush.bf16.msra.mxu0 %v5458
        %6353 = vmatpush.bf16.msra.mxu0 %v5450
        %6354 = vmatpush.bf16.msra.mxu0 %v5442
        %6355 = vmatpush.bf16.msra.mxu0 %v5434
        %6356 = vmatpush.bf16.msra.mxu0 %v5426
        %6357 = vmatpush.bf16.msra.mxu0 %v5418
        %6358 = vmatpush.bf16.msra.mxu0 %v5410
        %6359 = vmatpush.bf16.msra.mxu0 %v5402
        %6360 = vmatmul.bf16.gmra.mxu0 %v3221
        %v6361 = vpop.f32.mrf.mxu0
        %v6362 = vadd.f32 %v6349, %v6361
        %v6363 = vpop.f32.mrf.mxu0
        %6364 = vdwg.mxu0
        %6365 = vmatpush.bf16.msra.mxu0 %v5075
        %6366 = vmatpush.bf16.msra.mxu0 %v5067
        %6367 = vmatpush.bf16.msra.mxu0 %v5059
        %6368 = vmatpush.bf16.msra.mxu0 %v5051
        %6369 = vmatpush.bf16.msra.mxu0 %v5043
        %6370 = vmatpush.bf16.msra.mxu0 %v5035
        %6371 = vmatpush.bf16.msra.mxu0 %v5027
        %6372 = vmatpush.bf16.msra.mxu0 %v5019
        %6373 = vmatmul.bf16.gmra.mxu0 %v3215
        %v6374 = vpop.f32.mrf.mxu0
        %v6375 = vadd.f32 0.0, %v6374
        %v6376 = vpop.f32.mrf.mxu0
        %6377 = vdwg.mxu0
        %6378 = vmatpush.bf16.msra.mxu0 %v5139
        %6379 = vmatpush.bf16.msra.mxu0 %v5131
        %6380 = vmatpush.bf16.msra.mxu0 %v5123
        %6381 = vmatpush.bf16.msra.mxu0 %v5115
        %6382 = vmatpush.bf16.msra.mxu0 %v5107
        %6383 = vmatpush.bf16.msra.mxu0 %v5099
        %6384 = vmatpush.bf16.msra.mxu0 %v5091
        %6385 = vmatpush.bf16.msra.mxu0 %v5083
        %6386 = vmatmul.bf16.gmra.mxu0 %v3216
        %v6387 = vpop.f32.mrf.mxu0
        %v6388 = vadd.f32 %v6375, %v6387
        %v6389 = vpop.f32.mrf.mxu0
        %6390 = vdwg.mxu0
        %6391 = vmatpush.bf16.msra.mxu0 %v5203
        %6392 = vmatpush.bf16.msra.mxu0 %v5195
        %6393 = vmatpush.bf16.msra.mxu0 %v5187
        %6394 = vmatpush.bf16.msra.mxu0 %v5179
        %6395 = vmatpush.bf16.msra.mxu0 %v5171
        %6396 = vmatpush.bf16.msra.mxu0 %v5163
        %6397 = vmatpush.bf16.msra.mxu0 %v5155
        %6398 = vmatpush.bf16.msra.mxu0 %v5147
        %6399 = vmatmul.bf16.gmra.mxu0 %v3217
        %v6400 = vpop.f32.mrf.mxu0
        %v6401 = vadd.f32 %v6388, %v6400
        %v6402 = vpop.f32.mrf.mxu0
        %6403 = vdwg.mxu0
        %6404 = vmatpush.bf16.msra.mxu0 %v5267
        %6405 = vmatpush.bf16.msra.mxu0 %v5259
        %6406 = vmatpush.bf16.msra.mxu0 %v5251
        %6407 = vmatpush.bf16.msra.mxu0 %v5243
        %6408 = vmatpush.bf16.msra.mxu0 %v5235
        %6409 = vmatpush.bf16.msra.mxu0 %v5227
        %6410 = vmatpush.bf16.msra.mxu0 %v5219
        %6411 = vmatpush.bf16.msra.mxu0 %v5211
        %6412 = vmatmul.bf16.gmra.mxu0 %v3218
        %v6413 = vpop.f32.mrf.mxu0
        %v6414 = vadd.f32 %v6401, %v6413
        %v6415 = vpop.f32.mrf.mxu0
        %6416 = vdwg.mxu0
        %6417 = vmatpush.bf16.msra.mxu0 %v5331
        %6418 = vmatpush.bf16.msra.mxu0 %v5323
        %6419 = vmatpush.bf16.msra.mxu0 %v5315
        %6420 = vmatpush.bf16.msra.mxu0 %v5307
        %6421 = vmatpush.bf16.msra.mxu0 %v5299
        %6422 = vmatpush.bf16.msra.mxu0 %v5291
        %6423 = vmatpush.bf16.msra.mxu0 %v5283
        %6424 = vmatpush.bf16.msra.mxu0 %v5275
        %6425 = vmatmul.bf16.gmra.mxu0 %v3219
        %v6426 = vpop.f32.mrf.mxu0
        %v6427 = vadd.f32 %v6414, %v6426
        %v6428 = vpop.f32.mrf.mxu0
        %6429 = vdwg.mxu0
        %6430 = vmatpush.bf16.msra.mxu0 %v5395
        %6431 = vmatpush.bf16.msra.mxu0 %v5387
        %6432 = vmatpush.bf16.msra.mxu0 %v5379
        %6433 = vmatpush.bf16.msra.mxu0 %v5371
        %6434 = vmatpush.bf16.msra.mxu0 %v5363
        %6435 = vmatpush.bf16.msra.mxu0 %v5355
        %6436 = vmatpush.bf16.msra.mxu0 %v5347
        %6437 = vmatpush.bf16.msra.mxu0 %v5339
        %6438 = vmatmul.bf16.gmra.mxu0 %v3220
        %v6439 = vpop.f32.mrf.mxu0
        %v6440 = vadd.f32 %v6427, %v6439
        %v6441 = vpop.f32.mrf.mxu0
        %6442 = vdwg.mxu0
        %6443 = vmatpush.bf16.msra.mxu0 %v5459
        %6444 = vmatpush.bf16.msra.mxu0 %v5451
        %6445 = vmatpush.bf16.msra.mxu0 %v5443
        %6446 = vmatpush.bf16.msra.mxu0 %v5435
        %6447 = vmatpush.bf16.msra.mxu0 %v5427
        %6448 = vmatpush.bf16.msra.mxu0 %v5419
        %6449 = vmatpush.bf16.msra.mxu0 %v5411
        %6450 = vmatpush.bf16.msra.mxu0 %v5403
        %6451 = vmatmul.bf16.gmra.mxu0 %v3221
        %v6452 = vpop.f32.mrf.mxu0
        %v6453 = vadd.f32 %v6440, %v6452
        %v6454 = vpop.f32.mrf.mxu0
        %6455 = vdwg.mxu0
        %6456 = vmatpush.bf16.msra.mxu0 %v5076
        %6457 = vmatpush.bf16.msra.mxu0 %v5068
        %6458 = vmatpush.bf16.msra.mxu0 %v5060
        %6459 = vmatpush.bf16.msra.mxu0 %v5052
        %6460 = vmatpush.bf16.msra.mxu0 %v5044
        %6461 = vmatpush.bf16.msra.mxu0 %v5036
        %6462 = vmatpush.bf16.msra.mxu0 %v5028
        %6463 = vmatpush.bf16.msra.mxu0 %v5020
        %6464 = vmatmul.bf16.gmra.mxu0 %v3215
        %v6465 = vpop.f32.mrf.mxu0
        %v6466 = vadd.f32 0.0, %v6465
        %v6467 = vpop.f32.mrf.mxu0
        %6468 = vdwg.mxu0
        %6469 = vmatpush.bf16.msra.mxu0 %v5140
        %6470 = vmatpush.bf16.msra.mxu0 %v5132
        %6471 = vmatpush.bf16.msra.mxu0 %v5124
        %6472 = vmatpush.bf16.msra.mxu0 %v5116
        %6473 = vmatpush.bf16.msra.mxu0 %v5108
        %6474 = vmatpush.bf16.msra.mxu0 %v5100
        %6475 = vmatpush.bf16.msra.mxu0 %v5092
        %6476 = vmatpush.bf16.msra.mxu0 %v5084
        %6477 = vmatmul.bf16.gmra.mxu0 %v3216
        %v6478 = vpop.f32.mrf.mxu0
        %v6479 = vadd.f32 %v6466, %v6478
        %v6480 = vpop.f32.mrf.mxu0
        %6481 = vdwg.mxu0
        %6482 = vmatpush.bf16.msra.mxu0 %v5204
        %6483 = vmatpush.bf16.msra.mxu0 %v5196
        %6484 = vmatpush.bf16.msra.mxu0 %v5188
        %6485 = vmatpush.bf16.msra.mxu0 %v5180
        %6486 = vmatpush.bf16.msra.mxu0 %v5172
        %6487 = vmatpush.bf16.msra.mxu0 %v5164
        %6488 = vmatpush.bf16.msra.mxu0 %v5156
        %6489 = vmatpush.bf16.msra.mxu0 %v5148
        %6490 = vmatmul.bf16.gmra.mxu0 %v3217
        %v6491 = vpop.f32.mrf.mxu0
        %v6492 = vadd.f32 %v6479, %v6491
        %v6493 = vpop.f32.mrf.mxu0
        %6494 = vdwg.mxu0
        %6495 = vmatpush.bf16.msra.mxu0 %v5268
        %6496 = vmatpush.bf16.msra.mxu0 %v5260
        %6497 = vmatpush.bf16.msra.mxu0 %v5252
        %6498 = vmatpush.bf16.msra.mxu0 %v5244
        %6499 = vmatpush.bf16.msra.mxu0 %v5236
        %6500 = vmatpush.bf16.msra.mxu0 %v5228
        %6501 = vmatpush.bf16.msra.mxu0 %v5220
        %6502 = vmatpush.bf16.msra.mxu0 %v5212
        %6503 = vmatmul.bf16.gmra.mxu0 %v3218
        %v6504 = vpop.f32.mrf.mxu0
        %v6505 = vadd.f32 %v6492, %v6504
        %v6506 = vpop.f32.mrf.mxu0
        %6507 = vdwg.mxu0
        %6508 = vmatpush.bf16.msra.mxu0 %v5332
        %6509 = vmatpush.bf16.msra.mxu0 %v5324
        %6510 = vmatpush.bf16.msra.mxu0 %v5316
        %6511 = vmatpush.bf16.msra.mxu0 %v5308
        %6512 = vmatpush.bf16.msra.mxu0 %v5300
        %6513 = vmatpush.bf16.msra.mxu0 %v5292
        %6514 = vmatpush.bf16.msra.mxu0 %v5284
        %6515 = vmatpush.bf16.msra.mxu0 %v5276
        %6516 = vmatmul.bf16.gmra.mxu0 %v3219
        %v6517 = vpop.f32.mrf.mxu0
        %v6518 = vadd.f32 %v6505, %v6517
        %v6519 = vpop.f32.mrf.mxu0
        %6520 = vdwg.mxu0
        %6521 = vmatpush.bf16.msra.mxu0 %v5396
        %6522 = vmatpush.bf16.msra.mxu0 %v5388
        %6523 = vmatpush.bf16.msra.mxu0 %v5380
        %6524 = vmatpush.bf16.msra.mxu0 %v5372
        %6525 = vmatpush.bf16.msra.mxu0 %v5364
        %6526 = vmatpush.bf16.msra.mxu0 %v5356
        %6527 = vmatpush.bf16.msra.mxu0 %v5348
        %6528 = vmatpush.bf16.msra.mxu0 %v5340
        %6529 = vmatmul.bf16.gmra.mxu0 %v3220
        %v6530 = vpop.f32.mrf.mxu0
        %v6531 = vadd.f32 %v6518, %v6530
        %v6532 = vpop.f32.mrf.mxu0
        %6533 = vdwg.mxu0
        %6534 = vmatpush.bf16.msra.mxu0 %v5460
        %6535 = vmatpush.bf16.msra.mxu0 %v5452
        %6536 = vmatpush.bf16.msra.mxu0 %v5444
        %6537 = vmatpush.bf16.msra.mxu0 %v5436
        %6538 = vmatpush.bf16.msra.mxu0 %v5428
        %6539 = vmatpush.bf16.msra.mxu0 %v5420
        %6540 = vmatpush.bf16.msra.mxu0 %v5412
        %6541 = vmatpush.bf16.msra.mxu0 %v5404
        %6542 = vmatmul.bf16.gmra.mxu0 %v3221
        %v6543 = vpop.f32.mrf.mxu0
        %v6544 = vadd.f32 %v6531, %v6543
        %v6545 = vpop.f32.mrf.mxu0
        %6546 = vdwg.mxu0
        %6547 = vmatpush.bf16.msra.mxu0 %v5077
        %6548 = vmatpush.bf16.msra.mxu0 %v5069
        %6549 = vmatpush.bf16.msra.mxu0 %v5061
        %6550 = vmatpush.bf16.msra.mxu0 %v5053
        %6551 = vmatpush.bf16.msra.mxu0 %v5045
        %6552 = vmatpush.bf16.msra.mxu0 %v5037
        %6553 = vmatpush.bf16.msra.mxu0 %v5029
        %6554 = vmatpush.bf16.msra.mxu0 %v5021
        %6555 = vmatmul.bf16.gmra.mxu0 %v3215
        %v6556 = vpop.f32.mrf.mxu0
        %v6557 = vadd.f32 0.0, %v6556
        %v6558 = vpop.f32.mrf.mxu0
        %6559 = vdwg.mxu0
        %6560 = vmatpush.bf16.msra.mxu0 %v5141
        %6561 = vmatpush.bf16.msra.mxu0 %v5133
        %6562 = vmatpush.bf16.msra.mxu0 %v5125
        %6563 = vmatpush.bf16.msra.mxu0 %v5117
        %6564 = vmatpush.bf16.msra.mxu0 %v5109
        %6565 = vmatpush.bf16.msra.mxu0 %v5101
        %6566 = vmatpush.bf16.msra.mxu0 %v5093
        %6567 = vmatpush.bf16.msra.mxu0 %v5085
        %6568 = vmatmul.bf16.gmra.mxu0 %v3216
        %v6569 = vpop.f32.mrf.mxu0
        %v6570 = vadd.f32 %v6557, %v6569
        %v6571 = vpop.f32.mrf.mxu0
        %6572 = vdwg.mxu0
        %6573 = vmatpush.bf16.msra.mxu0 %v5205
        %6574 = vmatpush.bf16.msra.mxu0 %v5197
        %6575 = vmatpush.bf16.msra.mxu0 %v5189
        %6576 = vmatpush.bf16.msra.mxu0 %v5181
        %6577 = vmatpush.bf16.msra.mxu0 %v5173
        %6578 = vmatpush.bf16.msra.mxu0 %v5165
        %6579 = vmatpush.bf16.msra.mxu0 %v5157
        %6580 = vmatpush.bf16.msra.mxu0 %v5149
        %6581 = vmatmul.bf16.gmra.mxu0 %v3217
        %v6582 = vpop.f32.mrf.mxu0
        %v6583 = vadd.f32 %v6570, %v6582
        %v6584 = vpop.f32.mrf.mxu0
        %6585 = vdwg.mxu0
        %6586 = vmatpush.bf16.msra.mxu0 %v5269
        %6587 = vmatpush.bf16.msra.mxu0 %v5261
        %6588 = vmatpush.bf16.msra.mxu0 %v5253
        %6589 = vmatpush.bf16.msra.mxu0 %v5245
        %6590 = vmatpush.bf16.msra.mxu0 %v5237
        %6591 = vmatpush.bf16.msra.mxu0 %v5229
        %6592 = vmatpush.bf16.msra.mxu0 %v5221
        %6593 = vmatpush.bf16.msra.mxu0 %v5213
        %6594 = vmatmul.bf16.gmra.mxu0 %v3218
        %v6595 = vpop.f32.mrf.mxu0
        %v6596 = vadd.f32 %v6583, %v6595
        %v6597 = vpop.f32.mrf.mxu0
        %6598 = vdwg.mxu0
        %6599 = vmatpush.bf16.msra.mxu0 %v5333
        %6600 = vmatpush.bf16.msra.mxu0 %v5325
        %6601 = vmatpush.bf16.msra.mxu0 %v5317
        %6602 = vmatpush.bf16.msra.mxu0 %v5309
        %6603 = vmatpush.bf16.msra.mxu0 %v5301
        %6604 = vmatpush.bf16.msra.mxu0 %v5293
        %6605 = vmatpush.bf16.msra.mxu0 %v5285
        %6606 = vmatpush.bf16.msra.mxu0 %v5277
        %6607 = vmatmul.bf16.gmra.mxu0 %v3219
        %v6608 = vpop.f32.mrf.mxu0
        %v6609 = vadd.f32 %v6596, %v6608
        %v6610 = vpop.f32.mrf.mxu0
        %6611 = vdwg.mxu0
        %6612 = vmatpush.bf16.msra.mxu0 %v5397
        %6613 = vmatpush.bf16.msra.mxu0 %v5389
        %6614 = vmatpush.bf16.msra.mxu0 %v5381
        %6615 = vmatpush.bf16.msra.mxu0 %v5373
        %6616 = vmatpush.bf16.msra.mxu0 %v5365
        %6617 = vmatpush.bf16.msra.mxu0 %v5357
        %6618 = vmatpush.bf16.msra.mxu0 %v5349
        %6619 = vmatpush.bf16.msra.mxu0 %v5341
        %6620 = vmatmul.bf16.gmra.mxu0 %v3220
        %v6621 = vpop.f32.mrf.mxu0
        %v6622 = vadd.f32 %v6609, %v6621
        %v6623 = vpop.f32.mrf.mxu0
        %6624 = vdwg.mxu0
        %6625 = vmatpush.bf16.msra.mxu0 %v5461
        %6626 = vmatpush.bf16.msra.mxu0 %v5453
        %6627 = vmatpush.bf16.msra.mxu0 %v5445
        %6628 = vmatpush.bf16.msra.mxu0 %v5437
        %6629 = vmatpush.bf16.msra.mxu0 %v5429
        %6630 = vmatpush.bf16.msra.mxu0 %v5421
        %6631 = vmatpush.bf16.msra.mxu0 %v5413
        %6632 = vmatpush.bf16.msra.mxu0 %v5405
        %6633 = vmatmul.bf16.gmra.mxu0 %v3221
        %v6634 = vpop.f32.mrf.mxu0
        %v6635 = vadd.f32 %v6622, %v6634
        %v6636 = vpop.f32.mrf.mxu0
        %6637 = vdwg.mxu0
        %v6638 = vadd.f32 %v3207, %v5998
        %v6639 = vadd.f32 %v3208, %v6089
        %v6640 = vadd.f32 %v3209, %v6180
        %v6641 = vadd.f32 %v3210, %v6271
        %v6642 = vadd.f32 %v3211, %v6362
        %v6643 = vadd.f32 %v3212, %v6453
        %v6644 = vadd.f32 %v3213, %v6544
        %v6645 = vadd.f32 %v3214, %v6635
        %6646 = vst [vmem:[#allocation2] sm:$0xff] %v6638
        %6647 = vst [vmem:[#allocation2 + $0x8] sm:$0xff] %v6639
        %6648 = vst [vmem:[#allocation2 + $0x10] sm:$0xff] %v6640
        %6649 = vst [vmem:[#allocation2 + $0x18] sm:$0xff] %v6641
        %6650 = vst [vmem:[#allocation2 + $0x20] sm:$0xff] %v6642
        %6651 = vst [vmem:[#allocation2 + $0x28] sm:$0xff] %v6643
        %6652 = vst [vmem:[#allocation2 + $0x30] sm:$0xff] %v6644
        %6653 = vst [vmem:[#allocation2 + $0x38] sm:$0xff] %v6645
        %p6654 = scmp.eq.s32.totalorder %s28, 1
        // Predicated region
        $region89: #{tpu_custom_call.1} parent=51 // pred_check
          %p6655 = pneg %p6654
        $region90: #{tpu_custom_call.1} parent=51 // pred_check_branch
          %6657 = sbr.rel (%p6655) target = $region92
        $region91: #{tpu_custom_call.1} parent=51 // pred_region
          %v6658 = vld [vmem:[#allocation2] sm:$0xff]
          %v6659 = vld [vmem:[#allocation2 + $0x8] sm:$0xff]
          %v6660 = vld [vmem:[#allocation2 + $0x10] sm:$0xff]
          %v6661 = vld [vmem:[#allocation2 + $0x18] sm:$0xff]
          %v6662 = vld [vmem:[#allocation2 + $0x20] sm:$0xff]
          %v6663 = vld [vmem:[#allocation2 + $0x28] sm:$0xff]
          %v6664 = vld [vmem:[#allocation2 + $0x30] sm:$0xff]
          %v6665 = vld [vmem:[#allocation2 + $0x38] sm:$0xff]
          %v6666 = vld [vmem:[#allocation11] sm:$0xff]
          %v6668 = vperm.slane %v6666, 0
          %v6669 = vperm.slane %v6666, 1
          %v6670 = vperm.slane %v6666, 2
          %v6671 = vperm.slane %v6666, 3
          %v6672 = vperm.slane %v6666, 4
          %v6673 = vperm.slane %v6666, 5
          %v6674 = vperm.slane %v6666, 6
          %v6675 = vperm.slane %v6666, 7
          %v6684 = vadd.f32 %v6658, %v6668
          %v6685 = vadd.f32 %v6659, %v6669
          %v6686 = vadd.f32 %v6660, %v6670
          %v6687 = vadd.f32 %v6661, %v6671
          %v6688 = vadd.f32 %v6662, %v6672
          %v6689 = vadd.f32 %v6663, %v6673
          %v6690 = vadd.f32 %v6664, %v6674
          %v6691 = vadd.f32 %v6665, %v6675
          %v6692 = vmax.f32 %v6684, 0.0
          %v6693 = vmax.f32 %v6685, 0.0
          %v6694 = vmax.f32 %v6686, 0.0
          %v6695 = vmax.f32 %v6687, 0.0
          %v6696 = vmax.f32 %v6688, 0.0
          %v6697 = vmax.f32 %v6689, 0.0
          %v6698 = vmax.f32 %v6690, 0.0
          %v6699 = vmax.f32 %v6691, 0.0
          %v6700 = vpack.c.bf16 %v6692, %v6692
          %v6701 = vpack.c.bf16 %v6693, %v6693
          %v6702 = vpack.c.bf16 %v6694, %v6694
          %v6703 = vpack.c.bf16 %v6695, %v6695
          %v6704 = vpack.c.bf16 %v6696, %v6696
          %v6705 = vpack.c.bf16 %v6697, %v6697
          %v6706 = vpack.c.bf16 %v6698, %v6698
          %v6707 = vpack.c.bf16 %v6699, %v6699
          %v6708 = vld [vmem:[#allocation12] sm:$0xf]
          %v6709 = vld [vmem:[#allocation12 + $0x4] sm:$0xf]
          %v6710 = vld [vmem:[#allocation12 + $0x8] sm:$0xf]
          %v6711 = vld [vmem:[#allocation12 + $0xc] sm:$0xf]
          %v6712 = vld [vmem:[#allocation12 + $0x10] sm:$0xf]
          %v6713 = vld [vmem:[#allocation12 + $0x14] sm:$0xf]
          %v6714 = vld [vmem:[#allocation12 + $0x18] sm:$0xf]
          %v6715 = vld [vmem:[#allocation12 + $0x1c] sm:$0xf]
          %v6716 = vld [vmem:[#allocation12 + $0x20] sm:$0xf]
          %v6717 = vld [vmem:[#allocation12 + $0x24] sm:$0xf]
          %v6718 = vld [vmem:[#allocation12 + $0x28] sm:$0xf]
          %v6719 = vld [vmem:[#allocation12 + $0x2c] sm:$0xf]
          %v6720 = vld [vmem:[#allocation12 + $0x30] sm:$0xf]
          %v6721 = vld [vmem:[#allocation12 + $0x34] sm:$0xf]
          %v6722 = vld [vmem:[#allocation12 + $0x38] sm:$0xf]
          %v6723 = vld [vmem:[#allocation12 + $0x3c] sm:$0xf]
          %v6724 = vld [vmem:[#allocation12 + $0x40] sm:$0xf]
          %v6725 = vld [vmem:[#allocation12 + $0x44] sm:$0xf]
          %v6726 = vld [vmem:[#allocation12 + $0x48] sm:$0xf]
          %v6727 = vld [vmem:[#allocation12 + $0x4c] sm:$0xf]
          %v6728 = vld [vmem:[#allocation12 + $0x50] sm:$0xf]
          %v6729 = vld [vmem:[#allocation12 + $0x54] sm:$0xf]
          %v6730 = vld [vmem:[#allocation12 + $0x58] sm:$0xf]
          %v6731 = vld [vmem:[#allocation12 + $0x5c] sm:$0xf]
          %v6732 = vld [vmem:[#allocation12 + $0x60] sm:$0xf]
          %v6733 = vld [vmem:[#allocation12 + $0x64] sm:$0xf]
          %v6734 = vld [vmem:[#allocation12 + $0x68] sm:$0xf]
          %v6735 = vld [vmem:[#allocation12 + $0x6c] sm:$0xf]
          %v6736 = vld [vmem:[#allocation12 + $0x70] sm:$0xf]
          %v6737 = vld [vmem:[#allocation12 + $0x74] sm:$0xf]
          %v6738 = vld [vmem:[#allocation12 + $0x78] sm:$0xf]
          %v6739 = vld [vmem:[#allocation12 + $0x7c] sm:$0xf]
          %v6740 = vld [vmem:[#allocation12 + $0x80] sm:$0xf]
          %v6741 = vld [vmem:[#allocation12 + $0x84] sm:$0xf]
          %v6742 = vld [vmem:[#allocation12 + $0x88] sm:$0xf]
          %v6743 = vld [vmem:[#allocation12 + $0x8c] sm:$0xf]
          %v6744 = vld [vmem:[#allocation12 + $0x90] sm:$0xf]
          %v6745 = vld [vmem:[#allocation12 + $0x94] sm:$0xf]
          %v6746 = vld [vmem:[#allocation12 + $0x98] sm:$0xf]
          %v6747 = vld [vmem:[#allocation12 + $0x9c] sm:$0xf]
          %v6748 = vld [vmem:[#allocation12 + $0xa0] sm:$0xf]
          %v6749 = vld [vmem:[#allocation12 + $0xa4] sm:$0xf]
          %v6750 = vld [vmem:[#allocation12 + $0xa8] sm:$0xf]
          %v6751 = vld [vmem:[#allocation12 + $0xac] sm:$0xf]
          %v6752 = vld [vmem:[#allocation12 + $0xb0] sm:$0xf]
          %v6753 = vld [vmem:[#allocation12 + $0xb4] sm:$0xf]
          %v6754 = vld [vmem:[#allocation12 + $0xb8] sm:$0xf]
          %v6755 = vld [vmem:[#allocation12 + $0xbc] sm:$0xf]
          %v6756 = vld [vmem:[#allocation12 + $0xc0] sm:$0xf]
          %v6757 = vld [vmem:[#allocation12 + $0xc4] sm:$0xf]
          %v6758 = vld [vmem:[#allocation12 + $0xc8] sm:$0xf]
          %v6759 = vld [vmem:[#allocation12 + $0xcc] sm:$0xf]
          %v6760 = vld [vmem:[#allocation12 + $0xd0] sm:$0xf]
          %v6761 = vld [vmem:[#allocation12 + $0xd4] sm:$0xf]
          %v6762 = vld [vmem:[#allocation12 + $0xd8] sm:$0xf]
          %v6763 = vld [vmem:[#allocation12 + $0xdc] sm:$0xf]
          %v6764 = vld [vmem:[#allocation12 + $0xe0] sm:$0xf]
          %v6765 = vld [vmem:[#allocation12 + $0xe4] sm:$0xf]
          %v6766 = vld [vmem:[#allocation12 + $0xe8] sm:$0xf]
          %v6767 = vld [vmem:[#allocation12 + $0xec] sm:$0xf]
          %v6768 = vld [vmem:[#allocation12 + $0xf0] sm:$0xf]
          %v6769 = vld [vmem:[#allocation12 + $0xf4] sm:$0xf]
          %v6770 = vld [vmem:[#allocation12 + $0xf8] sm:$0xf]
          %v6771 = vld [vmem:[#allocation12 + $0xfc] sm:$0xf]
          %v6772 = vld [vmem:[#allocation12 + $0x100] sm:$0xf]
          %v6773 = vld [vmem:[#allocation12 + $0x104] sm:$0xf]
          %v6774 = vld [vmem:[#allocation12 + $0x108] sm:$0xf]
          %v6775 = vld [vmem:[#allocation12 + $0x10c] sm:$0xf]
          %v6776 = vld [vmem:[#allocation12 + $0x110] sm:$0xf]
          %v6777 = vld [vmem:[#allocation12 + $0x114] sm:$0xf]
          %v6778 = vld [vmem:[#allocation12 + $0x118] sm:$0xf]
          %v6779 = vld [vmem:[#allocation12 + $0x11c] sm:$0xf]
          %v6780 = vld [vmem:[#allocation12 + $0x120] sm:$0xf]
          %v6781 = vld [vmem:[#allocation12 + $0x124] sm:$0xf]
          %v6782 = vld [vmem:[#allocation12 + $0x128] sm:$0xf]
          %v6783 = vld [vmem:[#allocation12 + $0x12c] sm:$0xf]
          %v6784 = vld [vmem:[#allocation12 + $0x130] sm:$0xf]
          %v6785 = vld [vmem:[#allocation12 + $0x134] sm:$0xf]
          %v6786 = vld [vmem:[#allocation12 + $0x138] sm:$0xf]
          %v6787 = vld [vmem:[#allocation12 + $0x13c] sm:$0xf]
          %v6788 = vld [vmem:[#allocation12 + $0x140] sm:$0xf]
          %v6789 = vld [vmem:[#allocation12 + $0x144] sm:$0xf]
          %v6790 = vld [vmem:[#allocation12 + $0x148] sm:$0xf]
          %v6791 = vld [vmem:[#allocation12 + $0x14c] sm:$0xf]
          %v6792 = vld [vmem:[#allocation12 + $0x150] sm:$0xf]
          %v6793 = vld [vmem:[#allocation12 + $0x154] sm:$0xf]
          %v6794 = vld [vmem:[#allocation12 + $0x158] sm:$0xf]
          %v6795 = vld [vmem:[#allocation12 + $0x15c] sm:$0xf]
          %v6796 = vld [vmem:[#allocation12 + $0x160] sm:$0xf]
          %v6797 = vld [vmem:[#allocation12 + $0x164] sm:$0xf]
          %v6798 = vld [vmem:[#allocation12 + $0x168] sm:$0xf]
          %v6799 = vld [vmem:[#allocation12 + $0x16c] sm:$0xf]
          %v6800 = vld [vmem:[#allocation12 + $0x170] sm:$0xf]
          %v6801 = vld [vmem:[#allocation12 + $0x174] sm:$0xf]
          %v6802 = vld [vmem:[#allocation12 + $0x178] sm:$0xf]
          %v6803 = vld [vmem:[#allocation12 + $0x17c] sm:$0xf]
          %v6804 = vld [vmem:[#allocation12 + $0x180] sm:$0xf]
          %v6805 = vld [vmem:[#allocation12 + $0x184] sm:$0xf]
          %v6806 = vld [vmem:[#allocation12 + $0x188] sm:$0xf]
          %v6807 = vld [vmem:[#allocation12 + $0x18c] sm:$0xf]
          %v6808 = vld [vmem:[#allocation12 + $0x190] sm:$0xf]
          %v6809 = vld [vmem:[#allocation12 + $0x194] sm:$0xf]
          %v6810 = vld [vmem:[#allocation12 + $0x198] sm:$0xf]
          %v6811 = vld [vmem:[#allocation12 + $0x19c] sm:$0xf]
          %v6812 = vld [vmem:[#allocation12 + $0x1a0] sm:$0xf]
          %v6813 = vld [vmem:[#allocation12 + $0x1a4] sm:$0xf]
          %v6814 = vld [vmem:[#allocation12 + $0x1a8] sm:$0xf]
          %v6815 = vld [vmem:[#allocation12 + $0x1ac] sm:$0xf]
          %v6816 = vld [vmem:[#allocation12 + $0x1b0] sm:$0xf]
          %v6817 = vld [vmem:[#allocation12 + $0x1b4] sm:$0xf]
          %v6818 = vld [vmem:[#allocation12 + $0x1b8] sm:$0xf]
          %v6819 = vld [vmem:[#allocation12 + $0x1bc] sm:$0xf]
          %v6820 = vld [vmem:[#allocation12 + $0x1c0] sm:$0xf]
          %v6821 = vld [vmem:[#allocation12 + $0x1c4] sm:$0xf]
          %v6822 = vld [vmem:[#allocation12 + $0x1c8] sm:$0xf]
          %v6823 = vld [vmem:[#allocation12 + $0x1cc] sm:$0xf]
          %v6824 = vld [vmem:[#allocation12 + $0x1d0] sm:$0xf]
          %v6825 = vld [vmem:[#allocation12 + $0x1d4] sm:$0xf]
          %v6826 = vld [vmem:[#allocation12 + $0x1d8] sm:$0xf]
          %v6827 = vld [vmem:[#allocation12 + $0x1dc] sm:$0xf]
          %v6828 = vld [vmem:[#allocation12 + $0x1e0] sm:$0xf]
          %v6829 = vld [vmem:[#allocation12 + $0x1e4] sm:$0xf]
          %v6830 = vld [vmem:[#allocation12 + $0x1e8] sm:$0xf]
          %v6831 = vld [vmem:[#allocation12 + $0x1ec] sm:$0xf]
          %v6832 = vld [vmem:[#allocation12 + $0x1f0] sm:$0xf]
          %v6833 = vld [vmem:[#allocation12 + $0x1f4] sm:$0xf]
          %v6834 = vld [vmem:[#allocation12 + $0x1f8] sm:$0xf]
          %v6835 = vld [vmem:[#allocation12 + $0x1fc] sm:$0xf]
          %v6836 = vld [vmem:[#allocation14] sm:$0x1]
          %v6838 = vperm.slane %v6836, 0
          %v6968 = vunpack.c.l.b16 %v6708
          %v6969 = vunpack.c.l.b16 %v6709
          %v6970 = vunpack.c.l.b16 %v6710
          %v6971 = vunpack.c.l.b16 %v6711
          %v6972 = vunpack.c.l.b16 %v6712
          %v6973 = vunpack.c.l.b16 %v6713
          %v6974 = vunpack.c.l.b16 %v6714
          %v6975 = vunpack.c.l.b16 %v6715
          %v6976 = vunpack.c.l.b16 %v6716
          %v6977 = vunpack.c.l.b16 %v6717
          %v6978 = vunpack.c.l.b16 %v6718
          %v6979 = vunpack.c.l.b16 %v6719
          %v6980 = vunpack.c.l.b16 %v6720
          %v6981 = vunpack.c.l.b16 %v6721
          %v6982 = vunpack.c.l.b16 %v6722
          %v6983 = vunpack.c.l.b16 %v6723
          %v6984 = vunpack.c.l.b16 %v6724
          %v6985 = vunpack.c.l.b16 %v6725
          %v6986 = vunpack.c.l.b16 %v6726
          %v6987 = vunpack.c.l.b16 %v6727
          %v6988 = vunpack.c.l.b16 %v6728
          %v6989 = vunpack.c.l.b16 %v6729
          %v6990 = vunpack.c.l.b16 %v6730
          %v6991 = vunpack.c.l.b16 %v6731
          %v6992 = vunpack.c.l.b16 %v6732
          %v6993 = vunpack.c.l.b16 %v6733
          %v6994 = vunpack.c.l.b16 %v6734
          %v6995 = vunpack.c.l.b16 %v6735
          %v6996 = vunpack.c.l.b16 %v6736
          %v6997 = vunpack.c.l.b16 %v6737
          %v6998 = vunpack.c.l.b16 %v6738
          %v6999 = vunpack.c.l.b16 %v6739
          %v7000 = vunpack.c.l.b16 %v6740
          %v7001 = vunpack.c.l.b16 %v6741
          %v7002 = vunpack.c.l.b16 %v6742
          %v7003 = vunpack.c.l.b16 %v6743
          %v7004 = vunpack.c.l.b16 %v6744
          %v7005 = vunpack.c.l.b16 %v6745
          %v7006 = vunpack.c.l.b16 %v6746
          %v7007 = vunpack.c.l.b16 %v6747
          %v7008 = vunpack.c.l.b16 %v6748
          %v7009 = vunpack.c.l.b16 %v6749
          %v7010 = vunpack.c.l.b16 %v6750
          %v7011 = vunpack.c.l.b16 %v6751
          %v7012 = vunpack.c.l.b16 %v6752
          %v7013 = vunpack.c.l.b16 %v6753
          %v7014 = vunpack.c.l.b16 %v6754
          %v7015 = vunpack.c.l.b16 %v6755
          %v7016 = vunpack.c.l.b16 %v6756
          %v7017 = vunpack.c.l.b16 %v6757
          %v7018 = vunpack.c.l.b16 %v6758
          %v7019 = vunpack.c.l.b16 %v6759
          %v7020 = vunpack.c.l.b16 %v6760
          %v7021 = vunpack.c.l.b16 %v6761
          %v7022 = vunpack.c.l.b16 %v6762
          %v7023 = vunpack.c.l.b16 %v6763
          %v7024 = vunpack.c.l.b16 %v6764
          %v7025 = vunpack.c.l.b16 %v6765
          %v7026 = vunpack.c.l.b16 %v6766
          %v7027 = vunpack.c.l.b16 %v6767
          %v7028 = vunpack.c.l.b16 %v6768
          %v7029 = vunpack.c.l.b16 %v6769
          %v7030 = vunpack.c.l.b16 %v6770
          %v7031 = vunpack.c.l.b16 %v6771
          %v7032 = vunpack.c.l.b16 %v6772
          %v7033 = vunpack.c.l.b16 %v6773
          %v7034 = vunpack.c.l.b16 %v6774
          %v7035 = vunpack.c.l.b16 %v6775
          %v7036 = vunpack.c.l.b16 %v6776
          %v7037 = vunpack.c.l.b16 %v6777
          %v7038 = vunpack.c.l.b16 %v6778
          %v7039 = vunpack.c.l.b16 %v6779
          %v7040 = vunpack.c.l.b16 %v6780
          %v7041 = vunpack.c.l.b16 %v6781
          %v7042 = vunpack.c.l.b16 %v6782
          %v7043 = vunpack.c.l.b16 %v6783
          %v7044 = vunpack.c.l.b16 %v6784
          %v7045 = vunpack.c.l.b16 %v6785
          %v7046 = vunpack.c.l.b16 %v6786
          %v7047 = vunpack.c.l.b16 %v6787
          %v7048 = vunpack.c.l.b16 %v6788
          %v7049 = vunpack.c.l.b16 %v6789
          %v7050 = vunpack.c.l.b16 %v6790
          %v7051 = vunpack.c.l.b16 %v6791
          %v7052 = vunpack.c.l.b16 %v6792
          %v7053 = vunpack.c.l.b16 %v6793
          %v7054 = vunpack.c.l.b16 %v6794
          %v7055 = vunpack.c.l.b16 %v6795
          %v7056 = vunpack.c.l.b16 %v6796
          %v7057 = vunpack.c.l.b16 %v6797
          %v7058 = vunpack.c.l.b16 %v6798
          %v7059 = vunpack.c.l.b16 %v6799
          %v7060 = vunpack.c.l.b16 %v6800
          %v7061 = vunpack.c.l.b16 %v6801
          %v7062 = vunpack.c.l.b16 %v6802
          %v7063 = vunpack.c.l.b16 %v6803
          %v7064 = vunpack.c.l.b16 %v6804
          %v7065 = vunpack.c.l.b16 %v6805
          %v7066 = vunpack.c.l.b16 %v6806
          %v7067 = vunpack.c.l.b16 %v6807
          %v7068 = vunpack.c.l.b16 %v6808
          %v7069 = vunpack.c.l.b16 %v6809
          %v7070 = vunpack.c.l.b16 %v6810
          %v7071 = vunpack.c.l.b16 %v6811
          %v7072 = vunpack.c.l.b16 %v6812
          %v7073 = vunpack.c.l.b16 %v6813
          %v7074 = vunpack.c.l.b16 %v6814
          %v7075 = vunpack.c.l.b16 %v6815
          %v7076 = vunpack.c.l.b16 %v6816
          %v7077 = vunpack.c.l.b16 %v6817
          %v7078 = vunpack.c.l.b16 %v6818
          %v7079 = vunpack.c.l.b16 %v6819
          %v7080 = vunpack.c.l.b16 %v6820
          %v7081 = vunpack.c.l.b16 %v6821
          %v7082 = vunpack.c.l.b16 %v6822
          %v7083 = vunpack.c.l.b16 %v6823
          %v7084 = vunpack.c.l.b16 %v6824
          %v7085 = vunpack.c.l.b16 %v6825
          %v7086 = vunpack.c.l.b16 %v6826
          %v7087 = vunpack.c.l.b16 %v6827
          %v7088 = vunpack.c.l.b16 %v6828
          %v7089 = vunpack.c.l.b16 %v6829
          %v7090 = vunpack.c.l.b16 %v6830
          %v7091 = vunpack.c.l.b16 %v6831
          %v7092 = vunpack.c.l.b16 %v6832
          %v7093 = vunpack.c.l.b16 %v6833
          %v7094 = vunpack.c.l.b16 %v6834
          %v7095 = vunpack.c.l.b16 %v6835
          %v7096 = vpack.c.b16 %v6969, %v6968
          %v7097 = vpack.c.b16 %v6971, %v6970
          %v7098 = vpack.c.b16 %v6973, %v6972
          %v7099 = vpack.c.b16 %v6975, %v6974
          %v7100 = vpack.c.b16 %v6977, %v6976
          %v7101 = vpack.c.b16 %v6979, %v6978
          %v7102 = vpack.c.b16 %v6981, %v6980
          %v7103 = vpack.c.b16 %v6983, %v6982
          %v7104 = vpack.c.b16 %v6985, %v6984
          %v7105 = vpack.c.b16 %v6987, %v6986
          %v7106 = vpack.c.b16 %v6989, %v6988
          %v7107 = vpack.c.b16 %v6991, %v6990
          %v7108 = vpack.c.b16 %v6993, %v6992
          %v7109 = vpack.c.b16 %v6995, %v6994
          %v7110 = vpack.c.b16 %v6997, %v6996
          %v7111 = vpack.c.b16 %v6999, %v6998
          %v7112 = vpack.c.b16 %v7001, %v7000
          %v7113 = vpack.c.b16 %v7003, %v7002
          %v7114 = vpack.c.b16 %v7005, %v7004
          %v7115 = vpack.c.b16 %v7007, %v7006
          %v7116 = vpack.c.b16 %v7009, %v7008
          %v7117 = vpack.c.b16 %v7011, %v7010
          %v7118 = vpack.c.b16 %v7013, %v7012
          %v7119 = vpack.c.b16 %v7015, %v7014
          %v7120 = vpack.c.b16 %v7017, %v7016
          %v7121 = vpack.c.b16 %v7019, %v7018
          %v7122 = vpack.c.b16 %v7021, %v7020
          %v7123 = vpack.c.b16 %v7023, %v7022
          %v7124 = vpack.c.b16 %v7025, %v7024
          %v7125 = vpack.c.b16 %v7027, %v7026
          %v7126 = vpack.c.b16 %v7029, %v7028
          %v7127 = vpack.c.b16 %v7031, %v7030
          %v7128 = vpack.c.b16 %v7033, %v7032
          %v7129 = vpack.c.b16 %v7035, %v7034
          %v7130 = vpack.c.b16 %v7037, %v7036
          %v7131 = vpack.c.b16 %v7039, %v7038
          %v7132 = vpack.c.b16 %v7041, %v7040
          %v7133 = vpack.c.b16 %v7043, %v7042
          %v7134 = vpack.c.b16 %v7045, %v7044
          %v7135 = vpack.c.b16 %v7047, %v7046
          %v7136 = vpack.c.b16 %v7049, %v7048
          %v7137 = vpack.c.b16 %v7051, %v7050
          %v7138 = vpack.c.b16 %v7053, %v7052
          %v7139 = vpack.c.b16 %v7055, %v7054
          %v7140 = vpack.c.b16 %v7057, %v7056
          %v7141 = vpack.c.b16 %v7059, %v7058
          %v7142 = vpack.c.b16 %v7061, %v7060
          %v7143 = vpack.c.b16 %v7063, %v7062
          %v7144 = vpack.c.b16 %v7065, %v7064
          %v7145 = vpack.c.b16 %v7067, %v7066
          %v7146 = vpack.c.b16 %v7069, %v7068
          %v7147 = vpack.c.b16 %v7071, %v7070
          %v7148 = vpack.c.b16 %v7073, %v7072
          %v7149 = vpack.c.b16 %v7075, %v7074
          %v7150 = vpack.c.b16 %v7077, %v7076
          %v7151 = vpack.c.b16 %v7079, %v7078
          %v7152 = vpack.c.b16 %v7081, %v7080
          %v7153 = vpack.c.b16 %v7083, %v7082
          %v7154 = vpack.c.b16 %v7085, %v7084
          %v7155 = vpack.c.b16 %v7087, %v7086
          %v7156 = vpack.c.b16 %v7089, %v7088
          %v7157 = vpack.c.b16 %v7091, %v7090
          %v7158 = vpack.c.b16 %v7093, %v7092
          %v7159 = vpack.c.b16 %v7095, %v7094
          %7224 = vmatpush.bf16.msra.mxu0 %v7103
          %7225 = vmatpush.bf16.msra.mxu0 %v7102
          %7226 = vmatpush.bf16.msra.mxu0 %v7101
          %7227 = vmatpush.bf16.msra.mxu0 %v7100
          %7228 = vmatpush.bf16.msra.mxu0 %v7099
          %7229 = vmatpush.bf16.msra.mxu0 %v7098
          %7230 = vmatpush.bf16.msra.mxu0 %v7097
          %7231 = vmatpush.bf16.msra.mxu0 %v7096
          %7232 = vmatmul.bf16.gmra.mxu0 %v6700
          %v7233 = vpop.f32.mrf.mxu0
          %v7234 = vadd.f32 %v6838, %v7233
          %v7235 = vpop.f32.mrf.mxu0
          %7236 = vdwg.mxu0
          %7237 = vmatpush.bf16.msra.mxu0 %v7111
          %7238 = vmatpush.bf16.msra.mxu0 %v7110
          %7239 = vmatpush.bf16.msra.mxu0 %v7109
          %7240 = vmatpush.bf16.msra.mxu0 %v7108
          %7241 = vmatpush.bf16.msra.mxu0 %v7107
          %7242 = vmatpush.bf16.msra.mxu0 %v7106
          %7243 = vmatpush.bf16.msra.mxu0 %v7105
          %7244 = vmatpush.bf16.msra.mxu0 %v7104
          %7245 = vmatmul.bf16.gmra.mxu0 %v6701
          %v7246 = vpop.f32.mrf.mxu0
          %v7247 = vadd.f32 %v7234, %v7246
          %v7248 = vpop.f32.mrf.mxu0
          %7249 = vdwg.mxu0
          %7250 = vmatpush.bf16.msra.mxu0 %v7119
          %7251 = vmatpush.bf16.msra.mxu0 %v7118
          %7252 = vmatpush.bf16.msra.mxu0 %v7117
          %7253 = vmatpush.bf16.msra.mxu0 %v7116
          %7254 = vmatpush.bf16.msra.mxu0 %v7115
          %7255 = vmatpush.bf16.msra.mxu0 %v7114
          %7256 = vmatpush.bf16.msra.mxu0 %v7113
          %7257 = vmatpush.bf16.msra.mxu0 %v7112
          %7258 = vmatmul.bf16.gmra.mxu0 %v6702
          %v7259 = vpop.f32.mrf.mxu0
          %v7260 = vadd.f32 %v7247, %v7259
          %v7261 = vpop.f32.mrf.mxu0
          %7262 = vdwg.mxu0
          %7263 = vmatpush.bf16.msra.mxu0 %v7127
          %7264 = vmatpush.bf16.msra.mxu0 %v7126
          %7265 = vmatpush.bf16.msra.mxu0 %v7125
          %7266 = vmatpush.bf16.msra.mxu0 %v7124
          %7267 = vmatpush.bf16.msra.mxu0 %v7123
          %7268 = vmatpush.bf16.msra.mxu0 %v7122
          %7269 = vmatpush.bf16.msra.mxu0 %v7121
          %7270 = vmatpush.bf16.msra.mxu0 %v7120
          %7271 = vmatmul.bf16.gmra.mxu0 %v6703
          %v7272 = vpop.f32.mrf.mxu0
          %v7273 = vadd.f32 %v7260, %v7272
          %v7274 = vpop.f32.mrf.mxu0
          %7275 = vdwg.mxu0
          %7276 = vmatpush.bf16.msra.mxu0 %v7135
          %7277 = vmatpush.bf16.msra.mxu0 %v7134
          %7278 = vmatpush.bf16.msra.mxu0 %v7133
          %7279 = vmatpush.bf16.msra.mxu0 %v7132
          %7280 = vmatpush.bf16.msra.mxu0 %v7131
          %7281 = vmatpush.bf16.msra.mxu0 %v7130
          %7282 = vmatpush.bf16.msra.mxu0 %v7129
          %7283 = vmatpush.bf16.msra.mxu0 %v7128
          %7284 = vmatmul.bf16.gmra.mxu0 %v6704
          %v7285 = vpop.f32.mrf.mxu0
          %v7286 = vadd.f32 %v7273, %v7285
          %v7287 = vpop.f32.mrf.mxu0
          %7288 = vdwg.mxu0
          %7289 = vmatpush.bf16.msra.mxu0 %v7143
          %7290 = vmatpush.bf16.msra.mxu0 %v7142
          %7291 = vmatpush.bf16.msra.mxu0 %v7141
          %7292 = vmatpush.bf16.msra.mxu0 %v7140
          %7293 = vmatpush.bf16.msra.mxu0 %v7139
          %7294 = vmatpush.bf16.msra.mxu0 %v7138
          %7295 = vmatpush.bf16.msra.mxu0 %v7137
          %7296 = vmatpush.bf16.msra.mxu0 %v7136
          %7297 = vmatmul.bf16.gmra.mxu0 %v6705
          %v7298 = vpop.f32.mrf.mxu0
          %v7299 = vadd.f32 %v7286, %v7298
          %v7300 = vpop.f32.mrf.mxu0
          %7301 = vdwg.mxu0
          %7302 = vmatpush.bf16.msra.mxu0 %v7151
          %7303 = vmatpush.bf16.msra.mxu0 %v7150
          %7304 = vmatpush.bf16.msra.mxu0 %v7149
          %7305 = vmatpush.bf16.msra.mxu0 %v7148
          %7306 = vmatpush.bf16.msra.mxu0 %v7147
          %7307 = vmatpush.bf16.msra.mxu0 %v7146
          %7308 = vmatpush.bf16.msra.mxu0 %v7145
          %7309 = vmatpush.bf16.msra.mxu0 %v7144
          %7310 = vmatmul.bf16.gmra.mxu0 %v6706
          %v7311 = vpop.f32.mrf.mxu0
          %v7312 = vadd.f32 %v7299, %v7311
          %v7313 = vpop.f32.mrf.mxu0
          %7314 = vdwg.mxu0
          %7315 = vmatpush.bf16.msra.mxu0 %v7159
          %7316 = vmatpush.bf16.msra.mxu0 %v7158
          %7317 = vmatpush.bf16.msra.mxu0 %v7157
          %7318 = vmatpush.bf16.msra.mxu0 %v7156
          %7319 = vmatpush.bf16.msra.mxu0 %v7155
          %7320 = vmatpush.bf16.msra.mxu0 %v7154
          %7321 = vmatpush.bf16.msra.mxu0 %v7153
          %7322 = vmatpush.bf16.msra.mxu0 %v7152
          %7323 = vmatmul.bf16.gmra.mxu0 %v6707
          %v7324 = vpop.f32.mrf.mxu0
          %v7325 = vadd.f32 %v7312, %v7324
          %v7326 = vpop.f32.mrf.mxu0
          %7327 = vdwg.mxu0
          %v7328 = vld [vmem:[#allocation6] sm:$0xff]
          %vm7329 = vcmp.eq.f32.partialorder %v7328, 0.0
          %v7330 = vmul.f32 %v7325, %v7328
          %v7331 = vsel %vm7329, -inf, %v7330
          %7332 = vst [vmem:[#allocation15] sm:$0xff] %v7331
        $region92: #{tpu_custom_call.1} parent=51 // pred_fallthru
          _
        // Predicated region
        $region93: #{tpu_custom_call.1} parent=51 // pred_check
          %p7333 = pneg %p246
        $region94: #{tpu_custom_call.1} parent=51 // pred_check_branch
          %7335 = sbr.rel (%p7333) target = $region96
        $region95: #{tpu_custom_call.1} parent=51 // pred_region
          %7337 = vsyncadd [#allocation5], 0
          %s7338 = smul.addr %s27, 8
          %s7339 = scalar_lea.hbm %s8, %s7338
          %s7341 = sshll.u32 [#allocation15], 4
          %s7342 = int_to_ptr.vmem [resolvable:$true] %s7341
          %s7343 = sshll.u32 %s7339, 4
          %s7344 = int_to_ptr.hbm [resolvable:$true] %s7343
          %7346 = dma.vmem_to_hbm [thread:$0]  %s7342, 128, %s7344, [#allocation5]
        $region96: #{tpu_custom_call.1} parent=51 // pred_fallthru
          _
        // Predicated region
        $region97: #{tpu_custom_call.1} parent=51 // pred_check
          %p7347 = pneg %p246
        $region98: #{tpu_custom_call.1} parent=51 // pred_check_branch
          %7349 = sbr.rel (%p7347) target = $region100
        $region99: #{tpu_custom_call.1} parent=51 // pred_region
          %7351 = dma.done [#allocation5], 128
        $region100: #{tpu_custom_call.1} parent=51 // pred_fallthru
          _
      $region52: #{tpu_custom_call.1} parent=5 // pred_fallthru
        _
      %p7352 = scmp.le.s32.totalorder 2, %s18
      // Predicated region
      $region101: #{tpu_custom_call.1} parent=5 // pred_check
        %p7353 = pneg %p7352
      $region102: #{tpu_custom_call.1} parent=5 // pred_check_branch
        %7355 = sbr.rel (%p7353) target = $region104
      $region103: #{tpu_custom_call.1} parent=5 // pred_region
        %s7356 = ssub.s32 %s18, 2
      $region104: #{tpu_custom_call.1} parent=5 // pred_fallthru
        _
    $region6: #{tpu_custom_call.1} parent=1 // loop_footer
      %s22 = sadd.s32 1, %s18
    $region7: #{tpu_custom_call.1} parent=1 // loop_footer_branch
      %17 = sbr.rel target = $region3
    $region8: #{tpu_custom_call.1} parent=1 // loop_exit
      _
    %7357 = vsyncpa [#allocation4], 1
    %s7358 = scalar_lea.sflag [#allocation4], 1
    %7359 = vsyncpa %s7358, 1
    %7360 = vsyncpa [#allocation7], 1
    %7361 = vsyncpa [#allocation13], 1
    %7362 = vsyncpa [#allocation5], 1
    %s7363 = scalar_lea.sflag [#allocation5], 1
    %7364 = vsyncpa %s7363, 1

</llo_original>
